<compile_context>
chip_gen: v7x
topology: tpu7x:2x2x1
jax: 0.10.0
libtpu: 0.0.40
codegen_flags: <defaults>
</compile_context>

<pallas_src>
import numpy as np
import jax
import jax.numpy as jnp
from jax import lax
from jax.experimental import pallas as pl
from jax.experimental.pallas import tpu as pltpu

# ------------------------- small, module-consistent dims -------------------------
BATCH = 2
SEQ = 8
INPUT_SIZE = 16      # (28 in the original module; scaled down)
HIDDEN_SIZE = 32     # (256 in the original module; scaled down)
NUM_LAYERS = 2       # kernel below is written for exactly 2 layers
NUM_CLASSES = 10

BATCH_PAD = 8        # pad batch to the f32 sublane count
C_PAD = 128          # pad FC output to a full lane width


# ------------------------------- fused Pallas kernel ------------------------------
def brnn_kernel(x_ref,                                          # (T*B, Din)
                wih0_ref, whh0f_ref, whh0b_ref, b0_ref,         # layer0: (Din,8H),(H,4H),(H,4H),(1,8H)
                wih1_ref, whh1f_ref, whh1b_ref, b1_ref,         # layer1: (2H,8H),(H,4H),(H,4H),(1,8H)
                fcw_ref, fcb_ref,                               # (2H,Cp), (1,Cp)
                out_ref,                                        # (B, Cp)
                hseq0_ref, hseq1_ref, gx_ref):                  # VMEM scratch
    B = out_ref.shape[0]
    H = whh0f_ref.shape[0]
    T = x_ref.shape[0] // B
    H4 = 4 * H

    # Hoisted gate-lane mask: tanh on g-gate lanes [2H, 3H), sigmoid elsewhere.
    lane = lax.broadcasted_iota(jnp.int32, (B, H4), 1)
    g_mask = (lane >= 2 * H) & (lane < 3 * H)

    def cell(gx_t, h_prev, c_prev, whh):
        # gx_t already contains x_t @ W_ih + (b_ih + b_hh)
        gates = gx_t + jnp.dot(h_prev, whh, preferred_element_type=jnp.float32)
        act = jnp.where(g_mask, jnp.tanh(gates), jax.nn.sigmoid(gates))
        i_g = act[:, 0 * H:1 * H]
        f_g = act[:, 1 * H:2 * H]
        g_g = act[:, 2 * H:3 * H]
        o_g = act[:, 3 * H:4 * H]
        c_new = f_g * c_prev + i_g * g_g
        h_new = o_g * jnp.tanh(c_new)
        return h_new, c_new

    def bidir_layer(x2d, wih_cat_ref, whhf_ref, whhb_ref, bcat_ref, hseq_ref):
        # Input projection for ALL timesteps and BOTH directions in one MXU pass.
        gx_ref[...] = (jnp.dot(x2d, wih_cat_ref[...],
                               preferred_element_type=jnp.float32)
                       + bcat_ref[...])
        whh_f = whhf_ref[...]
        whh_b = whhb_ref[...]
        zeros = jnp.zeros((B, H), jnp.float32)
        h_f, c_f = zeros, zeros
        h_b, c_b = zeros, zeros
        for t in range(T):                      # static unroll; T is small & static
            tb = T - 1 - t
            gx_f = gx_ref[pl.ds(t * B, B), pl.ds(0, H4)]
            gx_b = gx_ref[pl.ds(tb * B, B), pl.ds(H4, H4)]
            h_f, c_f = cell(gx_f, h_f, c_f, whh_f)
            h_b, c_b = cell(gx_b, h_b, c_b, whh_b)
            hseq_ref[pl.ds(t * B, B), pl.ds(0, H)] = h_f
            hseq_ref[pl.ds(tb * B, B), pl.ds(H, H)] = h_b

    # Layer 0: input -> 2H, layer 1: 2H -> 2H. Everything stays in VMEM.
    bidir_layer(x_ref[...], wih0_ref, whh0f_ref, whh0b_ref, b0_ref, hseq0_ref)
    bidir_layer(hseq0_ref[...], wih1_ref, whh1f_ref, whh1b_ref, b1_ref, hseq1_ref)

    # FC head on out[:, -1, :] == last timestep of layer-1 output (already in VMEM).
    last = hseq1_ref[pl.ds((T - 1) * B, B), :]                     # (B, 2H)
    out_ref[...] = (jnp.dot(last, fcw_ref[...],
                            preferred_element_type=jnp.float32)
                    + fcb_ref[...]).astype(out_ref.dtype)


# ------------------------------- Pallas wrapper ------------------------------------
def pack_kernel_params(params):
    """Build kernel-layout params: fwd/bwd W_ih & bias concatenated, FC lane-padded."""
    packed = []
    for layer in range(NUM_LAYERS):
        (w_f, h_f, b_f), (w_b, h_b, b_b) = params["lstm"][layer]
        wih_cat = jnp.concatenate([w_f, w_b], axis=1)              # (Din, 8H)
        b_cat = jnp.concatenate([b_f, b_b], axis=1)                # (1, 8H)
        packed += [wih_cat, h_f, h_b, b_cat]
    fcw, fcb = params["fc_w"], params["fc_b"]                      # (2H, C), (1, C)
    C = fcw.shape[1]
    fcw_p = jnp.zeros((fcw.shape[0], C_PAD), jnp.float32).at[:, :C].set(fcw)
    fcb_p = jnp.zeros((1, C_PAD), jnp.float32).at[:, :C].set(fcb)
    packed += [fcw_p, fcb_p]
    return packed


def brnn_forward(x, params):
    """x: (B, T, input_size) — batch_first like the PyTorch module."""
    assert NUM_LAYERS == 2
    B, T, Din = x.shape
    Bp = BATCH_PAD
    H = HIDDEN_SIZE

    # Pad batch to the sublane count, go time-major, flatten to (T*Bp, Din).
    xp = jnp.zeros((Bp, T, Din), jnp.float32).at[:B, :, :].set(x)
    x2d = jnp.transpose(xp, (1, 0, 2)).reshape(T * Bp, Din)

    packed = pack_kernel_params(params)
    vmem = pl.BlockSpec(memory_space=pltpu.MemorySpace.VMEM)

    out = pl.pallas_call(
        brnn_kernel,
        out_shape=jax.ShapeDtypeStruct((Bp, C_PAD), jnp.float32),
        in_specs=[vmem] * (1 + len(packed)),
        out_specs=vmem,
        scratch_shapes=[
            pltpu.VMEM((T * Bp, 2 * H), jnp.float32),   # layer-0 hidden sequence
            pltpu.VMEM((T * Bp, 2 * H), jnp.float32),   # layer-1 hidden sequence
            pltpu.VMEM((T * Bp, 8 * H), jnp.float32),   # hoisted x-projection (reused per layer)
        ],
    )(x2d, *packed)
    return out[:B, :NUM_CLASSES]


# ------------------------------- reference (pure JAX) ------------------------------
def lstm_dir_ref(x_btd, w_ih_t, w_hh_t, bias):
    B, T, _ = x_btd.shape
    H = w_hh_t.shape[0]
    h = jnp.zeros((B, H), jnp.float32)
    c = jnp.zeros((B, H), jnp.float32)
    outs = []
    for t in range(T):
        gates = x_btd[:, t, :] @ w_ih_t + h @ w_hh_t + bias
        i_g = jax.nn.sigmoid(gates[:, 0 * H:1 * H])
        f_g = jax.nn.sigmoid(gates[:, 1 * H:2 * H])
        g_g = jnp.tanh(gates[:, 2 * H:3 * H])
        o_g = jax.nn.sigmoid(gates[:, 3 * H:4 * H])
        c = f_g * c + i_g * g_g
        h = o_g * jnp.tanh(c)
        outs.append(h)
    return jnp.stack(outs, axis=1)                                 # (B, T, H)


def brnn_forward_ref(x, params):
    layer_in = x
    for layer in range(NUM_LAYERS):
        dir_outs = []
        for direction in range(2):
            w_ih_t, w_hh_t, bias = params["lstm"][layer][direction]
            inp = layer_in[:, ::-1, :] if direction == 1 else layer_in
            hseq = lstm_dir_ref(inp, w_ih_t, w_hh_t, bias)
            if direction == 1:
                hseq = hseq[:, ::-1, :]
            dir_outs.append(hseq)
        layer_in = jnp.concatenate(dir_outs, axis=-1)
    return layer_in[:, -1, :] @ params["fc_w"] + params["fc_b"]


# ------------------------------- parameter init ------------------------------------
def init_params(key):
    k_lstm = 1.0 / np.sqrt(HIDDEN_SIZE)
    keys = jax.random.split(key, NUM_LAYERS * 2 * 4 + 2)
    idx = 0
    lstm = []
    for layer in range(NUM_LAYERS):
        d_in = INPUT_SIZE if layer == 0 else 2 * HIDDEN_SIZE
        dirs = []
        for _ in range(2):
            w_ih = jax.random.uniform(keys[idx], (4 * HIDDEN_SIZE, d_in),
                                      minval=-k_lstm, maxval=k_lstm); idx += 1
            w_hh = jax.random.uniform(keys[idx], (4 * HIDDEN_SIZE, HIDDEN_SIZE),
                                      minval=-k_lstm, maxval=k_lstm); idx += 1
            b_ih = jax.random.uniform(keys[idx], (4 * HIDDEN_SIZE,),
                                      minval=-k_lstm, maxval=k_lstm); idx += 1
            b_hh = jax.random.uniform(keys[idx], (4 * HIDDEN_SIZE,),
                                      minval=-k_lstm, maxval=k_lstm); idx += 1
            dirs.append((w_ih.T.astype(jnp.float32),                       # (Din, 4H)
                         w_hh.T.astype(jnp.float32),                       # (H, 4H)
                         (b_ih + b_hh)[None, :].astype(jnp.float32)))      # (1, 4H)
        lstm.append(dirs)
    k_fc = 1.0 / np.sqrt(2 * HIDDEN_SIZE)
    fc_w = jax.random.uniform(keys[idx], (NUM_CLASSES, 2 * HIDDEN_SIZE),
                              minval=-k_fc, maxval=k_fc); idx += 1
    fc_b = jax.random.uniform(keys[idx], (NUM_CLASSES,),
                              minval=-k_fc, maxval=k_fc); idx += 1
    return {"lstm": lstm,
            "fc_w": fc_w.T.astype(jnp.float32),                            # (2H, C)
            "fc_b": fc_b[None, :].astype(jnp.float32)}                     # (1, C)


# ---------------------------------------- main --------------------------------------
if __name__ == "__main__":
    key = jax.random.PRNGKey(0)
    k_x, k_p = jax.random.split(key)
    x = jax.random.normal(k_x, (BATCH, SEQ, INPUT_SIZE), dtype=jnp.float32)
    params = init_params(k_p)

    out = jax.block_until_ready(brnn_forward(x, params))
    ref = jax.block_until_ready(brnn_forward_ref(x, params))

    assert out.shape == (BATCH, NUM_CLASSES), out.shape
    np.testing.assert_allclose(np.asarray(out), np.asarray(ref),
                               rtol=1e-4, atol=1e-4)
    print("KERNEL_OK")
</pallas_src>

<mosaic_0001>
module attributes {stable_mosaic.version = 11 : i64} {
  func.func @brnn_kernel(%arg0: memref<64x16xf32, #tpu.memory_space<vmem>>, %arg1: memref<16x256xf32, #tpu.memory_space<vmem>>, %arg2: memref<32x128xf32, #tpu.memory_space<vmem>>, %arg3: memref<32x128xf32, #tpu.memory_space<vmem>>, %arg4: memref<1x256xf32, #tpu.memory_space<vmem>>, %arg5: memref<64x256xf32, #tpu.memory_space<vmem>>, %arg6: memref<32x128xf32, #tpu.memory_space<vmem>>, %arg7: memref<32x128xf32, #tpu.memory_space<vmem>>, %arg8: memref<1x256xf32, #tpu.memory_space<vmem>>, %arg9: memref<64x128xf32, #tpu.memory_space<vmem>>, %arg10: memref<1x128xf32, #tpu.memory_space<vmem>>, %arg11: memref<8x128xf32, #tpu.memory_space<vmem>>, %arg12: memref<64x64xf32, #tpu.memory_space<vmem>>, %arg13: memref<64x64xf32, #tpu.memory_space<vmem>>, %arg14: memref<64x256xf32, #tpu.memory_space<vmem>>) attributes {dimension_semantics = [], scalar_prefetch = 0 : i64, scratch_operands = 3 : i64, tpu.core_type = #tpu.core_type<tc>} {
    %0 = tpu.iota {dimensions = array<i32: 1>} : vector<8x128xi32>
    %c64_i32 = arith.constant 64 : i32
    %1 = vector.broadcast %c64_i32 : i32 to vector<8x128xi32>
    %2 = arith.cmpi sge, %0, %1 : vector<8x128xi32>
    %c96_i32 = arith.constant 96 : i32
    %3 = vector.broadcast %c96_i32 : i32 to vector<8x128xi32>
    %4 = arith.cmpi slt, %0, %3 : vector<8x128xi32>
    %5 = arith.andi %2, %4 : vector<8x128xi1>
    %c0 = arith.constant 0 : index
    %c0_0 = arith.constant 0 : index
    %6 = vector.load %arg0[%c0, %c0_0] : memref<64x16xf32, #tpu.memory_space<vmem>>, vector<64x16xf32>
    %c0_1 = arith.constant 0 : index
    %c0_2 = arith.constant 0 : index
    %7 = vector.load %arg1[%c0_1, %c0_2] : memref<16x256xf32, #tpu.memory_space<vmem>>, vector<16x256xf32>
    %cst = arith.constant dense<0.000000e+00> : vector<64x256xf32>
    %8 = tpu.matmul %6, %7, %cst {dimension_numbers = #tpu.dot_dimension_numbers<[1], [0], [0], [1], [0, 0, 1, 1], [], []>} : vector<64x16xf32>, vector<16x256xf32>, vector<64x256xf32> -> vector<64x256xf32>
    %c0_3 = arith.constant 0 : index
    %c0_4 = arith.constant 0 : index
    %9 = vector.load %arg4[%c0_3, %c0_4] : memref<1x256xf32, #tpu.memory_space<vmem>>, vector<1x256xf32>
    %10 = vector.broadcast %9 : vector<1x256xf32> to vector<64x256xf32>
    %11 = arith.addf %8, %10 : vector<64x256xf32>
    %c0_5 = arith.constant 0 : index
    %c0_6 = arith.constant 0 : index
    %12 = vector.load %arg14[%c0_5, %c0_6] : memref<64x256xf32, #tpu.memory_space<vmem>>, vector<64x256xf32>
    tpu.vector_store %arg14[%c0_5, %c0_6], %11 {strides = array<i32>} : memref<64x256xf32, #tpu.memory_space<vmem>>, vector<64x256xf32>,
    %c0_7 = arith.constant 0 : index
    %c0_8 = arith.constant 0 : index
    %13 = vector.load %arg2[%c0_7, %c0_8] : memref<32x128xf32, #tpu.memory_space<vmem>>, vector<32x128xf32>
    %c0_9 = arith.constant 0 : index
    %c0_10 = arith.constant 0 : index
    %14 = vector.load %arg3[%c0_9, %c0_10] : memref<32x128xf32, #tpu.memory_space<vmem>>, vector<32x128xf32>
    %cst_11 = arith.constant 0.000000e+00 : f32
    %15 = vector.broadcast %cst_11 : f32 to vector<8x32xf32>
    %c0_12 = arith.constant 0 : index
    %c0_13 = arith.constant 0 : index
    %16 = vector.load %arg14[%c0_12, %c0_13] : memref<64x256xf32, #tpu.memory_space<vmem>>, vector<8x128xf32>
    %c56 = arith.constant 56 : index
    %c128 = arith.constant 128 : index
    %17 = vector.load %arg14[%c56, %c128] : memref<64x256xf32, #tpu.memory_space<vmem>>, vector<8x128xf32>
    %cst_14 = arith.constant dense<0.000000e+00> : vector<8x128xf32>
    %18 = tpu.matmul %15, %13, %cst_14 {dimension_numbers = #tpu.dot_dimension_numbers<[1], [0], [0], [1], [0, 0, 1, 1], [], []>} : vector<8x32xf32>, vector<32x128xf32>, vector<8x128xf32> -> vector<8x128xf32>
    %19 = arith.addf %16, %18 : vector<8x128xf32>
    %20 = math.tanh %19 : vector<8x128xf32>
    %21 = arith.negf %19 : vector<8x128xf32>
    %22 = math.exp %21 : vector<8x128xf32>
    %cst_15 = arith.constant 1.000000e+00 : f32
    %23 = vector.broadcast %cst_15 : f32 to vector<8x128xf32>
    %24 = arith.addf %23, %22 : vector<8x128xf32>
    %25 = arith.divf %23, %24 : vector<8x128xf32>
    %26 = arith.select %5, %20, %25 : vector<8x128xi1>, vector<8x128xf32>
    %27 = vector.extract_strided_slice %26 {offsets = [0, 0], sizes = [8, 32], strides = [1, 1]} : vector<8x128xf32> to vector<8x32xf32>
    %28 = vector.extract_strided_slice %26 {offsets = [0, 32], sizes = [8, 32], strides = [1, 1]} : vector<8x128xf32> to vector<8x32xf32>
    %29 = vector.extract_strided_slice %26 {offsets = [0, 64], sizes = [8, 32], strides = [1, 1]} : vector<8x128xf32> to vector<8x32xf32>
    %30 = vector.extract_strided_slice %26 {offsets = [0, 96], sizes = [8, 32], strides = [1, 1]} : vector<8x128xf32> to vector<8x32xf32>
    %31 = arith.mulf %28, %15 : vector<8x32xf32>
    %32 = arith.mulf %27, %29 : vector<8x32xf32>
    %33 = arith.addf %31, %32 : vector<8x32xf32>
    %34 = math.tanh %33 : vector<8x32xf32>
    %35 = arith.mulf %30, %34 : vector<8x32xf32>
    %cst_16 = arith.constant dense<0.000000e+00> : vector<8x128xf32>
    %36 = tpu.matmul %15, %14, %cst_16 {dimension_numbers = #tpu.dot_dimension_numbers<[1], [0], [0], [1], [0, 0, 1, 1], [], []>} : vector<8x32xf32>, vector<32x128xf32>, vector<8x128xf32> -> vector<8x128xf32>
    %37 = arith.addf %17, %36 : vector<8x128xf32>
    %38 = math.tanh %37 : vector<8x128xf32>
    %39 = arith.negf %37 : vector<8x128xf32>
    %40 = math.exp %39 : vector<8x128xf32>
    %cst_17 = arith.constant 1.000000e+00 : f32
    %41 = vector.broadcast %cst_17 : f32 to vector<8x128xf32>
    %42 = arith.addf %41, %40 : vector<8x128xf32>
    %43 = arith.divf %41, %42 : vector<8x128xf32>
    %44 = arith.select %5, %38, %43 : vector<8x128xi1>, vector<8x128xf32>
    %45 = vector.extract_strided_slice %44 {offsets = [0, 0], sizes = [8, 32], strides = [1, 1]} : vector<8x128xf32> to vector<8x32xf32>
    %46 = vector.extract_strided_slice %44 {offsets = [0, 32], sizes = [8, 32], strides = [1, 1]} : vector<8x128xf32> to vector<8x32xf32>
    %47 = vector.extract_strided_slice %44 {offsets = [0, 64], sizes = [8, 32], strides = [1, 1]} : vector<8x128xf32> to vector<8x32xf32>
    %48 = vector.extract_strided_slice %44 {offsets = [0, 96], sizes = [8, 32], strides = [1, 1]} : vector<8x128xf32> to vector<8x32xf32>
    %49 = arith.mulf %46, %15 : vector<8x32xf32>
    %50 = arith.mulf %45, %47 : vector<8x32xf32>
    %51 = arith.addf %49, %50 : vector<8x32xf32>
    %52 = math.tanh %51 : vector<8x32xf32>
    %53 = arith.mulf %48, %52 : vector<8x32xf32>
    %c0_18 = arith.constant 0 : index
    %c0_19 = arith.constant 0 : index
    %54 = vector.load %arg12[%c0_18, %c0_19] : memref<64x64xf32, #tpu.memory_space<vmem>>, vector<8x32xf32>
    tpu.vector_store %arg12[%c0_18, %c0_19], %35 {strides = array<i32>} : memref<64x64xf32, #tpu.memory_space<vmem>>, vector<8x32xf32>,
    %c56_20 = arith.constant 56 : index
    %c32 = arith.constant 32 : index
    %55 = vector.load %arg12[%c56_20, %c32] : memref<64x64xf32, #tpu.memory_space<vmem>>, vector<8x32xf32>
    tpu.vector_store %arg12[%c56_20, %c32], %53 {strides = array<i32>} : memref<64x64xf32, #tpu.memory_space<vmem>>, vector<8x32xf32>,
    %c8 = arith.constant 8 : index
    %c0_21 = arith.constant 0 : index
    %56 = vector.load %arg14[%c8, %c0_21] : memref<64x256xf32, #tpu.memory_space<vmem>>, vector<8x128xf32>
    %c48 = arith.constant 48 : index
    %c128_22 = arith.constant 128 : index
    %57 = vector.load %arg14[%c48, %c128_22] : memref<64x256xf32, #tpu.memory_space<vmem>>, vector<8x128xf32>
    %cst_23 = arith.constant dense<0.000000e+00> : vector<8x128xf32>
    %58 = tpu.matmul %35, %13, %cst_23 {dimension_numbers = #tpu.dot_dimension_numbers<[1], [0], [0], [1], [0, 0, 1, 1], [], []>} : vector<8x32xf32>, vector<32x128xf32>, vector<8x128xf32> -> vector<8x128xf32>
    %59 = arith.addf %56, %58 : vector<8x128xf32>
    %60 = math.tanh %59 : vector<8x128xf32>
    %61 = arith.negf %59 : vector<8x128xf32>
    %62 = math.exp %61 : vector<8x128xf32>
    %cst_24 = arith.constant 1.000000e+00 : f32
    %63 = vector.broadcast %cst_24 : f32 to vector<8x128xf32>
    %64 = arith.addf %63, %62 : vector<8x128xf32>
    %65 = arith.divf %63, %64 : vector<8x128xf32>
    %66 = arith.select %5, %60, %65 : vector<8x128xi1>, vector<8x128xf32>
    %67 = vector.extract_strided_slice %66 {offsets = [0, 0], sizes = [8, 32], strides = [1, 1]} : vector<8x128xf32> to vector<8x32xf32>
    %68 = vector.extract_strided_slice %66 {offsets = [0, 32], sizes = [8, 32], strides = [1, 1]} : vector<8x128xf32> to vector<8x32xf32>
    %69 = vector.extract_strided_slice %66 {offsets = [0, 64], sizes = [8, 32], strides = [1, 1]} : vector<8x128xf32> to vector<8x32xf32>
    %70 = vector.extract_strided_slice %66 {offsets = [0, 96], sizes = [8, 32], strides = [1, 1]} : vector<8x128xf32> to vector<8x32xf32>
    %71 = arith.mulf %68, %33 : vector<8x32xf32>
    %72 = arith.mulf %67, %69 : vector<8x32xf32>
    %73 = arith.addf %71, %72 : vector<8x32xf32>
    %74 = math.tanh %73 : vector<8x32xf32>
    %75 = arith.mulf %70, %74 : vector<8x32xf32>
    %cst_25 = arith.constant dense<0.000000e+00> : vector<8x128xf32>
    %76 = tpu.matmul %53, %14, %cst_25 {dimension_numbers = #tpu.dot_dimension_numbers<[1], [0], [0], [1], [0, 0, 1, 1], [], []>} : vector<8x32xf32>, vector<32x128xf32>, vector<8x128xf32> -> vector<8x128xf32>
    %77 = arith.addf %57, %76 : vector<8x128xf32>
    %78 = math.tanh %77 : vector<8x128xf32>
    %79 = arith.negf %77 : vector<8x128xf32>
    %80 = math.exp %79 : vector<8x128xf32>
    %cst_26 = arith.constant 1.000000e+00 : f32
    %81 = vector.broadcast %cst_26 : f32 to vector<8x128xf32>
    %82 = arith.addf %81, %80 : vector<8x128xf32>
    %83 = arith.divf %81, %82 : vector<8x128xf32>
    %84 = arith.select %5, %78, %83 : vector<8x128xi1>, vector<8x128xf32>
    %85 = vector.extract_strided_slice %84 {offsets = [0, 0], sizes = [8, 32], strides = [1, 1]} : vector<8x128xf32> to vector<8x32xf32>
    %86 = vector.extract_strided_slice %84 {offsets = [0, 32], sizes = [8, 32], strides = [1, 1]} : vector<8x128xf32> to vector<8x32xf32>
    %87 = vector.extract_strided_slice %84 {offsets = [0, 64], sizes = [8, 32], strides = [1, 1]} : vector<8x128xf32> to vector<8x32xf32>
    %88 = vector.extract_strided_slice %84 {offsets = [0, 96], sizes = [8, 32], strides = [1, 1]} : vector<8x128xf32> to vector<8x32xf32>
    %89 = arith.mulf %86, %51 : vector<8x32xf32>
    %90 = arith.mulf %85, %87 : vector<8x32xf32>
    %91 = arith.addf %89, %90 : vector<8x32xf32>
    %92 = math.tanh %91 : vector<8x32xf32>
    %93 = arith.mulf %88, %92 : vector<8x32xf32>
    %c8_27 = arith.constant 8 : index
    %c0_28 = arith.constant 0 : index
    %94 = vector.load %arg12[%c8_27, %c0_28] : memref<64x64xf32, #tpu.memory_space<vmem>>, vector<8x32xf32>
    tpu.vector_store %arg12[%c8_27, %c0_28], %75 {strides = array<i32>} : memref<64x64xf32, #tpu.memory_space<vmem>>, vector<8x32xf32>,
    %c48_29 = arith.constant 48 : index
    %c32_30 = arith.constant 32 : index
    %95 = vector.load %arg12[%c48_29, %c32_30] : memref<64x64xf32, #tpu.memory_space<vmem>>, vector<8x32xf32>
    tpu.vector_store %arg12[%c48_29, %c32_30], %93 {strides = array<i32>} : memref<64x64xf32, #tpu.memory_space<vmem>>, vector<8x32xf32>,
    %c16 = arith.constant 16 : index
    %c0_31 = arith.constant 0 : index
    %96 = vector.load %arg14[%c16, %c0_31] : memref<64x256xf32, #tpu.memory_space<vmem>>, vector<8x128xf32>
    %c40 = arith.constant 40 : index
    %c128_32 = arith.constant 128 : index
    %97 = vector.load %arg14[%c40, %c128_32] : memref<64x256xf32, #tpu.memory_space<vmem>>, vector<8x128xf32>
    %cst_33 = arith.constant dense<0.000000e+00> : vector<8x128xf32>
    %98 = tpu.matmul %75, %13, %cst_33 {dimension_numbers = #tpu.dot_dimension_numbers<[1], [0], [0], [1], [0, 0, 1, 1], [], []>} : vector<8x32xf32>, vector<32x128xf32>, vector<8x128xf32> -> vector<8x128xf32>
    %99 = arith.addf %96, %98 : vector<8x128xf32>
    %100 = math.tanh %99 : vector<8x128xf32>
    %101 = arith.negf %99 : vector<8x128xf32>
    %102 = math.exp %101 : vector<8x128xf32>
    %cst_34 = arith.constant 1.000000e+00 : f32
    %103 = vector.broadcast %cst_34 : f32 to vector<8x128xf32>
    %104 = arith.addf %103, %102 : vector<8x128xf32>
    %105 = arith.divf %103, %104 : vector<8x128xf32>
    %106 = arith.select %5, %100, %105 : vector<8x128xi1>, vector<8x128xf32>
    %107 = vector.extract_strided_slice %106 {offsets = [0, 0], sizes = [8, 32], strides = [1, 1]} : vector<8x128xf32> to vector<8x32xf32>
    %108 = vector.extract_strided_slice %106 {offsets = [0, 32], sizes = [8, 32], strides = [1, 1]} : vector<8x128xf32> to vector<8x32xf32>
    %109 = vector.extract_strided_slice %106 {offsets = [0, 64], sizes = [8, 32], strides = [1, 1]} : vector<8x128xf32> to vector<8x32xf32>
    %110 = vector.extract_strided_slice %106 {offsets = [0, 96], sizes = [8, 32], strides = [1, 1]} : vector<8x128xf32> to vector<8x32xf32>
    %111 = arith.mulf %108, %73 : vector<8x32xf32>
    %112 = arith.mulf %107, %109 : vector<8x32xf32>
    %113 = arith.addf %111, %112 : vector<8x32xf32>
    %114 = math.tanh %113 : vector<8x32xf32>
    %115 = arith.mulf %110, %114 : vector<8x32xf32>
    %cst_35 = arith.constant dense<0.000000e+00> : vector<8x128xf32>
    %116 = tpu.matmul %93, %14, %cst_35 {dimension_numbers = #tpu.dot_dimension_numbers<[1], [0], [0], [1], [0, 0, 1, 1], [], []>} : vector<8x32xf32>, vector<32x128xf32>, vector<8x128xf32> -> vector<8x128xf32>
    %117 = arith.addf %97, %116 : vector<8x128xf32>
    %118 = math.tanh %117 : vector<8x128xf32>
    %119 = arith.negf %117 : vector<8x128xf32>
    %120 = math.exp %119 : vector<8x128xf32>
    %cst_36 = arith.constant 1.000000e+00 : f32
    %121 = vector.broadcast %cst_36 : f32 to vector<8x128xf32>
    %122 = arith.addf %121, %120 : vector<8x128xf32>
    %123 = arith.divf %121, %122 : vector<8x128xf32>
    %124 = arith.select %5, %118, %123 : vector<8x128xi1>, vector<8x128xf32>
    %125 = vector.extract_strided_slice %124 {offsets = [0, 0], sizes = [8, 32], strides = [1, 1]} : vector<8x128xf32> to vector<8x32xf32>
    %126 = vector.extract_strided_slice %124 {offsets = [0, 32], sizes = [8, 32], strides = [1, 1]} : vector<8x128xf32> to vector<8x32xf32>
    %127 = vector.extract_strided_slice %124 {offsets = [0, 64], sizes = [8, 32], strides = [1, 1]} : vector<8x128xf32> to vector<8x32xf32>
    %128 = vector.extract_strided_slice %124 {offsets = [0, 96], sizes = [8, 32], strides = [1, 1]} : vector<8x128xf32> to vector<8x32xf32>
    %129 = arith.mulf %126, %91 : vector<8x32xf32>
    %130 = arith.mulf %125, %127 : vector<8x32xf32>
    %131 = arith.addf %129, %130 : vector<8x32xf32>
    %132 = math.tanh %131 : vector<8x32xf32>
    %133 = arith.mulf %128, %132 : vector<8x32xf32>
    %c16_37 = arith.constant 16 : index
    %c0_38 = arith.constant 0 : index
    %134 = vector.load %arg12[%c16_37, %c0_38] : memref<64x64xf32, #tpu.memory_space<vmem>>, vector<8x32xf32>
    tpu.vector_store %arg12[%c16_37, %c0_38], %115 {strides = array<i32>} : memref<64x64xf32, #tpu.memory_space<vmem>>, vector<8x32xf32>,
    %c40_39 = arith.constant 40 : index
    %c32_40 = arith.constant 32 : index
    %135 = vector.load %arg12[%c40_39, %c32_40] : memref<64x64xf32, #tpu.memory_space<vmem>>, vector<8x32xf32>
    tpu.vector_store %arg12[%c40_39, %c32_40], %133 {strides = array<i32>} : memref<64x64xf32, #tpu.memory_space<vmem>>, vector<8x32xf32>,
    %c24 = arith.constant 24 : index
    %c0_41 = arith.constant 0 : index
    %136 = vector.load %arg14[%c24, %c0_41] : memref<64x256xf32, #tpu.memory_space<vmem>>, vector<8x128xf32>
    %c32_42 = arith.constant 32 : index
    %c128_43 = arith.constant 128 : index
    %137 = vector.load %arg14[%c32_42, %c128_43] : memref<64x256xf32, #tpu.memory_space<vmem>>, vector<8x128xf32>
    %cst_44 = arith.constant dense<0.000000e+00> : vector<8x128xf32>
    %138 = tpu.matmul %115, %13, %cst_44 {dimension_numbers = #tpu.dot_dimension_numbers<[1], [0], [0], [1], [0, 0, 1, 1], [], []>} : vector<8x32xf32>, vector<32x128xf32>, vector<8x128xf32> -> vector<8x128xf32>
    %139 = arith.addf %136, %138 : vector<8x128xf32>
    %140 = math.tanh %139 : vector<8x128xf32>
    %141 = arith.negf %139 : vector<8x128xf32>
    %142 = math.exp %141 : vector<8x128xf32>
    %cst_45 = arith.constant 1.000000e+00 : f32
    %143 = vector.broadcast %cst_45 : f32 to vector<8x128xf32>
    %144 = arith.addf %143, %142 : vector<8x128xf32>
    %145 = arith.divf %143, %144 : vector<8x128xf32>
    %146 = arith.select %5, %140, %145 : vector<8x128xi1>, vector<8x128xf32>
    %147 = vector.extract_strided_slice %146 {offsets = [0, 0], sizes = [8, 32], strides = [1, 1]} : vector<8x128xf32> to vector<8x32xf32>
    %148 = vector.extract_strided_slice %146 {offsets = [0, 32], sizes = [8, 32], strides = [1, 1]} : vector<8x128xf32> to vector<8x32xf32>
    %149 = vector.extract_strided_slice %146 {offsets = [0, 64], sizes = [8, 32], strides = [1, 1]} : vector<8x128xf32> to vector<8x32xf32>
    %150 = vector.extract_strided_slice %146 {offsets = [0, 96], sizes = [8, 32], strides = [1, 1]} : vector<8x128xf32> to vector<8x32xf32>
    %151 = arith.mulf %148, %113 : vector<8x32xf32>
    %152 = arith.mulf %147, %149 : vector<8x32xf32>
    %153 = arith.addf %151, %152 : vector<8x32xf32>
    %154 = math.tanh %153 : vector<8x32xf32>
    %155 = arith.mulf %150, %154 : vector<8x32xf32>
    %cst_46 = arith.constant dense<0.000000e+00> : vector<8x128xf32>
    %156 = tpu.matmul %133, %14, %cst_46 {dimension_numbers = #tpu.dot_dimension_numbers<[1], [0], [0], [1], [0, 0, 1, 1], [], []>} : vector<8x32xf32>, vector<32x128xf32>, vector<8x128xf32> -> vector<8x128xf32>
    %157 = arith.addf %137, %156 : vector<8x128xf32>
    %158 = math.tanh %157 : vector<8x128xf32>
    %159 = arith.negf %157 : vector<8x128xf32>
    %160 = math.exp %159 : vector<8x128xf32>
    %cst_47 = arith.constant 1.000000e+00 : f32
    %161 = vector.broadcast %cst_47 : f32 to vector<8x128xf32>
    %162 = arith.addf %161, %160 : vector<8x128xf32>
    %163 = arith.divf %161, %162 : vector<8x128xf32>
    %164 = arith.select %5, %158, %163 : vector<8x128xi1>, vector<8x128xf32>
    %165 = vector.extract_strided_slice %164 {offsets = [0, 0], sizes = [8, 32], strides = [1, 1]} : vector<8x128xf32> to vector<8x32xf32>
    %166 = vector.extract_strided_slice %164 {offsets = [0, 32], sizes = [8, 32], strides = [1, 1]} : vector<8x128xf32> to vector<8x32xf32>
    %167 = vector.extract_strided_slice %164 {offsets = [0, 64], sizes = [8, 32], strides = [1, 1]} : vector<8x128xf32> to vector<8x32xf32>
    %168 = vector.extract_strided_slice %164 {offsets = [0, 96], sizes = [8, 32], strides = [1, 1]} : vector<8x128xf32> to vector<8x32xf32>
    %169 = arith.mulf %166, %131 : vector<8x32xf32>
    %170 = arith.mulf %165, %167 : vector<8x32xf32>
    %171 = arith.addf %169, %170 : vector<8x32xf32>
    %172 = math.tanh %171 : vector<8x32xf32>
    %173 = arith.mulf %168, %172 : vector<8x32xf32>
    %c24_48 = arith.constant 24 : index
    %c0_49 = arith.constant 0 : index
    %174 = vector.load %arg12[%c24_48, %c0_49] : memref<64x64xf32, #tpu.memory_space<vmem>>, vector<8x32xf32>
    tpu.vector_store %arg12[%c24_48, %c0_49], %155 {strides = array<i32>} : memref<64x64xf32, #tpu.memory_space<vmem>>, vector<8x32xf32>,
    %c32_50 = arith.constant 32 : index
    %c32_51 = arith.constant 32 : index
    %175 = vector.load %arg12[%c32_50, %c32_51] : memref<64x64xf32, #tpu.memory_space<vmem>>, vector<8x32xf32>
    tpu.vector_store %arg12[%c32_50, %c32_51], %173 {strides = array<i32>} : memref<64x64xf32, #tpu.memory_space<vmem>>, vector<8x32xf32>,
    %c32_52 = arith.constant 32 : index
    %c0_53 = arith.constant 0 : index
    %176 = vector.load %arg14[%c32_52, %c0_53] : memref<64x256xf32, #tpu.memory_space<vmem>>, vector<8x128xf32>
    %c24_54 = arith.constant 24 : index
    %c128_55 = arith.constant 128 : index
    %177 = vector.load %arg14[%c24_54, %c128_55] : memref<64x256xf32, #tpu.memory_space<vmem>>, vector<8x128xf32>
    %cst_56 = arith.constant dense<0.000000e+00> : vector<8x128xf32>
    %178 = tpu.matmul %155, %13, %cst_56 {dimension_numbers = #tpu.dot_dimension_numbers<[1], [0], [0], [1], [0, 0, 1, 1], [], []>} : vector<8x32xf32>, vector<32x128xf32>, vector<8x128xf32> -> vector<8x128xf32>
    %179 = arith.addf %176, %178 : vector<8x128xf32>
    %180 = math.tanh %179 : vector<8x128xf32>
    %181 = arith.negf %179 : vector<8x128xf32>
    %182 = math.exp %181 : vector<8x128xf32>
    %cst_57 = arith.constant 1.000000e+00 : f32
    %183 = vector.broadcast %cst_57 : f32 to vector<8x128xf32>
    %184 = arith.addf %183, %182 : vector<8x128xf32>
    %185 = arith.divf %183, %184 : vector<8x128xf32>
    %186 = arith.select %5, %180, %185 : vector<8x128xi1>, vector<8x128xf32>
    %187 = vector.extract_strided_slice %186 {offsets = [0, 0], sizes = [8, 32], strides = [1, 1]} : vector<8x128xf32> to vector<8x32xf32>
    %188 = vector.extract_strided_slice %186 {offsets = [0, 32], sizes = [8, 32], strides = [1, 1]} : vector<8x128xf32> to vector<8x32xf32>
    %189 = vector.extract_strided_slice %186 {offsets = [0, 64], sizes = [8, 32], strides = [1, 1]} : vector<8x128xf32> to vector<8x32xf32>
    %190 = vector.extract_strided_slice %186 {offsets = [0, 96], sizes = [8, 32], strides = [1, 1]} : vector<8x128xf32> to vector<8x32xf32>
    %191 = arith.mulf %188, %153 : vector<8x32xf32>
    %192 = arith.mulf %187, %189 : vector<8x32xf32>
    %193 = arith.addf %191, %192 : vector<8x32xf32>
    %194 = math.tanh %193 : vector<8x32xf32>
    %195 = arith.mulf %190, %194 : vector<8x32xf32>
    %cst_58 = arith.constant dense<0.000000e+00> : vector<8x128xf32>
    %196 = tpu.matmul %173, %14, %cst_58 {dimension_numbers = #tpu.dot_dimension_numbers<[1], [0], [0], [1], [0, 0, 1, 1], [], []>} : vector<8x32xf32>, vector<32x128xf32>, vector<8x128xf32> -> vector<8x128xf32>
    %197 = arith.addf %177, %196 : vector<8x128xf32>
    %198 = math.tanh %197 : vector<8x128xf32>
    %199 = arith.negf %197 : vector<8x128xf32>
    %200 = math.exp %199 : vector<8x128xf32>
    %cst_59 = arith.constant 1.000000e+00 : f32
    %201 = vector.broadcast %cst_59 : f32 to vector<8x128xf32>
    %202 = arith.addf %201, %200 : vector<8x128xf32>
    %203 = arith.divf %201, %202 : vector<8x128xf32>
    %204 = arith.select %5, %198, %203 : vector<8x128xi1>, vector<8x128xf32>
    %205 = vector.extract_strided_slice %204 {offsets = [0, 0], sizes = [8, 32], strides = [1, 1]} : vector<8x128xf32> to vector<8x32xf32>
    %206 = vector.extract_strided_slice %204 {offsets = [0, 32], sizes = [8, 32], strides = [1, 1]} : vector<8x128xf32> to vector<8x32xf32>
    %207 = vector.extract_strided_slice %204 {offsets = [0, 64], sizes = [8, 32], strides = [1, 1]} : vector<8x128xf32> to vector<8x32xf32>
    %208 = vector.extract_strided_slice %204 {offsets = [0, 96], sizes = [8, 32], strides = [1, 1]} : vector<8x128xf32> to vector<8x32xf32>
    %209 = arith.mulf %206, %171 : vector<8x32xf32>
    %210 = arith.mulf %205, %207 : vector<8x32xf32>
    %211 = arith.addf %209, %210 : vector<8x32xf32>
    %212 = math.tanh %211 : vector<8x32xf32>
    %213 = arith.mulf %208, %212 : vector<8x32xf32>
    %c32_60 = arith.constant 32 : index
    %c0_61 = arith.constant 0 : index
    %214 = vector.load %arg12[%c32_60, %c0_61] : memref<64x64xf32, #tpu.memory_space<vmem>>, vector<8x32xf32>
    tpu.vector_store %arg12[%c32_60, %c0_61], %195 {strides = array<i32>} : memref<64x64xf32, #tpu.memory_space<vmem>>, vector<8x32xf32>,
    %c24_62 = arith.constant 24 : index
    %c32_63 = arith.constant 32 : index
    %215 = vector.load %arg12[%c24_62, %c32_63] : memref<64x64xf32, #tpu.memory_space<vmem>>, vector<8x32xf32>
    tpu.vector_store %arg12[%c24_62, %c32_63], %213 {strides = array<i32>} : memref<64x64xf32, #tpu.memory_space<vmem>>, vector<8x32xf32>,
    %c40_64 = arith.constant 40 : index
    %c0_65 = arith.constant 0 : index
    %216 = vector.load %arg14[%c40_64, %c0_65] : memref<64x256xf32, #tpu.memory_space<vmem>>, vector<8x128xf32>
    %c16_66 = arith.constant 16 : index
    %c128_67 = arith.constant 128 : index
    %217 = vector.load %arg14[%c16_66, %c128_67] : memref<64x256xf32, #tpu.memory_space<vmem>>, vector<8x128xf32>
    %cst_68 = arith.constant dense<0.000000e+00> : vector<8x128xf32>
    %218 = tpu.matmul %195, %13, %cst_68 {dimension_numbers = #tpu.dot_dimension_numbers<[1], [0], [0], [1], [0, 0, 1, 1], [], []>} : vector<8x32xf32>, vector<32x128xf32>, vector<8x128xf32> -> vector<8x128xf32>
    %219 = arith.addf %216, %218 : vector<8x128xf32>
    %220 = math.tanh %219 : vector<8x128xf32>
    %221 = arith.negf %219 : vector<8x128xf32>
    %222 = math.exp %221 : vector<8x128xf32>
    %cst_69 = arith.constant 1.000000e+00 : f32
    %223 = vector.broadcast %cst_69 : f32 to vector<8x128xf32>
    %224 = arith.addf %223, %222 : vector<8x128xf32>
    %225 = arith.divf %223, %224 : vector<8x128xf32>
    %226 = arith.select %5, %220, %225 : vector<8x128xi1>, vector<8x128xf32>
    %227 = vector.extract_strided_slice %226 {offsets = [0, 0], sizes = [8, 32], strides = [1, 1]} : vector<8x128xf32> to vector<8x32xf32>
    %228 = vector.extract_strided_slice %226 {offsets = [0, 32], sizes = [8, 32], strides = [1, 1]} : vector<8x128xf32> to vector<8x32xf32>
    %229 = vector.extract_strided_slice %226 {offsets = [0, 64], sizes = [8, 32], strides = [1, 1]} : vector<8x128xf32> to vector<8x32xf32>
    %230 = vector.extract_strided_slice %226 {offsets = [0, 96], sizes = [8, 32], strides = [1, 1]} : vector<8x128xf32> to vector<8x32xf32>
    %231 = arith.mulf %228, %193 : vector<8x32xf32>
    %232 = arith.mulf %227, %229 : vector<8x32xf32>
    %233 = arith.addf %231, %232 : vector<8x32xf32>
    %234 = math.tanh %233 : vector<8x32xf32>
    %235 = arith.mulf %230, %234 : vector<8x32xf32>
    %cst_70 = arith.constant dense<0.000000e+00> : vector<8x128xf32>
    %236 = tpu.matmul %213, %14, %cst_70 {dimension_numbers = #tpu.dot_dimension_numbers<[1], [0], [0], [1], [0, 0, 1, 1], [], []>} : vector<8x32xf32>, vector<32x128xf32>, vector<8x128xf32> -> vector<8x128xf32>
    %237 = arith.addf %217, %236 : vector<8x128xf32>
    %238 = math.tanh %237 : vector<8x128xf32>
    %239 = arith.negf %237 : vector<8x128xf32>
    %240 = math.exp %239 : vector<8x128xf32>
    %cst_71 = arith.constant 1.000000e+00 : f32
    %241 = vector.broadcast %cst_71 : f32 to vector<8x128xf32>
    %242 = arith.addf %241, %240 : vector<8x128xf32>
    %243 = arith.divf %241, %242 : vector<8x128xf32>
    %244 = arith.select %5, %238, %243 : vector<8x128xi1>, vector<8x128xf32>
    %245 = vector.extract_strided_slice %244 {offsets = [0, 0], sizes = [8, 32], strides = [1, 1]} : vector<8x128xf32> to vector<8x32xf32>
    %246 = vector.extract_strided_slice %244 {offsets = [0, 32], sizes = [8, 32], strides = [1, 1]} : vector<8x128xf32> to vector<8x32xf32>
    %247 = vector.extract_strided_slice %244 {offsets = [0, 64], sizes = [8, 32], strides = [1, 1]} : vector<8x128xf32> to vector<8x32xf32>
    %248 = vector.extract_strided_slice %244 {offsets = [0, 96], sizes = [8, 32], strides = [1, 1]} : vector<8x128xf32> to vector<8x32xf32>
    %249 = arith.mulf %246, %211 : vector<8x32xf32>
    %250 = arith.mulf %245, %247 : vector<8x32xf32>
    %251 = arith.addf %249, %250 : vector<8x32xf32>
    %252 = math.tanh %251 : vector<8x32xf32>
    %253 = arith.mulf %248, %252 : vector<8x32xf32>
    %c40_72 = arith.constant 40 : index
    %c0_73 = arith.constant 0 : index
    %254 = vector.load %arg12[%c40_72, %c0_73] : memref<64x64xf32, #tpu.memory_space<vmem>>, vector<8x32xf32>
    tpu.vector_store %arg12[%c40_72, %c0_73], %235 {strides = array<i32>} : memref<64x64xf32, #tpu.memory_space<vmem>>, vector<8x32xf32>,
    %c16_74 = arith.constant 16 : index
    %c32_75 = arith.constant 32 : index
    %255 = vector.load %arg12[%c16_74, %c32_75] : memref<64x64xf32, #tpu.memory_space<vmem>>, vector<8x32xf32>
    tpu.vector_store %arg12[%c16_74, %c32_75], %253 {strides = array<i32>} : memref<64x64xf32, #tpu.memory_space<vmem>>, vector<8x32xf32>,
    %c48_76 = arith.constant 48 : index
    %c0_77 = arith.constant 0 : index
    %256 = vector.load %arg14[%c48_76, %c0_77] : memref<64x256xf32, #tpu.memory_space<vmem>>, vector<8x128xf32>
    %c8_78 = arith.constant 8 : index
    %c128_79 = arith.constant 128 : index
    %257 = vector.load %arg14[%c8_78, %c128_79] : memref<64x256xf32, #tpu.memory_space<vmem>>, vector<8x128xf32>
    %cst_80 = arith.constant dense<0.000000e+00> : vector<8x128xf32>
    %258 = tpu.matmul %235, %13, %cst_80 {dimension_numbers = #tpu.dot_dimension_numbers<[1], [0], [0], [1], [0, 0, 1, 1], [], []>} : vector<8x32xf32>, vector<32x128xf32>, vector<8x128xf32> -> vector<8x128xf32>
    %259 = arith.addf %256, %258 : vector<8x128xf32>
    %260 = math.tanh %259 : vector<8x128xf32>
    %261 = arith.negf %259 : vector<8x128xf32>
    %262 = math.exp %261 : vector<8x128xf32>
    %cst_81 = arith.constant 1.000000e+00 : f32
    %263 = vector.broadcast %cst_81 : f32 to vector<8x128xf32>
    %264 = arith.addf %263, %262 : vector<8x128xf32>
    %265 = arith.divf %263, %264 : vector<8x128xf32>
    %266 = arith.select %5, %260, %265 : vector<8x128xi1>, vector<8x128xf32>
    %267 = vector.extract_strided_slice %266 {offsets = [0, 0], sizes = [8, 32], strides = [1, 1]} : vector<8x128xf32> to vector<8x32xf32>
    %268 = vector.extract_strided_slice %266 {offsets = [0, 32], sizes = [8, 32], strides = [1, 1]} : vector<8x128xf32> to vector<8x32xf32>
    %269 = vector.extract_strided_slice %266 {offsets = [0, 64], sizes = [8, 32], strides = [1, 1]} : vector<8x128xf32> to vector<8x32xf32>
    %270 = vector.extract_strided_slice %266 {offsets = [0, 96], sizes = [8, 32], strides = [1, 1]} : vector<8x128xf32> to vector<8x32xf32>
    %271 = arith.mulf %268, %233 : vector<8x32xf32>
    %272 = arith.mulf %267, %269 : vector<8x32xf32>
    %273 = arith.addf %271, %272 : vector<8x32xf32>
    %274 = math.tanh %273 : vector<8x32xf32>
    %275 = arith.mulf %270, %274 : vector<8x32xf32>
    %cst_82 = arith.constant dense<0.000000e+00> : vector<8x128xf32>
    %276 = tpu.matmul %253, %14, %cst_82 {dimension_numbers = #tpu.dot_dimension_numbers<[1], [0], [0], [1], [0, 0, 1, 1], [], []>} : vector<8x32xf32>, vector<32x128xf32>, vector<8x128xf32> -> vector<8x128xf32>
    %277 = arith.addf %257, %276 : vector<8x128xf32>
    %278 = math.tanh %277 : vector<8x128xf32>
    %279 = arith.negf %277 : vector<8x128xf32>
    %280 = math.exp %279 : vector<8x128xf32>
    %cst_83 = arith.constant 1.000000e+00 : f32
    %281 = vector.broadcast %cst_83 : f32 to vector<8x128xf32>
    %282 = arith.addf %281, %280 : vector<8x128xf32>
    %283 = arith.divf %281, %282 : vector<8x128xf32>
    %284 = arith.select %5, %278, %283 : vector<8x128xi1>, vector<8x128xf32>
    %285 = vector.extract_strided_slice %284 {offsets = [0, 0], sizes = [8, 32], strides = [1, 1]} : vector<8x128xf32> to vector<8x32xf32>
    %286 = vector.extract_strided_slice %284 {offsets = [0, 32], sizes = [8, 32], strides = [1, 1]} : vector<8x128xf32> to vector<8x32xf32>
    %287 = vector.extract_strided_slice %284 {offsets = [0, 64], sizes = [8, 32], strides = [1, 1]} : vector<8x128xf32> to vector<8x32xf32>
    %288 = vector.extract_strided_slice %284 {offsets = [0, 96], sizes = [8, 32], strides = [1, 1]} : vector<8x128xf32> to vector<8x32xf32>
    %289 = arith.mulf %286, %251 : vector<8x32xf32>
    %290 = arith.mulf %285, %287 : vector<8x32xf32>
    %291 = arith.addf %289, %290 : vector<8x32xf32>
    %292 = math.tanh %291 : vector<8x32xf32>
    %293 = arith.mulf %288, %292 : vector<8x32xf32>
    %c48_84 = arith.constant 48 : index
    %c0_85 = arith.constant 0 : index
    %294 = vector.load %arg12[%c48_84, %c0_85] : memref<64x64xf32, #tpu.memory_space<vmem>>, vector<8x32xf32>
    tpu.vector_store %arg12[%c48_84, %c0_85], %275 {strides = array<i32>} : memref<64x64xf32, #tpu.memory_space<vmem>>, vector<8x32xf32>,
    %c8_86 = arith.constant 8 : index
    %c32_87 = arith.constant 32 : index
    %295 = vector.load %arg12[%c8_86, %c32_87] : memref<64x64xf32, #tpu.memory_space<vmem>>, vector<8x32xf32>
    tpu.vector_store %arg12[%c8_86, %c32_87], %293 {strides = array<i32>} : memref<64x64xf32, #tpu.memory_space<vmem>>, vector<8x32xf32>,
    %c56_88 = arith.constant 56 : index
    %c0_89 = arith.constant 0 : index
    %296 = vector.load %arg14[%c56_88, %c0_89] : memref<64x256xf32, #tpu.memory_space<vmem>>, vector<8x128xf32>
    %c0_90 = arith.constant 0 : index
    %c128_91 = arith.constant 128 : index
    %297 = vector.load %arg14[%c0_90, %c128_91] : memref<64x256xf32, #tpu.memory_space<vmem>>, vector<8x128xf32>
    %cst_92 = arith.constant dense<0.000000e+00> : vector<8x128xf32>
    %298 = tpu.matmul %275, %13, %cst_92 {dimension_numbers = #tpu.dot_dimension_numbers<[1], [0], [0], [1], [0, 0, 1, 1], [], []>} : vector<8x32xf32>, vector<32x128xf32>, vector<8x128xf32> -> vector<8x128xf32>
    %299 = arith.addf %296, %298 : vector<8x128xf32>
    %300 = math.tanh %299 : vector<8x128xf32>
    %301 = arith.negf %299 : vector<8x128xf32>
    %302 = math.exp %301 : vector<8x128xf32>
    %cst_93 = arith.constant 1.000000e+00 : f32
    %303 = vector.broadcast %cst_93 : f32 to vector<8x128xf32>
    %304 = arith.addf %303, %302 : vector<8x128xf32>
    %305 = arith.divf %303, %304 : vector<8x128xf32>
    %306 = arith.select %5, %300, %305 : vector<8x128xi1>, vector<8x128xf32>
    %307 = vector.extract_strided_slice %306 {offsets = [0, 0], sizes = [8, 32], strides = [1, 1]} : vector<8x128xf32> to vector<8x32xf32>
    %308 = vector.extract_strided_slice %306 {offsets = [0, 32], sizes = [8, 32], strides = [1, 1]} : vector<8x128xf32> to vector<8x32xf32>
    %309 = vector.extract_strided_slice %306 {offsets = [0, 64], sizes = [8, 32], strides = [1, 1]} : vector<8x128xf32> to vector<8x32xf32>
    %310 = vector.extract_strided_slice %306 {offsets = [0, 96], sizes = [8, 32], strides = [1, 1]} : vector<8x128xf32> to vector<8x32xf32>
    %311 = arith.mulf %308, %273 : vector<8x32xf32>
    %312 = arith.mulf %307, %309 : vector<8x32xf32>
    %313 = arith.addf %311, %312 : vector<8x32xf32>
    %314 = math.tanh %313 : vector<8x32xf32>
    %315 = arith.mulf %310, %314 : vector<8x32xf32>
    %cst_94 = arith.constant dense<0.000000e+00> : vector<8x128xf32>
    %316 = tpu.matmul %293, %14, %cst_94 {dimension_numbers = #tpu.dot_dimension_numbers<[1], [0], [0], [1], [0, 0, 1, 1], [], []>} : vector<8x32xf32>, vector<32x128xf32>, vector<8x128xf32> -> vector<8x128xf32>
    %317 = arith.addf %297, %316 : vector<8x128xf32>
    %318 = math.tanh %317 : vector<8x128xf32>
    %319 = arith.negf %317 : vector<8x128xf32>
    %320 = math.exp %319 : vector<8x128xf32>
    %cst_95 = arith.constant 1.000000e+00 : f32
    %321 = vector.broadcast %cst_95 : f32 to vector<8x128xf32>
    %322 = arith.addf %321, %320 : vector<8x128xf32>
    %323 = arith.divf %321, %322 : vector<8x128xf32>
    %324 = arith.select %5, %318, %323 : vector<8x128xi1>, vector<8x128xf32>
    %325 = vector.extract_strided_slice %324 {offsets = [0, 0], sizes = [8, 32], strides = [1, 1]} : vector<8x128xf32> to vector<8x32xf32>
    %326 = vector.extract_strided_slice %324 {offsets = [0, 32], sizes = [8, 32], strides = [1, 1]} : vector<8x128xf32> to vector<8x32xf32>
    %327 = vector.extract_strided_slice %324 {offsets = [0, 64], sizes = [8, 32], strides = [1, 1]} : vector<8x128xf32> to vector<8x32xf32>
    %328 = vector.extract_strided_slice %324 {offsets = [0, 96], sizes = [8, 32], strides = [1, 1]} : vector<8x128xf32> to vector<8x32xf32>
    %329 = arith.mulf %326, %291 : vector<8x32xf32>
    %330 = arith.mulf %325, %327 : vector<8x32xf32>
    %331 = arith.addf %329, %330 : vector<8x32xf32>
    %332 = math.tanh %331 : vector<8x32xf32>
    %333 = arith.mulf %328, %332 : vector<8x32xf32>
    %c56_96 = arith.constant 56 : index
    %c0_97 = arith.constant 0 : index
    %334 = vector.load %arg12[%c56_96, %c0_97] : memref<64x64xf32, #tpu.memory_space<vmem>>, vector<8x32xf32>
    tpu.vector_store %arg12[%c56_96, %c0_97], %315 {strides = array<i32>} : memref<64x64xf32, #tpu.memory_space<vmem>>, vector<8x32xf32>,
    %c0_98 = arith.constant 0 : index
    %c32_99 = arith.constant 32 : index
    %335 = vector.load %arg12[%c0_98, %c32_99] : memref<64x64xf32, #tpu.memory_space<vmem>>, vector<8x32xf32>
    tpu.vector_store %arg12[%c0_98, %c32_99], %333 {strides = array<i32>} : memref<64x64xf32, #tpu.memory_space<vmem>>, vector<8x32xf32>,
    %c0_100 = arith.constant 0 : index
    %c0_101 = arith.constant 0 : index
    %336 = vector.load %arg12[%c0_100, %c0_101] : memref<64x64xf32, #tpu.memory_space<vmem>>, vector<64x64xf32>
    %c0_102 = arith.constant 0 : index
    %c0_103 = arith.constant 0 : index
    %337 = vector.load %arg5[%c0_102, %c0_103] : memref<64x256xf32, #tpu.memory_space<vmem>>, vector<64x256xf32>
    %cst_104 = arith.constant dense<0.000000e+00> : vector<64x256xf32>
    %338 = tpu.matmul %336, %337, %cst_104 {dimension_numbers = #tpu.dot_dimension_numbers<[1], [0], [0], [1], [0, 0, 1, 1], [], []>} : vector<64x64xf32>, vector<64x256xf32>, vector<64x256xf32> -> vector<64x256xf32>
    %c0_105 = arith.constant 0 : index
    %c0_106 = arith.constant 0 : index
    %339 = vector.load %arg8[%c0_105, %c0_106] : memref<1x256xf32, #tpu.memory_space<vmem>>, vector<1x256xf32>
    %340 = vector.broadcast %339 : vector<1x256xf32> to vector<64x256xf32>
    %341 = arith.addf %338, %340 : vector<64x256xf32>
    %c0_107 = arith.constant 0 : index
    %c0_108 = arith.constant 0 : index
    %342 = vector.load %arg14[%c0_107, %c0_108] : memref<64x256xf32, #tpu.memory_space<vmem>>, vector<64x256xf32>
    tpu.vector_store %arg14[%c0_107, %c0_108], %341 {strides = array<i32>} : memref<64x256xf32, #tpu.memory_space<vmem>>, vector<64x256xf32>,
    %c0_109 = arith.constant 0 : index
    %c0_110 = arith.constant 0 : index
    %343 = vector.load %arg6[%c0_109, %c0_110] : memref<32x128xf32, #tpu.memory_space<vmem>>, vector<32x128xf32>
    %c0_111 = arith.constant 0 : index
    %c0_112 = arith.constant 0 : index
    %344 = vector.load %arg7[%c0_111, %c0_112] : memref<32x128xf32, #tpu.memory_space<vmem>>, vector<32x128xf32>
    %cst_113 = arith.constant 0.000000e+00 : f32
    %345 = vector.broadcast %cst_113 : f32 to vector<8x32xf32>
    %c0_114 = arith.constant 0 : index
    %c0_115 = arith.constant 0 : index
    %346 = vector.load %arg14[%c0_114, %c0_115] : memref<64x256xf32, #tpu.memory_space<vmem>>, vector<8x128xf32>
    %c56_116 = arith.constant 56 : index
    %c128_117 = arith.constant 128 : index
    %347 = vector.load %arg14[%c56_116, %c128_117] : memref<64x256xf32, #tpu.memory_space<vmem>>, vector<8x128xf32>
    %cst_118 = arith.constant dense<0.000000e+00> : vector<8x128xf32>
    %348 = tpu.matmul %345, %343, %cst_118 {dimension_numbers = #tpu.dot_dimension_numbers<[1], [0], [0], [1], [0, 0, 1, 1], [], []>} : vector<8x32xf32>, vector<32x128xf32>, vector<8x128xf32> -> vector<8x128xf32>
    %349 = arith.addf %346, %348 : vector<8x128xf32>
    %350 = math.tanh %349 : vector<8x128xf32>
    %351 = arith.negf %349 : vector<8x128xf32>
    %352 = math.exp %351 : vector<8x128xf32>
    %cst_119 = arith.constant 1.000000e+00 : f32
    %353 = vector.broadcast %cst_119 : f32 to vector<8x128xf32>
    %354 = arith.addf %353, %352 : vector<8x128xf32>
    %355 = arith.divf %353, %354 : vector<8x128xf32>
    %356 = arith.select %5, %350, %355 : vector<8x128xi1>, vector<8x128xf32>
    %357 = vector.extract_strided_slice %356 {offsets = [0, 0], sizes = [8, 32], strides = [1, 1]} : vector<8x128xf32> to vector<8x32xf32>
    %358 = vector.extract_strided_slice %356 {offsets = [0, 32], sizes = [8, 32], strides = [1, 1]} : vector<8x128xf32> to vector<8x32xf32>
    %359 = vector.extract_strided_slice %356 {offsets = [0, 64], sizes = [8, 32], strides = [1, 1]} : vector<8x128xf32> to vector<8x32xf32>
    %360 = vector.extract_strided_slice %356 {offsets = [0, 96], sizes = [8, 32], strides = [1, 1]} : vector<8x128xf32> to vector<8x32xf32>
    %361 = arith.mulf %358, %345 : vector<8x32xf32>
    %362 = arith.mulf %357, %359 : vector<8x32xf32>
    %363 = arith.addf %361, %362 : vector<8x32xf32>
    %364 = math.tanh %363 : vector<8x32xf32>
    %365 = arith.mulf %360, %364 : vector<8x32xf32>
    %cst_120 = arith.constant dense<0.000000e+00> : vector<8x128xf32>
    %366 = tpu.matmul %345, %344, %cst_120 {dimension_numbers = #tpu.dot_dimension_numbers<[1], [0], [0], [1], [0, 0, 1, 1], [], []>} : vector<8x32xf32>, vector<32x128xf32>, vector<8x128xf32> -> vector<8x128xf32>
    %367 = arith.addf %347, %366 : vector<8x128xf32>
    %368 = math.tanh %367 : vector<8x128xf32>
    %369 = arith.negf %367 : vector<8x128xf32>
    %370 = math.exp %369 : vector<8x128xf32>
    %cst_121 = arith.constant 1.000000e+00 : f32
    %371 = vector.broadcast %cst_121 : f32 to vector<8x128xf32>
    %372 = arith.addf %371, %370 : vector<8x128xf32>
    %373 = arith.divf %371, %372 : vector<8x128xf32>
    %374 = arith.select %5, %368, %373 : vector<8x128xi1>, vector<8x128xf32>
    %375 = vector.extract_strided_slice %374 {offsets = [0, 0], sizes = [8, 32], strides = [1, 1]} : vector<8x128xf32> to vector<8x32xf32>
    %376 = vector.extract_strided_slice %374 {offsets = [0, 32], sizes = [8, 32], strides = [1, 1]} : vector<8x128xf32> to vector<8x32xf32>
    %377 = vector.extract_strided_slice %374 {offsets = [0, 64], sizes = [8, 32], strides = [1, 1]} : vector<8x128xf32> to vector<8x32xf32>
    %378 = vector.extract_strided_slice %374 {offsets = [0, 96], sizes = [8, 32], strides = [1, 1]} : vector<8x128xf32> to vector<8x32xf32>
    %379 = arith.mulf %376, %345 : vector<8x32xf32>
    %380 = arith.mulf %375, %377 : vector<8x32xf32>
    %381 = arith.addf %379, %380 : vector<8x32xf32>
    %382 = math.tanh %381 : vector<8x32xf32>
    %383 = arith.mulf %378, %382 : vector<8x32xf32>
    %c0_122 = arith.constant 0 : index
    %c0_123 = arith.constant 0 : index
    %384 = vector.load %arg13[%c0_122, %c0_123] : memref<64x64xf32, #tpu.memory_space<vmem>>, vector<8x32xf32>
    tpu.vector_store %arg13[%c0_122, %c0_123], %365 {strides = array<i32>} : memref<64x64xf32, #tpu.memory_space<vmem>>, vector<8x32xf32>,
    %c56_124 = arith.constant 56 : index
    %c32_125 = arith.constant 32 : index
    %385 = vector.load %arg13[%c56_124, %c32_125] : memref<64x64xf32, #tpu.memory_space<vmem>>, vector<8x32xf32>
    tpu.vector_store %arg13[%c56_124, %c32_125], %383 {strides = array<i32>} : memref<64x64xf32, #tpu.memory_space<vmem>>, vector<8x32xf32>,
    %c8_126 = arith.constant 8 : index
    %c0_127 = arith.constant 0 : index
    %386 = vector.load %arg14[%c8_126, %c0_127] : memref<64x256xf32, #tpu.memory_space<vmem>>, vector<8x128xf32>
    %c48_128 = arith.constant 48 : index
    %c128_129 = arith.constant 128 : index
    %387 = vector.load %arg14[%c48_128, %c128_129] : memref<64x256xf32, #tpu.memory_space<vmem>>, vector<8x128xf32>
    %cst_130 = arith.constant dense<0.000000e+00> : vector<8x128xf32>
    %388 = tpu.matmul %365, %343, %cst_130 {dimension_numbers = #tpu.dot_dimension_numbers<[1], [0], [0], [1], [0, 0, 1, 1], [], []>} : vector<8x32xf32>, vector<32x128xf32>, vector<8x128xf32> -> vector<8x128xf32>
    %389 = arith.addf %386, %388 : vector<8x128xf32>
    %390 = math.tanh %389 : vector<8x128xf32>
    %391 = arith.negf %389 : vector<8x128xf32>
    %392 = math.exp %391 : vector<8x128xf32>
    %cst_131 = arith.constant 1.000000e+00 : f32
    %393 = vector.broadcast %cst_131 : f32 to vector<8x128xf32>
    %394 = arith.addf %393, %392 : vector<8x128xf32>
    %395 = arith.divf %393, %394 : vector<8x128xf32>
    %396 = arith.select %5, %390, %395 : vector<8x128xi1>, vector<8x128xf32>
    %397 = vector.extract_strided_slice %396 {offsets = [0, 0], sizes = [8, 32], strides = [1, 1]} : vector<8x128xf32> to vector<8x32xf32>
    %398 = vector.extract_strided_slice %396 {offsets = [0, 32], sizes = [8, 32], strides = [1, 1]} : vector<8x128xf32> to vector<8x32xf32>
    %399 = vector.extract_strided_slice %396 {offsets = [0, 64], sizes = [8, 32], strides = [1, 1]} : vector<8x128xf32> to vector<8x32xf32>
    %400 = vector.extract_strided_slice %396 {offsets = [0, 96], sizes = [8, 32], strides = [1, 1]} : vector<8x128xf32> to vector<8x32xf32>
    %401 = arith.mulf %398, %363 : vector<8x32xf32>
    %402 = arith.mulf %397, %399 : vector<8x32xf32>
    %403 = arith.addf %401, %402 : vector<8x32xf32>
    %404 = math.tanh %403 : vector<8x32xf32>
    %405 = arith.mulf %400, %404 : vector<8x32xf32>
    %cst_132 = arith.constant dense<0.000000e+00> : vector<8x128xf32>
    %406 = tpu.matmul %383, %344, %cst_132 {dimension_numbers = #tpu.dot_dimension_numbers<[1], [0], [0], [1], [0, 0, 1, 1], [], []>} : vector<8x32xf32>, vector<32x128xf32>, vector<8x128xf32> -> vector<8x128xf32>
    %407 = arith.addf %387, %406 : vector<8x128xf32>
    %408 = math.tanh %407 : vector<8x128xf32>
    %409 = arith.negf %407 : vector<8x128xf32>
    %410 = math.exp %409 : vector<8x128xf32>
    %cst_133 = arith.constant 1.000000e+00 : f32
    %411 = vector.broadcast %cst_133 : f32 to vector<8x128xf32>
    %412 = arith.addf %411, %410 : vector<8x128xf32>
    %413 = arith.divf %411, %412 : vector<8x128xf32>
    %414 = arith.select %5, %408, %413 : vector<8x128xi1>, vector<8x128xf32>
    %415 = vector.extract_strided_slice %414 {offsets = [0, 0], sizes = [8, 32], strides = [1, 1]} : vector<8x128xf32> to vector<8x32xf32>
    %416 = vector.extract_strided_slice %414 {offsets = [0, 32], sizes = [8, 32], strides = [1, 1]} : vector<8x128xf32> to vector<8x32xf32>
    %417 = vector.extract_strided_slice %414 {offsets = [0, 64], sizes = [8, 32], strides = [1, 1]} : vector<8x128xf32> to vector<8x32xf32>
    %418 = vector.extract_strided_slice %414 {offsets = [0, 96], sizes = [8, 32], strides = [1, 1]} : vector<8x128xf32> to vector<8x32xf32>
    %419 = arith.mulf %416, %381 : vector<8x32xf32>
    %420 = arith.mulf %415, %417 : vector<8x32xf32>
    %421 = arith.addf %419, %420 : vector<8x32xf32>
    %422 = math.tanh %421 : vector<8x32xf32>
    %423 = arith.mulf %418, %422 : vector<8x32xf32>
    %c8_134 = arith.constant 8 : index
    %c0_135 = arith.constant 0 : index
    %424 = vector.load %arg13[%c8_134, %c0_135] : memref<64x64xf32, #tpu.memory_space<vmem>>, vector<8x32xf32>
    tpu.vector_store %arg13[%c8_134, %c0_135], %405 {strides = array<i32>} : memref<64x64xf32, #tpu.memory_space<vmem>>, vector<8x32xf32>,
    %c48_136 = arith.constant 48 : index
    %c32_137 = arith.constant 32 : index
    %425 = vector.load %arg13[%c48_136, %c32_137] : memref<64x64xf32, #tpu.memory_space<vmem>>, vector<8x32xf32>
    tpu.vector_store %arg13[%c48_136, %c32_137], %423 {strides = array<i32>} : memref<64x64xf32, #tpu.memory_space<vmem>>, vector<8x32xf32>,
    %c16_138 = arith.constant 16 : index
    %c0_139 = arith.constant 0 : index
    %426 = vector.load %arg14[%c16_138, %c0_139] : memref<64x256xf32, #tpu.memory_space<vmem>>, vector<8x128xf32>
    %c40_140 = arith.constant 40 : index
    %c128_141 = arith.constant 128 : index
    %427 = vector.load %arg14[%c40_140, %c128_141] : memref<64x256xf32, #tpu.memory_space<vmem>>, vector<8x128xf32>
    %cst_142 = arith.constant dense<0.000000e+00> : vector<8x128xf32>
    %428 = tpu.matmul %405, %343, %cst_142 {dimension_numbers = #tpu.dot_dimension_numbers<[1], [0], [0], [1], [0, 0, 1, 1], [], []>} : vector<8x32xf32>, vector<32x128xf32>, vector<8x128xf32> -> vector<8x128xf32>
    %429 = arith.addf %426, %428 : vector<8x128xf32>
    %430 = math.tanh %429 : vector<8x128xf32>
    %431 = arith.negf %429 : vector<8x128xf32>
    %432 = math.exp %431 : vector<8x128xf32>
    %cst_143 = arith.constant 1.000000e+00 : f32
    %433 = vector.broadcast %cst_143 : f32 to vector<8x128xf32>
    %434 = arith.addf %433, %432 : vector<8x128xf32>
    %435 = arith.divf %433, %434 : vector<8x128xf32>
    %436 = arith.select %5, %430, %435 : vector<8x128xi1>, vector<8x128xf32>
    %437 = vector.extract_strided_slice %436 {offsets = [0, 0], sizes = [8, 32], strides = [1, 1]} : vector<8x128xf32> to vector<8x32xf32>
    %438 = vector.extract_strided_slice %436 {offsets = [0, 32], sizes = [8, 32], strides = [1, 1]} : vector<8x128xf32> to vector<8x32xf32>
    %439 = vector.extract_strided_slice %436 {offsets = [0, 64], sizes = [8, 32], strides = [1, 1]} : vector<8x128xf32> to vector<8x32xf32>
    %440 = vector.extract_strided_slice %436 {offsets = [0, 96], sizes = [8, 32], strides = [1, 1]} : vector<8x128xf32> to vector<8x32xf32>
    %441 = arith.mulf %438, %403 : vector<8x32xf32>
    %442 = arith.mulf %437, %439 : vector<8x32xf32>
    %443 = arith.addf %441, %442 : vector<8x32xf32>
    %444 = math.tanh %443 : vector<8x32xf32>
    %445 = arith.mulf %440, %444 : vector<8x32xf32>
    %cst_144 = arith.constant dense<0.000000e+00> : vector<8x128xf32>
    %446 = tpu.matmul %423, %344, %cst_144 {dimension_numbers = #tpu.dot_dimension_numbers<[1], [0], [0], [1], [0, 0, 1, 1], [], []>} : vector<8x32xf32>, vector<32x128xf32>, vector<8x128xf32> -> vector<8x128xf32>
    %447 = arith.addf %427, %446 : vector<8x128xf32>
    %448 = math.tanh %447 : vector<8x128xf32>
    %449 = arith.negf %447 : vector<8x128xf32>
    %450 = math.exp %449 : vector<8x128xf32>
    %cst_145 = arith.constant 1.000000e+00 : f32
    %451 = vector.broadcast %cst_145 : f32 to vector<8x128xf32>
    %452 = arith.addf %451, %450 : vector<8x128xf32>
    %453 = arith.divf %451, %452 : vector<8x128xf32>
    %454 = arith.select %5, %448, %453 : vector<8x128xi1>, vector<8x128xf32>
    %455 = vector.extract_strided_slice %454 {offsets = [0, 0], sizes = [8, 32], strides = [1, 1]} : vector<8x128xf32> to vector<8x32xf32>
    %456 = vector.extract_strided_slice %454 {offsets = [0, 32], sizes = [8, 32], strides = [1, 1]} : vector<8x128xf32> to vector<8x32xf32>
    %457 = vector.extract_strided_slice %454 {offsets = [0, 64], sizes = [8, 32], strides = [1, 1]} : vector<8x128xf32> to vector<8x32xf32>
    %458 = vector.extract_strided_slice %454 {offsets = [0, 96], sizes = [8, 32], strides = [1, 1]} : vector<8x128xf32> to vector<8x32xf32>
    %459 = arith.mulf %456, %421 : vector<8x32xf32>
    %460 = arith.mulf %455, %457 : vector<8x32xf32>
    %461 = arith.addf %459, %460 : vector<8x32xf32>
    %462 = math.tanh %461 : vector<8x32xf32>
    %463 = arith.mulf %458, %462 : vector<8x32xf32>
    %c16_146 = arith.constant 16 : index
    %c0_147 = arith.constant 0 : index
    %464 = vector.load %arg13[%c16_146, %c0_147] : memref<64x64xf32, #tpu.memory_space<vmem>>, vector<8x32xf32>
    tpu.vector_store %arg13[%c16_146, %c0_147], %445 {strides = array<i32>} : memref<64x64xf32, #tpu.memory_space<vmem>>, vector<8x32xf32>,
    %c40_148 = arith.constant 40 : index
    %c32_149 = arith.constant 32 : index
    %465 = vector.load %arg13[%c40_148, %c32_149] : memref<64x64xf32, #tpu.memory_space<vmem>>, vector<8x32xf32>
    tpu.vector_store %arg13[%c40_148, %c32_149], %463 {strides = array<i32>} : memref<64x64xf32, #tpu.memory_space<vmem>>, vector<8x32xf32>,
    %c24_150 = arith.constant 24 : index
    %c0_151 = arith.constant 0 : index
    %466 = vector.load %arg14[%c24_150, %c0_151] : memref<64x256xf32, #tpu.memory_space<vmem>>, vector<8x128xf32>
    %c32_152 = arith.constant 32 : index
    %c128_153 = arith.constant 128 : index
    %467 = vector.load %arg14[%c32_152, %c128_153] : memref<64x256xf32, #tpu.memory_space<vmem>>, vector<8x128xf32>
    %cst_154 = arith.constant dense<0.000000e+00> : vector<8x128xf32>
    %468 = tpu.matmul %445, %343, %cst_154 {dimension_numbers = #tpu.dot_dimension_numbers<[1], [0], [0], [1], [0, 0, 1, 1], [], []>} : vector<8x32xf32>, vector<32x128xf32>, vector<8x128xf32> -> vector<8x128xf32>
    %469 = arith.addf %466, %468 : vector<8x128xf32>
    %470 = math.tanh %469 : vector<8x128xf32>
    %471 = arith.negf %469 : vector<8x128xf32>
    %472 = math.exp %471 : vector<8x128xf32>
    %cst_155 = arith.constant 1.000000e+00 : f32
    %473 = vector.broadcast %cst_155 : f32 to vector<8x128xf32>
    %474 = arith.addf %473, %472 : vector<8x128xf32>
    %475 = arith.divf %473, %474 : vector<8x128xf32>
    %476 = arith.select %5, %470, %475 : vector<8x128xi1>, vector<8x128xf32>
    %477 = vector.extract_strided_slice %476 {offsets = [0, 0], sizes = [8, 32], strides = [1, 1]} : vector<8x128xf32> to vector<8x32xf32>
    %478 = vector.extract_strided_slice %476 {offsets = [0, 32], sizes = [8, 32], strides = [1, 1]} : vector<8x128xf32> to vector<8x32xf32>
    %479 = vector.extract_strided_slice %476 {offsets = [0, 64], sizes = [8, 32], strides = [1, 1]} : vector<8x128xf32> to vector<8x32xf32>
    %480 = vector.extract_strided_slice %476 {offsets = [0, 96], sizes = [8, 32], strides = [1, 1]} : vector<8x128xf32> to vector<8x32xf32>
    %481 = arith.mulf %478, %443 : vector<8x32xf32>
    %482 = arith.mulf %477, %479 : vector<8x32xf32>
    %483 = arith.addf %481, %482 : vector<8x32xf32>
    %484 = math.tanh %483 : vector<8x32xf32>
    %485 = arith.mulf %480, %484 : vector<8x32xf32>
    %cst_156 = arith.constant dense<0.000000e+00> : vector<8x128xf32>
    %486 = tpu.matmul %463, %344, %cst_156 {dimension_numbers = #tpu.dot_dimension_numbers<[1], [0], [0], [1], [0, 0, 1, 1], [], []>} : vector<8x32xf32>, vector<32x128xf32>, vector<8x128xf32> -> vector<8x128xf32>
    %487 = arith.addf %467, %486 : vector<8x128xf32>
    %488 = math.tanh %487 : vector<8x128xf32>
    %489 = arith.negf %487 : vector<8x128xf32>
    %490 = math.exp %489 : vector<8x128xf32>
    %cst_157 = arith.constant 1.000000e+00 : f32
    %491 = vector.broadcast %cst_157 : f32 to vector<8x128xf32>
    %492 = arith.addf %491, %490 : vector<8x128xf32>
    %493 = arith.divf %491, %492 : vector<8x128xf32>
    %494 = arith.select %5, %488, %493 : vector<8x128xi1>, vector<8x128xf32>
    %495 = vector.extract_strided_slice %494 {offsets = [0, 0], sizes = [8, 32], strides = [1, 1]} : vector<8x128xf32> to vector<8x32xf32>
    %496 = vector.extract_strided_slice %494 {offsets = [0, 32], sizes = [8, 32], strides = [1, 1]} : vector<8x128xf32> to vector<8x32xf32>
    %497 = vector.extract_strided_slice %494 {offsets = [0, 64], sizes = [8, 32], strides = [1, 1]} : vector<8x128xf32> to vector<8x32xf32>
    %498 = vector.extract_strided_slice %494 {offsets = [0, 96], sizes = [8, 32], strides = [1, 1]} : vector<8x128xf32> to vector<8x32xf32>
    %499 = arith.mulf %496, %461 : vector<8x32xf32>
    %500 = arith.mulf %495, %497 : vector<8x32xf32>
    %501 = arith.addf %499, %500 : vector<8x32xf32>
    %502 = math.tanh %501 : vector<8x32xf32>
    %503 = arith.mulf %498, %502 : vector<8x32xf32>
    %c24_158 = arith.constant 24 : index
    %c0_159 = arith.constant 0 : index
    %504 = vector.load %arg13[%c24_158, %c0_159] : memref<64x64xf32, #tpu.memory_space<vmem>>, vector<8x32xf32>
    tpu.vector_store %arg13[%c24_158, %c0_159], %485 {strides = array<i32>} : memref<64x64xf32, #tpu.memory_space<vmem>>, vector<8x32xf32>,
    %c32_160 = arith.constant 32 : index
    %c32_161 = arith.constant 32 : index
    %505 = vector.load %arg13[%c32_160, %c32_161] : memref<64x64xf32, #tpu.memory_space<vmem>>, vector<8x32xf32>
    tpu.vector_store %arg13[%c32_160, %c32_161], %503 {strides = array<i32>} : memref<64x64xf32, #tpu.memory_space<vmem>>, vector<8x32xf32>,
    %c32_162 = arith.constant 32 : index
    %c0_163 = arith.constant 0 : index
    %506 = vector.load %arg14[%c32_162, %c0_163] : memref<64x256xf32, #tpu.memory_space<vmem>>, vector<8x128xf32>
    %c24_164 = arith.constant 24 : index
    %c128_165 = arith.constant 128 : index
    %507 = vector.load %arg14[%c24_164, %c128_165] : memref<64x256xf32, #tpu.memory_space<vmem>>, vector<8x128xf32>
    %cst_166 = arith.constant dense<0.000000e+00> : vector<8x128xf32>
    %508 = tpu.matmul %485, %343, %cst_166 {dimension_numbers = #tpu.dot_dimension_numbers<[1], [0], [0], [1], [0, 0, 1, 1], [], []>} : vector<8x32xf32>, vector<32x128xf32>, vector<8x128xf32> -> vector<8x128xf32>
    %509 = arith.addf %506, %508 : vector<8x128xf32>
    %510 = math.tanh %509 : vector<8x128xf32>
    %511 = arith.negf %509 : vector<8x128xf32>
    %512 = math.exp %511 : vector<8x128xf32>
    %cst_167 = arith.constant 1.000000e+00 : f32
    %513 = vector.broadcast %cst_167 : f32 to vector<8x128xf32>
    %514 = arith.addf %513, %512 : vector<8x128xf32>
    %515 = arith.divf %513, %514 : vector<8x128xf32>
    %516 = arith.select %5, %510, %515 : vector<8x128xi1>, vector<8x128xf32>
    %517 = vector.extract_strided_slice %516 {offsets = [0, 0], sizes = [8, 32], strides = [1, 1]} : vector<8x128xf32> to vector<8x32xf32>
    %518 = vector.extract_strided_slice %516 {offsets = [0, 32], sizes = [8, 32], strides = [1, 1]} : vector<8x128xf32> to vector<8x32xf32>
    %519 = vector.extract_strided_slice %516 {offsets = [0, 64], sizes = [8, 32], strides = [1, 1]} : vector<8x128xf32> to vector<8x32xf32>
    %520 = vector.extract_strided_slice %516 {offsets = [0, 96], sizes = [8, 32], strides = [1, 1]} : vector<8x128xf32> to vector<8x32xf32>
    %521 = arith.mulf %518, %483 : vector<8x32xf32>
    %522 = arith.mulf %517, %519 : vector<8x32xf32>
    %523 = arith.addf %521, %522 : vector<8x32xf32>
    %524 = math.tanh %523 : vector<8x32xf32>
    %525 = arith.mulf %520, %524 : vector<8x32xf32>
    %cst_168 = arith.constant dense<0.000000e+00> : vector<8x128xf32>
    %526 = tpu.matmul %503, %344, %cst_168 {dimension_numbers = #tpu.dot_dimension_numbers<[1], [0], [0], [1], [0, 0, 1, 1], [], []>} : vector<8x32xf32>, vector<32x128xf32>, vector<8x128xf32> -> vector<8x128xf32>
    %527 = arith.addf %507, %526 : vector<8x128xf32>
    %528 = math.tanh %527 : vector<8x128xf32>
    %529 = arith.negf %527 : vector<8x128xf32>
    %530 = math.exp %529 : vector<8x128xf32>
    %cst_169 = arith.constant 1.000000e+00 : f32
    %531 = vector.broadcast %cst_169 : f32 to vector<8x128xf32>
    %532 = arith.addf %531, %530 : vector<8x128xf32>
    %533 = arith.divf %531, %532 : vector<8x128xf32>
    %534 = arith.select %5, %528, %533 : vector<8x128xi1>, vector<8x128xf32>
    %535 = vector.extract_strided_slice %534 {offsets = [0, 0], sizes = [8, 32], strides = [1, 1]} : vector<8x128xf32> to vector<8x32xf32>
    %536 = vector.extract_strided_slice %534 {offsets = [0, 32], sizes = [8, 32], strides = [1, 1]} : vector<8x128xf32> to vector<8x32xf32>
    %537 = vector.extract_strided_slice %534 {offsets = [0, 64], sizes = [8, 32], strides = [1, 1]} : vector<8x128xf32> to vector<8x32xf32>
    %538 = vector.extract_strided_slice %534 {offsets = [0, 96], sizes = [8, 32], strides = [1, 1]} : vector<8x128xf32> to vector<8x32xf32>
    %539 = arith.mulf %536, %501 : vector<8x32xf32>
    %540 = arith.mulf %535, %537 : vector<8x32xf32>
    %541 = arith.addf %539, %540 : vector<8x32xf32>
    %542 = math.tanh %541 : vector<8x32xf32>
    %543 = arith.mulf %538, %542 : vector<8x32xf32>
    %c32_170 = arith.constant 32 : index
    %c0_171 = arith.constant 0 : index
    %544 = vector.load %arg13[%c32_170, %c0_171] : memref<64x64xf32, #tpu.memory_space<vmem>>, vector<8x32xf32>
    tpu.vector_store %arg13[%c32_170, %c0_171], %525 {strides = array<i32>} : memref<64x64xf32, #tpu.memory_space<vmem>>, vector<8x32xf32>,
    %c24_172 = arith.constant 24 : index
    %c32_173 = arith.constant 32 : index
    %545 = vector.load %arg13[%c24_172, %c32_173] : memref<64x64xf32, #tpu.memory_space<vmem>>, vector<8x32xf32>
    tpu.vector_store %arg13[%c24_172, %c32_173], %543 {strides = array<i32>} : memref<64x64xf32, #tpu.memory_space<vmem>>, vector<8x32xf32>,
    %c40_174 = arith.constant 40 : index
    %c0_175 = arith.constant 0 : index
    %546 = vector.load %arg14[%c40_174, %c0_175] : memref<64x256xf32, #tpu.memory_space<vmem>>, vector<8x128xf32>
    %c16_176 = arith.constant 16 : index
    %c128_177 = arith.constant 128 : index
    %547 = vector.load %arg14[%c16_176, %c128_177] : memref<64x256xf32, #tpu.memory_space<vmem>>, vector<8x128xf32>
    %cst_178 = arith.constant dense<0.000000e+00> : vector<8x128xf32>
    %548 = tpu.matmul %525, %343, %cst_178 {dimension_numbers = #tpu.dot_dimension_numbers<[1], [0], [0], [1], [0, 0, 1, 1], [], []>} : vector<8x32xf32>, vector<32x128xf32>, vector<8x128xf32> -> vector<8x128xf32>
    %549 = arith.addf %546, %548 : vector<8x128xf32>
    %550 = math.tanh %549 : vector<8x128xf32>
    %551 = arith.negf %549 : vector<8x128xf32>
    %552 = math.exp %551 : vector<8x128xf32>
    %cst_179 = arith.constant 1.000000e+00 : f32
    %553 = vector.broadcast %cst_179 : f32 to vector<8x128xf32>
    %554 = arith.addf %553, %552 : vector<8x128xf32>
    %555 = arith.divf %553, %554 : vector<8x128xf32>
    %556 = arith.select %5, %550, %555 : vector<8x128xi1>, vector<8x128xf32>
    %557 = vector.extract_strided_slice %556 {offsets = [0, 0], sizes = [8, 32], strides = [1, 1]} : vector<8x128xf32> to vector<8x32xf32>
    %558 = vector.extract_strided_slice %556 {offsets = [0, 32], sizes = [8, 32], strides = [1, 1]} : vector<8x128xf32> to vector<8x32xf32>
    %559 = vector.extract_strided_slice %556 {offsets = [0, 64], sizes = [8, 32], strides = [1, 1]} : vector<8x128xf32> to vector<8x32xf32>
    %560 = vector.extract_strided_slice %556 {offsets = [0, 96], sizes = [8, 32], strides = [1, 1]} : vector<8x128xf32> to vector<8x32xf32>
    %561 = arith.mulf %558, %523 : vector<8x32xf32>
    %562 = arith.mulf %557, %559 : vector<8x32xf32>
    %563 = arith.addf %561, %562 : vector<8x32xf32>
    %564 = math.tanh %563 : vector<8x32xf32>
    %565 = arith.mulf %560, %564 : vector<8x32xf32>
    %cst_180 = arith.constant dense<0.000000e+00> : vector<8x128xf32>
    %566 = tpu.matmul %543, %344, %cst_180 {dimension_numbers = #tpu.dot_dimension_numbers<[1], [0], [0], [1], [0, 0, 1, 1], [], []>} : vector<8x32xf32>, vector<32x128xf32>, vector<8x128xf32> -> vector<8x128xf32>
    %567 = arith.addf %547, %566 : vector<8x128xf32>
    %568 = math.tanh %567 : vector<8x128xf32>
    %569 = arith.negf %567 : vector<8x128xf32>
    %570 = math.exp %569 : vector<8x128xf32>
    %cst_181 = arith.constant 1.000000e+00 : f32
    %571 = vector.broadcast %cst_181 : f32 to vector<8x128xf32>
    %572 = arith.addf %571, %570 : vector<8x128xf32>
    %573 = arith.divf %571, %572 : vector<8x128xf32>
    %574 = arith.select %5, %568, %573 : vector<8x128xi1>, vector<8x128xf32>
    %575 = vector.extract_strided_slice %574 {offsets = [0, 0], sizes = [8, 32], strides = [1, 1]} : vector<8x128xf32> to vector<8x32xf32>
    %576 = vector.extract_strided_slice %574 {offsets = [0, 32], sizes = [8, 32], strides = [1, 1]} : vector<8x128xf32> to vector<8x32xf32>
    %577 = vector.extract_strided_slice %574 {offsets = [0, 64], sizes = [8, 32], strides = [1, 1]} : vector<8x128xf32> to vector<8x32xf32>
    %578 = vector.extract_strided_slice %574 {offsets = [0, 96], sizes = [8, 32], strides = [1, 1]} : vector<8x128xf32> to vector<8x32xf32>
    %579 = arith.mulf %576, %541 : vector<8x32xf32>
    %580 = arith.mulf %575, %577 : vector<8x32xf32>
    %581 = arith.addf %579, %580 : vector<8x32xf32>
    %582 = math.tanh %581 : vector<8x32xf32>
    %583 = arith.mulf %578, %582 : vector<8x32xf32>
    %c40_182 = arith.constant 40 : index
    %c0_183 = arith.constant 0 : index
    %584 = vector.load %arg13[%c40_182, %c0_183] : memref<64x64xf32, #tpu.memory_space<vmem>>, vector<8x32xf32>
    tpu.vector_store %arg13[%c40_182, %c0_183], %565 {strides = array<i32>} : memref<64x64xf32, #tpu.memory_space<vmem>>, vector<8x32xf32>,
    %c16_184 = arith.constant 16 : index
    %c32_185 = arith.constant 32 : index
    %585 = vector.load %arg13[%c16_184, %c32_185] : memref<64x64xf32, #tpu.memory_space<vmem>>, vector<8x32xf32>
    tpu.vector_store %arg13[%c16_184, %c32_185], %583 {strides = array<i32>} : memref<64x64xf32, #tpu.memory_space<vmem>>, vector<8x32xf32>,
    %c48_186 = arith.constant 48 : index
    %c0_187 = arith.constant 0 : index
    %586 = vector.load %arg14[%c48_186, %c0_187] : memref<64x256xf32, #tpu.memory_space<vmem>>, vector<8x128xf32>
    %c8_188 = arith.constant 8 : index
    %c128_189 = arith.constant 128 : index
    %587 = vector.load %arg14[%c8_188, %c128_189] : memref<64x256xf32, #tpu.memory_space<vmem>>, vector<8x128xf32>
    %cst_190 = arith.constant dense<0.000000e+00> : vector<8x128xf32>
    %588 = tpu.matmul %565, %343, %cst_190 {dimension_numbers = #tpu.dot_dimension_numbers<[1], [0], [0], [1], [0, 0, 1, 1], [], []>} : vector<8x32xf32>, vector<32x128xf32>, vector<8x128xf32> -> vector<8x128xf32>
    %589 = arith.addf %586, %588 : vector<8x128xf32>
    %590 = math.tanh %589 : vector<8x128xf32>
    %591 = arith.negf %589 : vector<8x128xf32>
    %592 = math.exp %591 : vector<8x128xf32>
    %cst_191 = arith.constant 1.000000e+00 : f32
    %593 = vector.broadcast %cst_191 : f32 to vector<8x128xf32>
    %594 = arith.addf %593, %592 : vector<8x128xf32>
    %595 = arith.divf %593, %594 : vector<8x128xf32>
    %596 = arith.select %5, %590, %595 : vector<8x128xi1>, vector<8x128xf32>
    %597 = vector.extract_strided_slice %596 {offsets = [0, 0], sizes = [8, 32], strides = [1, 1]} : vector<8x128xf32> to vector<8x32xf32>
    %598 = vector.extract_strided_slice %596 {offsets = [0, 32], sizes = [8, 32], strides = [1, 1]} : vector<8x128xf32> to vector<8x32xf32>
    %599 = vector.extract_strided_slice %596 {offsets = [0, 64], sizes = [8, 32], strides = [1, 1]} : vector<8x128xf32> to vector<8x32xf32>
    %600 = vector.extract_strided_slice %596 {offsets = [0, 96], sizes = [8, 32], strides = [1, 1]} : vector<8x128xf32> to vector<8x32xf32>
    %601 = arith.mulf %598, %563 : vector<8x32xf32>
    %602 = arith.mulf %597, %599 : vector<8x32xf32>
    %603 = arith.addf %601, %602 : vector<8x32xf32>
    %604 = math.tanh %603 : vector<8x32xf32>
    %605 = arith.mulf %600, %604 : vector<8x32xf32>
    %cst_192 = arith.constant dense<0.000000e+00> : vector<8x128xf32>
    %606 = tpu.matmul %583, %344, %cst_192 {dimension_numbers = #tpu.dot_dimension_numbers<[1], [0], [0], [1], [0, 0, 1, 1], [], []>} : vector<8x32xf32>, vector<32x128xf32>, vector<8x128xf32> -> vector<8x128xf32>
    %607 = arith.addf %587, %606 : vector<8x128xf32>
    %608 = math.tanh %607 : vector<8x128xf32>
    %609 = arith.negf %607 : vector<8x128xf32>
    %610 = math.exp %609 : vector<8x128xf32>
    %cst_193 = arith.constant 1.000000e+00 : f32
    %611 = vector.broadcast %cst_193 : f32 to vector<8x128xf32>
    %612 = arith.addf %611, %610 : vector<8x128xf32>
    %613 = arith.divf %611, %612 : vector<8x128xf32>
    %614 = arith.select %5, %608, %613 : vector<8x128xi1>, vector<8x128xf32>
    %615 = vector.extract_strided_slice %614 {offsets = [0, 0], sizes = [8, 32], strides = [1, 1]} : vector<8x128xf32> to vector<8x32xf32>
    %616 = vector.extract_strided_slice %614 {offsets = [0, 32], sizes = [8, 32], strides = [1, 1]} : vector<8x128xf32> to vector<8x32xf32>
    %617 = vector.extract_strided_slice %614 {offsets = [0, 64], sizes = [8, 32], strides = [1, 1]} : vector<8x128xf32> to vector<8x32xf32>
    %618 = vector.extract_strided_slice %614 {offsets = [0, 96], sizes = [8, 32], strides = [1, 1]} : vector<8x128xf32> to vector<8x32xf32>
    %619 = arith.mulf %616, %581 : vector<8x32xf32>
    %620 = arith.mulf %615, %617 : vector<8x32xf32>
    %621 = arith.addf %619, %620 : vector<8x32xf32>
    %622 = math.tanh %621 : vector<8x32xf32>
    %623 = arith.mulf %618, %622 : vector<8x32xf32>
    %c48_194 = arith.constant 48 : index
    %c0_195 = arith.constant 0 : index
    %624 = vector.load %arg13[%c48_194, %c0_195] : memref<64x64xf32, #tpu.memory_space<vmem>>, vector<8x32xf32>
    tpu.vector_store %arg13[%c48_194, %c0_195], %605 {strides = array<i32>} : memref<64x64xf32, #tpu.memory_space<vmem>>, vector<8x32xf32>,
    %c8_196 = arith.constant 8 : index
    %c32_197 = arith.constant 32 : index
    %625 = vector.load %arg13[%c8_196, %c32_197] : memref<64x64xf32, #tpu.memory_space<vmem>>, vector<8x32xf32>
    tpu.vector_store %arg13[%c8_196, %c32_197], %623 {strides = array<i32>} : memref<64x64xf32, #tpu.memory_space<vmem>>, vector<8x32xf32>,
    %c56_198 = arith.constant 56 : index
    %c0_199 = arith.constant 0 : index
    %626 = vector.load %arg14[%c56_198, %c0_199] : memref<64x256xf32, #tpu.memory_space<vmem>>, vector<8x128xf32>
    %c0_200 = arith.constant 0 : index
    %c128_201 = arith.constant 128 : index
    %627 = vector.load %arg14[%c0_200, %c128_201] : memref<64x256xf32, #tpu.memory_space<vmem>>, vector<8x128xf32>
    %cst_202 = arith.constant dense<0.000000e+00> : vector<8x128xf32>
    %628 = tpu.matmul %605, %343, %cst_202 {dimension_numbers = #tpu.dot_dimension_numbers<[1], [0], [0], [1], [0, 0, 1, 1], [], []>} : vector<8x32xf32>, vector<32x128xf32>, vector<8x128xf32> -> vector<8x128xf32>
    %629 = arith.addf %626, %628 : vector<8x128xf32>
    %630 = math.tanh %629 : vector<8x128xf32>
    %631 = arith.negf %629 : vector<8x128xf32>
    %632 = math.exp %631 : vector<8x128xf32>
    %cst_203 = arith.constant 1.000000e+00 : f32
    %633 = vector.broadcast %cst_203 : f32 to vector<8x128xf32>
    %634 = arith.addf %633, %632 : vector<8x128xf32>
    %635 = arith.divf %633, %634 : vector<8x128xf32>
    %636 = arith.select %5, %630, %635 : vector<8x128xi1>, vector<8x128xf32>
    %637 = vector.extract_strided_slice %636 {offsets = [0, 0], sizes = [8, 32], strides = [1, 1]} : vector<8x128xf32> to vector<8x32xf32>
    %638 = vector.extract_strided_slice %636 {offsets = [0, 32], sizes = [8, 32], strides = [1, 1]} : vector<8x128xf32> to vector<8x32xf32>
    %639 = vector.extract_strided_slice %636 {offsets = [0, 64], sizes = [8, 32], strides = [1, 1]} : vector<8x128xf32> to vector<8x32xf32>
    %640 = vector.extract_strided_slice %636 {offsets = [0, 96], sizes = [8, 32], strides = [1, 1]} : vector<8x128xf32> to vector<8x32xf32>
    %641 = arith.mulf %638, %603 : vector<8x32xf32>
    %642 = arith.mulf %637, %639 : vector<8x32xf32>
    %643 = arith.addf %641, %642 : vector<8x32xf32>
    %644 = math.tanh %643 : vector<8x32xf32>
    %645 = arith.mulf %640, %644 : vector<8x32xf32>
    %cst_204 = arith.constant dense<0.000000e+00> : vector<8x128xf32>
    %646 = tpu.matmul %623, %344, %cst_204 {dimension_numbers = #tpu.dot_dimension_numbers<[1], [0], [0], [1], [0, 0, 1, 1], [], []>} : vector<8x32xf32>, vector<32x128xf32>, vector<8x128xf32> -> vector<8x128xf32>
    %647 = arith.addf %627, %646 : vector<8x128xf32>
    %648 = math.tanh %647 : vector<8x128xf32>
    %649 = arith.negf %647 : vector<8x128xf32>
    %650 = math.exp %649 : vector<8x128xf32>
    %cst_205 = arith.constant 1.000000e+00 : f32
    %651 = vector.broadcast %cst_205 : f32 to vector<8x128xf32>
    %652 = arith.addf %651, %650 : vector<8x128xf32>
    %653 = arith.divf %651, %652 : vector<8x128xf32>
    %654 = arith.select %5, %648, %653 : vector<8x128xi1>, vector<8x128xf32>
    %655 = vector.extract_strided_slice %654 {offsets = [0, 0], sizes = [8, 32], strides = [1, 1]} : vector<8x128xf32> to vector<8x32xf32>
    %656 = vector.extract_strided_slice %654 {offsets = [0, 32], sizes = [8, 32], strides = [1, 1]} : vector<8x128xf32> to vector<8x32xf32>
    %657 = vector.extract_strided_slice %654 {offsets = [0, 64], sizes = [8, 32], strides = [1, 1]} : vector<8x128xf32> to vector<8x32xf32>
    %658 = vector.extract_strided_slice %654 {offsets = [0, 96], sizes = [8, 32], strides = [1, 1]} : vector<8x128xf32> to vector<8x32xf32>
    %659 = arith.mulf %656, %621 : vector<8x32xf32>
    %660 = arith.mulf %655, %657 : vector<8x32xf32>
    %661 = arith.addf %659, %660 : vector<8x32xf32>
    %662 = math.tanh %661 : vector<8x32xf32>
    %663 = arith.mulf %658, %662 : vector<8x32xf32>
    %c56_206 = arith.constant 56 : index
    %c0_207 = arith.constant 0 : index
    %664 = vector.load %arg13[%c56_206, %c0_207] : memref<64x64xf32, #tpu.memory_space<vmem>>, vector<8x32xf32>
    tpu.vector_store %arg13[%c56_206, %c0_207], %645 {strides = array<i32>} : memref<64x64xf32, #tpu.memory_space<vmem>>, vector<8x32xf32>,
    %c0_208 = arith.constant 0 : index
    %c32_209 = arith.constant 32 : index
    %665 = vector.load %arg13[%c0_208, %c32_209] : memref<64x64xf32, #tpu.memory_space<vmem>>, vector<8x32xf32>
    tpu.vector_store %arg13[%c0_208, %c32_209], %663 {strides = array<i32>} : memref<64x64xf32, #tpu.memory_space<vmem>>, vector<8x32xf32>,
    %c56_210 = arith.constant 56 : index
    %c0_211 = arith.constant 0 : index
    %666 = vector.load %arg13[%c56_210, %c0_211] : memref<64x64xf32, #tpu.memory_space<vmem>>, vector<8x64xf32>
    %c0_212 = arith.constant 0 : index
    %c0_213 = arith.constant 0 : index
    %667 = vector.load %arg9[%c0_212, %c0_213] : memref<64x128xf32, #tpu.memory_space<vmem>>, vector<64x128xf32>
    %cst_214 = arith.constant dense<0.000000e+00> : vector<8x128xf32>
    %668 = tpu.matmul %666, %667, %cst_214 {dimension_numbers = #tpu.dot_dimension_numbers<[1], [0], [0], [1], [0, 0, 1, 1], [], []>} : vector<8x64xf32>, vector<64x128xf32>, vector<8x128xf32> -> vector<8x128xf32>
    %c0_215 = arith.constant 0 : index
    %c0_216 = arith.constant 0 : index
    %669 = vector.load %arg10[%c0_215, %c0_216] : memref<1x128xf32, #tpu.memory_space<vmem>>, vector<1x128xf32>
    %670 = vector.broadcast %669 : vector<1x128xf32> to vector<8x128xf32>
    %671 = arith.addf %668, %670 : vector<8x128xf32>
    %c0_217 = arith.constant 0 : index
    %c0_218 = arith.constant 0 : index
    %672 = vector.load %arg11[%c0_217, %c0_218] : memref<8x128xf32, #tpu.memory_space<vmem>>, vector<8x128xf32>
    tpu.vector_store %arg11[%c0_217, %c0_218], %671 {strides = array<i32>} : memref<8x128xf32, #tpu.memory_space<vmem>>, vector<8x128xf32>,
    return
  }
}

</mosaic_0001>

<llo_original>
// kernel: tpu_custom_call.1
$region0: #{tpu_custom_call.1}
  #allocation0 [shape = 'u32[]', space=smem, size = 0x4, offset = 0x4, fixed_abs, tag = 'smem constant byte address 0x4 - core index']
  #allocation1 [shape = 'u32[144,128]{1,0:T(1,128)}', space=vmem, size = 0x12000, scoped, tag = 'internal scratch']
  #allocation2 [shape = 'f32[64,64]{1,0:T(8,128)}', space=vmem, size = 0x8000, scoped, tag = 'scratch operand']
  #allocation3 [shape = 'f32[64,64]{1,0:T(8,128)}', space=vmem, size = 0x8000, scoped, tag = 'scratch operand']
  #allocation4 [shape = 'f32[64,256]{1,0:T(8,128)}', space=vmem, size = 0x10000, scoped, tag = 'scratch operand']
  %s0 = inlined_call_operand.vmem [shape: f32[64,16], index: 0, kind: input, shape index: {}]
  %s1 = inlined_call_operand.vmem [shape: f32[16,256], index: 1, kind: input, shape index: {}]
  %s2 = inlined_call_operand.hbm [shape: f32[32,128], index: 2, kind: input, shape index: {}]
  %s3 = inlined_call_operand.hbm [shape: f32[32,128], index: 3, kind: input, shape index: {}]
  %s4 = inlined_call_operand.vmem [shape: f32[1,256], index: 4, kind: input, shape index: {}]
  %s5 = inlined_call_operand.hbm [shape: f32[64,256], index: 5, kind: input, shape index: {}]
  %s6 = inlined_call_operand.hbm [shape: f32[32,128], index: 6, kind: input, shape index: {}]
  %s7 = inlined_call_operand.hbm [shape: f32[32,128], index: 7, kind: input, shape index: {}]
  %s8 = inlined_call_operand.vmem [shape: f32[1,256], index: 8, kind: input, shape index: {}]
  %s9 = inlined_call_operand.vmem [shape: f32[64,128], index: 9, kind: input, shape index: {}]
  %s10 = inlined_call_operand.vmem [shape: f32[1,128], index: 10, kind: input, shape index: {}]
  %s11 = inlined_call_operand.hbm [shape: f32[8,128], index: 11, kind: output, shape index: {}]
  %s12 = sld [smem:[#allocation0]]
  $region74: #{tpu_custom_call.1} parent=0
    _
  %s14 = ssub.s32 1, %s12
  %s15 = scalar_select 0, %s14, %s12
  $region1: #{tpu_custom_call.1} parent=0
    #allocation5 [shape = 'u8[16384]{0}', space=vmem, size = 0x4000, scoped, tag = 'input window, operand 2, single buffered']
    #allocation6 [shape = 's32[1]{0}', space=sflag, size = 0x4, scoped, tag = 'scoped memory for tpu_custom_call.1']
    #allocation7 [shape = 's32[1]{0}', space=sflag, size = 0x4, scoped, tag = 'scoped memory for tpu_custom_call.1']
    #allocation8 [shape = 'u8[16384]{0}', space=vmem, size = 0x4000, scoped, tag = 'input window, operand 3, single buffered']
    #allocation9 [shape = 's32[1]{0}', space=sflag, size = 0x4, scoped, tag = 'scoped memory for tpu_custom_call.1']
    #allocation10 [shape = 'u8[65536]{0}', space=vmem, size = 0x10000, scoped, tag = 'input window, operand 5, single buffered']
    #allocation11 [shape = 'u8[16384]{0}', space=vmem, size = 0x4000, scoped, tag = 'input window, operand 6, single buffered']
    #allocation12 [shape = 's32[1]{0}', space=sflag, size = 0x4, scoped, tag = 'scoped memory for tpu_custom_call.1']
    #allocation13 [shape = 'u8[16384]{0}', space=vmem, size = 0x4000, scoped, tag = 'input window, operand 7, single buffered']
    #allocation14 [shape = 'u8[4096]{0}', space=vmem, size = 0x1000, scoped, tag = 'output window, operand 0, single buffered']
    %16 = vsyncpa [#allocation6], 0
    %17 = vsyncpa [#allocation9], 0
    %18 = vsyncpa [#allocation12], 0
    %19 = vsyncpa [#allocation7], 0
    // Predicated region
    $region2: #{tpu_custom_call.1} parent=1 // pred_check
      _
    $region3: #{tpu_custom_call.1} parent=1 // pred_check_branch
      %21 = sbr.rel (0) target = $region5
    $region4: #{tpu_custom_call.1} parent=1 // pred_region
      _
    $region5: #{tpu_custom_call.1} parent=1 // pred_fallthru
      _
    // Predicated region
    $region6: #{tpu_custom_call.1} parent=1 // pred_check
      _
    $region7: #{tpu_custom_call.1} parent=1 // pred_check_branch
      %23 = sbr.rel (0) target = $region9
    $region8: #{tpu_custom_call.1} parent=1 // pred_region
      _
    $region9: #{tpu_custom_call.1} parent=1 // pred_fallthru
      _
    // Predicated region
    $region10: #{tpu_custom_call.1} parent=1 // pred_check
      _
    $region11: #{tpu_custom_call.1} parent=1 // pred_check_branch
      %25 = sbr.rel (0) target = $region13
    $region12: #{tpu_custom_call.1} parent=1 // pred_region
      %s27 = ssub.s32 512, 512
      %28 = vsyncadd [#allocation6], %s27
      %s29 = sshll.u32 [#allocation5], 4
      %s30 = int_to_ptr.vmem [resolvable:$true] %s29
      %35 = dma.hbm_to_vmem [thread:$0]  %s2, 512, %s30, [#allocation6], 128, 128, 8
    $region13: #{tpu_custom_call.1} parent=1 // pred_fallthru
      _
    // Predicated region
    $region14: #{tpu_custom_call.1} parent=1 // pred_check
      _
    $region15: #{tpu_custom_call.1} parent=1 // pred_check_branch
      %37 = sbr.rel (0) target = $region17
    $region16: #{tpu_custom_call.1} parent=1 // pred_region
      %s39 = ssub.s32 512, 512
      %40 = vsyncadd [#allocation9], %s39
      %s41 = sshll.u32 [#allocation8], 4
      %s42 = int_to_ptr.vmem [resolvable:$true] %s41
      %47 = dma.hbm_to_vmem [thread:$0]  %s3, 512, %s42, [#allocation9], 128, 128, 8
    $region17: #{tpu_custom_call.1} parent=1 // pred_fallthru
      _
    // Predicated region
    $region18: #{tpu_custom_call.1} parent=1 // pred_check
      _
    $region19: #{tpu_custom_call.1} parent=1 // pred_check_branch
      %49 = sbr.rel (0) target = $region21
    $region20: #{tpu_custom_call.1} parent=1 // pred_region
      _
    $region21: #{tpu_custom_call.1} parent=1 // pred_fallthru
      _
    // Predicated region
    $region22: #{tpu_custom_call.1} parent=1 // pred_check
      _
    $region23: #{tpu_custom_call.1} parent=1 // pred_check_branch
      %51 = sbr.rel (0) target = $region25
    $region24: #{tpu_custom_call.1} parent=1 // pred_region
      %s53 = ssub.s32 2048, 2048
      %54 = vsyncadd [#allocation9], %s53
      %s55 = sshll.u32 [#allocation10], 4
      %s56 = int_to_ptr.vmem [resolvable:$true] %s55
      %61 = dma.hbm_to_vmem [thread:$0]  %s5, 2048, %s56, [#allocation9], 256, 256, 16
    $region25: #{tpu_custom_call.1} parent=1 // pred_fallthru
      _
    // Predicated region
    $region26: #{tpu_custom_call.1} parent=1 // pred_check
      _
    $region27: #{tpu_custom_call.1} parent=1 // pred_check_branch
      %63 = sbr.rel (0) target = $region29
    $region28: #{tpu_custom_call.1} parent=1 // pred_region
      %s65 = ssub.s32 512, 512
      %66 = vsyncadd [#allocation12], %s65
      %s67 = sshll.u32 [#allocation11], 4
      %s68 = int_to_ptr.vmem [resolvable:$true] %s67
      %73 = dma.hbm_to_vmem [thread:$0]  %s6, 512, %s68, [#allocation12], 128, 128, 8
    $region29: #{tpu_custom_call.1} parent=1 // pred_fallthru
      _
    // Predicated region
    $region30: #{tpu_custom_call.1} parent=1 // pred_check
      _
    $region31: #{tpu_custom_call.1} parent=1 // pred_check_branch
      %75 = sbr.rel (0) target = $region33
    $region32: #{tpu_custom_call.1} parent=1 // pred_region
      %s77 = ssub.s32 512, 512
      %78 = vsyncadd [#allocation12], %s77
      %s79 = sshll.u32 [#allocation13], 4
      %s80 = int_to_ptr.vmem [resolvable:$true] %s79
      %85 = dma.hbm_to_vmem [thread:$0]  %s7, 512, %s80, [#allocation12], 128, 128, 8
    $region33: #{tpu_custom_call.1} parent=1 // pred_fallthru
      _
    // Predicated region
    $region34: #{tpu_custom_call.1} parent=1 // pred_check
      _
    $region35: #{tpu_custom_call.1} parent=1 // pred_check_branch
      %87 = sbr.rel (0) target = $region37
    $region36: #{tpu_custom_call.1} parent=1 // pred_region
      _
    $region37: #{tpu_custom_call.1} parent=1 // pred_fallthru
      _
    // Predicated region
    $region38: #{tpu_custom_call.1} parent=1 // pred_check
      _
    $region39: #{tpu_custom_call.1} parent=1 // pred_check_branch
      %89 = sbr.rel (0) target = $region41
    $region40: #{tpu_custom_call.1} parent=1 // pred_region
      _
    $region41: #{tpu_custom_call.1} parent=1 // pred_fallthru
      _
    // Predicated region
    $region42: #{tpu_custom_call.1} parent=1 // pred_check
      _
    $region43: #{tpu_custom_call.1} parent=1 // pred_check_branch
      %91 = sbr.rel (0) target = $region45
    $region44: #{tpu_custom_call.1} parent=1 // pred_region
      _
    $region45: #{tpu_custom_call.1} parent=1 // pred_fallthru
      _
    // Predicated region
    $region46: #{tpu_custom_call.1} parent=1 // pred_check
      _
    $region47: #{tpu_custom_call.1} parent=1 // pred_check_branch
      %93 = sbr.rel (0) target = $region49
    $region48: #{tpu_custom_call.1} parent=1 // pred_region
      %94 = dma.done [#allocation6], 512
    $region49: #{tpu_custom_call.1} parent=1 // pred_fallthru
      _
    // Predicated region
    $region50: #{tpu_custom_call.1} parent=1 // pred_check
      _
    $region51: #{tpu_custom_call.1} parent=1 // pred_check_branch
      %96 = sbr.rel (0) target = $region53
    $region52: #{tpu_custom_call.1} parent=1 // pred_region
      %97 = dma.done [#allocation9], 512
    $region53: #{tpu_custom_call.1} parent=1 // pred_fallthru
      _
    // Predicated region
    $region54: #{tpu_custom_call.1} parent=1 // pred_check
      _
    $region55: #{tpu_custom_call.1} parent=1 // pred_check_branch
      %99 = sbr.rel (0) target = $region57
    $region56: #{tpu_custom_call.1} parent=1 // pred_region
      %100 = dma.done [#allocation9], 2048
    $region57: #{tpu_custom_call.1} parent=1 // pred_fallthru
      _
    // Predicated region
    $region58: #{tpu_custom_call.1} parent=1 // pred_check
      _
    $region59: #{tpu_custom_call.1} parent=1 // pred_check_branch
      %102 = sbr.rel (0) target = $region61
    $region60: #{tpu_custom_call.1} parent=1 // pred_region
      %103 = dma.done [#allocation12], 512
    $region61: #{tpu_custom_call.1} parent=1 // pred_fallthru
      _
    // Predicated region
    $region62: #{tpu_custom_call.1} parent=1 // pred_check
      _
    $region63: #{tpu_custom_call.1} parent=1 // pred_check_branch
      %105 = sbr.rel (0) target = $region65
    $region64: #{tpu_custom_call.1} parent=1 // pred_region
      %106 = dma.done [#allocation12], 512
    $region65: #{tpu_custom_call.1} parent=1 // pred_fallthru
      _
    %v107 = vlaneseq
    %v108 = vand.u32 %v107, 127
    %vm109 = vcmp.ge.s32.totalorder %v108, 64
    %vm110 = vcmp.lt.s32.totalorder %v108, 96
    %vm111 = vmand %vm109, %vm110
    %v112 = vld [vmem:[%s0] sm:$0xff]
    %v113 = vld [vmem:[%s0 + $0x8] sm:$0xff]
    %v114 = vld [vmem:[%s0 + $0x10] sm:$0xff]
    %v115 = vld [vmem:[%s0 + $0x18] sm:$0xff]
    %v116 = vld [vmem:[%s0 + $0x20] sm:$0xff]
    %v117 = vld [vmem:[%s0 + $0x28] sm:$0xff]
    %v118 = vld [vmem:[%s0 + $0x30] sm:$0xff]
    %v119 = vld [vmem:[%s0 + $0x38] sm:$0xff]
    %v120 = vld [vmem:[%s1] sm:$0xff]
    %v121 = vld [vmem:[%s1 + $0x8] sm:$0xff]
    %v122 = vld [vmem:[%s1 + $0x10] sm:$0xff]
    %v123 = vld [vmem:[%s1 + $0x18] sm:$0xff]
    %v124 = vld [vmem:[%s4] sm:$0x3]
    %v126 = vlaneseq
    %v127 = vshrl.u32 %v126, 7
    %v128 = vsub.s32 0, %v127
    %v129 = vrot.slane %v124, %v128
    %v130 = vlaneseq
    %v131 = vshrl.u32 %v130, 7
    %v132 = vsub.s32 1, %v131
    %v133 = vrot.slane %v124, %v132
    %vm136 = vcmask 130048
    %v138 = vsel %vm136, %v112, 0
    %v141 = vsel %vm136, %v113, 0
    %v144 = vsel %vm136, %v114, 0
    %v147 = vsel %vm136, %v115, 0
    %v150 = vsel %vm136, %v116, 0
    %v153 = vsel %vm136, %v117, 0
    %v156 = vsel %vm136, %v118, 0
    %v159 = vsel %vm136, %v119, 0
    %161 = vmatprep.subr.mxu0 %v121
    %162 = vmatpush1.msra.mxu0 %v120
    %163 = vmatprep.subr.mxu0 %v123
    %164 = vmatpush1.msra.mxu0 %v122
    %165 = vmatprep.subr.mxu0 0.0
    %166 = vmatpush1.msra.mxu0 0.0
    %167 = vmatprep.subr.mxu0 0.0
    %168 = vmatpush1.msra.mxu0 0.0
    %169 = vmatprep.subr.mxu0 0.0
    %170 = vmatpush1.msra.mxu0 0.0
    %171 = vmatprep.subr.mxu0 0.0
    %172 = vmatpush1.msra.mxu0 0.0
    %173 = vmatprep.subr.mxu0 0.0
    %174 = vmatpush1.msra.mxu0 0.0
    %175 = vmatprep.subr.mxu0 0.0
    %176 = vmatpush1.msra.mxu0 0.0
    %177 = vmatprep.subr.mxu0 0.0
    %178 = vmatpush1.msra.mxu0 0.0
    %179 = vmatprep.subr.mxu0 0.0
    %180 = vmatpush1.msra.mxu0 0.0
    %181 = vmatprep.subr.mxu0 0.0
    %182 = vmatpush1.msra.mxu0 0.0
    %183 = vmatprep.subr.mxu0 0.0
    %184 = vmatpush1.msra.mxu0 0.0
    %185 = vmatprep.subr.mxu0 0.0
    %186 = vmatpush1.msra.mxu0 0.0
    %187 = vmatprep.subr.mxu0 0.0
    %188 = vmatpush1.msra.mxu0 0.0
    %189 = vmatprep.subr.mxu0 0.0
    %190 = vmatpush1.msra.mxu0 0.0
    %191 = vmatprep.subr.mxu0 0.0
    %192 = vmatpush1.msra.mxu0 0.0
    %193 = vmatprep.subr.mxu0 0.0
    %194 = vmatpush1.msra.mxu0 0.0
    %195 = vmatprep.subr.mxu0 0.0
    %196 = vmatpush1.msra.mxu0 0.0
    %197 = vmatprep.subr.mxu0 0.0
    %198 = vmatpush1.msra.mxu0 0.0
    %199 = vmatprep.subr.mxu0 0.0
    %200 = vmatpush1.msra.mxu0 0.0
    %201 = vmatprep.subr.mxu0 0.0
    %202 = vmatpush1.msra.mxu0 0.0
    %203 = vmatprep.subr.mxu0 0.0
    %204 = vmatpush1.msra.mxu0 0.0
    %205 = vmatprep.subr.mxu0 0.0
    %206 = vmatpush1.msra.mxu0 0.0
    %207 = vmatprep.subr.mxu0 0.0
    %208 = vmatpush1.msra.mxu0 0.0
    %209 = vmatprep.subr.mxu0 0.0
    %210 = vmatpush1.msra.mxu0 0.0
    %211 = vmatprep.subr.mxu0 0.0
    %212 = vmatpush1.msra.mxu0 0.0
    %213 = vmatprep.subr.mxu0 0.0
    %214 = vmatpush1.msra.mxu0 0.0
    %215 = vmatprep.subr.mxu0 0.0
    %216 = vmatpush1.msra.mxu0 0.0
    %217 = vmatprep.subr.mxu0 0.0
    %218 = vmatpush1.msra.mxu0 0.0
    %219 = vmatprep.subr.mxu0 0.0
    %220 = vmatpush1.msra.mxu0 0.0
    %221 = vmatprep.subr.mxu0 0.0
    %222 = vmatpush1.msra.mxu0 0.0
    %223 = vmatprep.subr.mxu0 0.0
    %224 = vmatpush1.msra.mxu0 0.0
    %225 = vmatprep.mubr.f32.mxu0 0.0
    %226 = vmatmul.mubr.f32.gmra.mrb[0].mxu0 %v138
    %v227 = vpop.f32.mrb[0].mxu0
    %v228 = vadd.f32 %v129, %v227
    %v229 = vpop.f32.mrb[0].mxu0
    %v230 = vadd.f32 %v133, %v229
    %231 = vmatprep.mubr.f32.mxu0 0.0
    %232 = vmatmul.mubr.f32.gmra.mrb[0].mxu0 %v141
    %v233 = vpop.f32.mrb[0].mxu0
    %v234 = vadd.f32 %v129, %v233
    %v235 = vpop.f32.mrb[0].mxu0
    %v236 = vadd.f32 %v133, %v235
    %237 = vmatprep.mubr.f32.mxu0 0.0
    %238 = vmatmul.mubr.f32.gmra.mrb[0].mxu0 %v144
    %v239 = vpop.f32.mrb[0].mxu0
    %v240 = vadd.f32 %v129, %v239
    %v241 = vpop.f32.mrb[0].mxu0
    %v242 = vadd.f32 %v133, %v241
    %243 = vmatprep.mubr.f32.mxu0 0.0
    %244 = vmatmul.mubr.f32.gmra.mrb[0].mxu0 %v147
    %v245 = vpop.f32.mrb[0].mxu0
    %v246 = vadd.f32 %v129, %v245
    %v247 = vpop.f32.mrb[0].mxu0
    %v248 = vadd.f32 %v133, %v247
    %249 = vmatprep.mubr.f32.mxu0 0.0
    %250 = vmatmul.mubr.f32.gmra.mrb[0].mxu0 %v150
    %v251 = vpop.f32.mrb[0].mxu0
    %v252 = vadd.f32 %v129, %v251
    %v253 = vpop.f32.mrb[0].mxu0
    %v254 = vadd.f32 %v133, %v253
    %255 = vmatprep.mubr.f32.mxu0 0.0
    %256 = vmatmul.mubr.f32.gmra.mrb[0].mxu0 %v153
    %v257 = vpop.f32.mrb[0].mxu0
    %v258 = vadd.f32 %v129, %v257
    %v259 = vpop.f32.mrb[0].mxu0
    %v260 = vadd.f32 %v133, %v259
    %261 = vmatprep.mubr.f32.mxu0 0.0
    %262 = vmatmul.mubr.f32.gmra.mrb[0].mxu0 %v156
    %v263 = vpop.f32.mrb[0].mxu0
    %v264 = vadd.f32 %v129, %v263
    %v265 = vpop.f32.mrb[0].mxu0
    %v266 = vadd.f32 %v133, %v265
    %267 = vmatprep.mubr.f32.mxu0 0.0
    %268 = vmatmul.mubr.f32.gmra.mrb[0].mxu0 %v159
    %v269 = vpop.f32.mrb[0].mxu0
    %v270 = vadd.f32 %v129, %v269
    %v271 = vpop.f32.mrb[0].mxu0
    %v272 = vadd.f32 %v133, %v271
    %273 = vdwg.mxu0
    %274 = vst [vmem:[#allocation4] sm:$0xff] %v228
    %275 = vst [vmem:[#allocation4 + $0x8] sm:$0xff] %v230
    %276 = vst [vmem:[#allocation4 + $0x10] sm:$0xff] %v234
    %277 = vst [vmem:[#allocation4 + $0x18] sm:$0xff] %v236
    %278 = vst [vmem:[#allocation4 + $0x20] sm:$0xff] %v240
    %279 = vst [vmem:[#allocation4 + $0x28] sm:$0xff] %v242
    %280 = vst [vmem:[#allocation4 + $0x30] sm:$0xff] %v246
    %281 = vst [vmem:[#allocation4 + $0x38] sm:$0xff] %v248
    %282 = vst [vmem:[#allocation4 + $0x40] sm:$0xff] %v252
    %283 = vst [vmem:[#allocation4 + $0x48] sm:$0xff] %v254
    %284 = vst [vmem:[#allocation4 + $0x50] sm:$0xff] %v258
    %285 = vst [vmem:[#allocation4 + $0x58] sm:$0xff] %v260
    %286 = vst [vmem:[#allocation4 + $0x60] sm:$0xff] %v264
    %287 = vst [vmem:[#allocation4 + $0x68] sm:$0xff] %v266
    %288 = vst [vmem:[#allocation4 + $0x70] sm:$0xff] %v270
    %289 = vst [vmem:[#allocation4 + $0x78] sm:$0xff] %v272
    %v290 = vld [vmem:[#allocation5] sm:$0xff]
    %v291 = vld [vmem:[#allocation5 + $0x8] sm:$0xff]
    %v292 = vld [vmem:[#allocation5 + $0x10] sm:$0xff]
    %v293 = vld [vmem:[#allocation5 + $0x18] sm:$0xff]
    %v294 = vld [vmem:[#allocation8] sm:$0xff]
    %v295 = vld [vmem:[#allocation8 + $0x8] sm:$0xff]
    %v296 = vld [vmem:[#allocation8 + $0x10] sm:$0xff]
    %v297 = vld [vmem:[#allocation8 + $0x18] sm:$0xff]
    %v298 = vld [vmem:[#allocation4] sm:$0xff]
    %v299 = vld [vmem:[#allocation4 + $0x78] sm:$0xff]
    %vm300 = vcmask 261120
    %v302 = vsel %vm300, 0.0, 0
    %304 = vmatprep.subr.mxu0 0.0
    %305 = vmatpush1.msra.mxu0 %v290
    %306 = vmatprep.subr.mxu0 0.0
    %307 = vmatpush1.msra.mxu0 %v291
    %308 = vmatprep.subr.mxu0 0.0
    %309 = vmatpush1.msra.mxu0 %v292
    %310 = vmatprep.subr.mxu0 0.0
    %311 = vmatpush1.msra.mxu0 %v293
    %312 = vmatprep.subr.mxu0 0.0
    %313 = vmatpush1.msra.mxu0 0.0
    %314 = vmatprep.subr.mxu0 0.0
    %315 = vmatpush1.msra.mxu0 0.0
    %316 = vmatprep.subr.mxu0 0.0
    %317 = vmatpush1.msra.mxu0 0.0
    %318 = vmatprep.subr.mxu0 0.0
    %319 = vmatpush1.msra.mxu0 0.0
    %320 = vmatprep.subr.mxu0 0.0
    %321 = vmatpush1.msra.mxu0 0.0
    %322 = vmatprep.subr.mxu0 0.0
    %323 = vmatpush1.msra.mxu0 0.0
    %324 = vmatprep.subr.mxu0 0.0
    %325 = vmatpush1.msra.mxu0 0.0
    %326 = vmatprep.subr.mxu0 0.0
    %327 = vmatpush1.msra.mxu0 0.0
    %328 = vmatprep.subr.mxu0 0.0
    %329 = vmatpush1.msra.mxu0 0.0
    %330 = vmatprep.subr.mxu0 0.0
    %331 = vmatpush1.msra.mxu0 0.0
    %332 = vmatprep.subr.mxu0 0.0
    %333 = vmatpush1.msra.mxu0 0.0
    %334 = vmatprep.subr.mxu0 0.0
    %335 = vmatpush1.msra.mxu0 0.0
    %336 = vmatprep.subr.mxu0 0.0
    %337 = vmatpush1.msra.mxu0 0.0
    %338 = vmatprep.subr.mxu0 0.0
    %339 = vmatpush1.msra.mxu0 0.0
    %340 = vmatprep.subr.mxu0 0.0
    %341 = vmatpush1.msra.mxu0 0.0
    %342 = vmatprep.subr.mxu0 0.0
    %343 = vmatpush1.msra.mxu0 0.0
    %344 = vmatprep.subr.mxu0 0.0
    %345 = vmatpush1.msra.mxu0 0.0
    %346 = vmatprep.subr.mxu0 0.0
    %347 = vmatpush1.msra.mxu0 0.0
    %348 = vmatprep.subr.mxu0 0.0
    %349 = vmatpush1.msra.mxu0 0.0
    %350 = vmatprep.subr.mxu0 0.0
    %351 = vmatpush1.msra.mxu0 0.0
    %352 = vmatprep.subr.mxu0 0.0
    %353 = vmatpush1.msra.mxu0 0.0
    %354 = vmatprep.subr.mxu0 0.0
    %355 = vmatpush1.msra.mxu0 0.0
    %356 = vmatprep.subr.mxu0 0.0
    %357 = vmatpush1.msra.mxu0 0.0
    %358 = vmatprep.subr.mxu0 0.0
    %359 = vmatpush1.msra.mxu0 0.0
    %360 = vmatprep.subr.mxu0 0.0
    %361 = vmatpush1.msra.mxu0 0.0
    %362 = vmatprep.subr.mxu0 0.0
    %363 = vmatpush1.msra.mxu0 0.0
    %364 = vmatprep.subr.mxu0 0.0
    %365 = vmatpush1.msra.mxu0 0.0
    %366 = vmatprep.subr.mxu0 0.0
    %367 = vmatpush1.msra.mxu0 0.0
    %368 = vmatprep.mubr.f32.mxu0 0.0
    %369 = vmatmul.mubr.f32.gmra.mrb[0].mxu0 %v302
    %v370 = vpop.f32.mrb[0].mxu0
    %v371 = vadd.f32 0.0, %v370
    %v372 = vpop.f32.mrb[0].mxu0
    %373 = vdwg.mxu0
    %v374 = vadd.f32 %v298, %v371
    %v375 = vtanh.pop %v374
    %v376 = vxor.u32 %v374, 2147483648
    %v377 = vmul.f32 %v376, 1.442695
    %v378 = vpow.pop %v377
    %v379 = vadd.f32 %v378, 1.0
    %v380 = vrcp.pop %v379
    %v381 = vmul.f32 1.0, %v380
    %v382 = vsel %vm111, %v375, %v381
    %v383 = vmul.f32 %v382, 0.0
    %385 = vrot.lane.b32.xlu0 %v382, 64
    %v386 = vpop.permute.xlu0 %385
    %v388 = vmul.f32 %v382, %v386
    %390 = vrot.lane.b32.xlu0 %v388, 32
    %v391 = vpop.permute.xlu0 %390
    %v393 = vadd.f32 %v383, %v391
    %v394 = vtanh.pop %v393
    %396 = vrot.lane.b32.xlu0 %v394, 64
    %v397 = vpop.permute.xlu0 %396
    %v399 = vmul.f32 %v382, %v397
    %400 = vmatprep.subr.mxu0 0.0
    %401 = vmatpush1.msra.mxu0 %v294
    %402 = vmatprep.subr.mxu0 0.0
    %403 = vmatpush1.msra.mxu0 %v295
    %404 = vmatprep.subr.mxu0 0.0
    %405 = vmatpush1.msra.mxu0 %v296
    %406 = vmatprep.subr.mxu0 0.0
    %407 = vmatpush1.msra.mxu0 %v297
    %408 = vmatprep.subr.mxu0 0.0
    %409 = vmatpush1.msra.mxu0 0.0
    %410 = vmatprep.subr.mxu0 0.0
    %411 = vmatpush1.msra.mxu0 0.0
    %412 = vmatprep.subr.mxu0 0.0
    %413 = vmatpush1.msra.mxu0 0.0
    %414 = vmatprep.subr.mxu0 0.0
    %415 = vmatpush1.msra.mxu0 0.0
    %416 = vmatprep.subr.mxu0 0.0
    %417 = vmatpush1.msra.mxu0 0.0
    %418 = vmatprep.subr.mxu0 0.0
    %419 = vmatpush1.msra.mxu0 0.0
    %420 = vmatprep.subr.mxu0 0.0
    %421 = vmatpush1.msra.mxu0 0.0
    %422 = vmatprep.subr.mxu0 0.0
    %423 = vmatpush1.msra.mxu0 0.0
    %424 = vmatprep.subr.mxu0 0.0
    %425 = vmatpush1.msra.mxu0 0.0
    %426 = vmatprep.subr.mxu0 0.0
    %427 = vmatpush1.msra.mxu0 0.0
    %428 = vmatprep.subr.mxu0 0.0
    %429 = vmatpush1.msra.mxu0 0.0
    %430 = vmatprep.subr.mxu0 0.0
    %431 = vmatpush1.msra.mxu0 0.0
    %432 = vmatprep.subr.mxu0 0.0
    %433 = vmatpush1.msra.mxu0 0.0
    %434 = vmatprep.subr.mxu0 0.0
    %435 = vmatpush1.msra.mxu0 0.0
    %436 = vmatprep.subr.mxu0 0.0
    %437 = vmatpush1.msra.mxu0 0.0
    %438 = vmatprep.subr.mxu0 0.0
    %439 = vmatpush1.msra.mxu0 0.0
    %440 = vmatprep.subr.mxu0 0.0
    %441 = vmatpush1.msra.mxu0 0.0
    %442 = vmatprep.subr.mxu0 0.0
    %443 = vmatpush1.msra.mxu0 0.0
    %444 = vmatprep.subr.mxu0 0.0
    %445 = vmatpush1.msra.mxu0 0.0
    %446 = vmatprep.subr.mxu0 0.0
    %447 = vmatpush1.msra.mxu0 0.0
    %448 = vmatprep.subr.mxu0 0.0
    %449 = vmatpush1.msra.mxu0 0.0
    %450 = vmatprep.subr.mxu0 0.0
    %451 = vmatpush1.msra.mxu0 0.0
    %452 = vmatprep.subr.mxu0 0.0
    %453 = vmatpush1.msra.mxu0 0.0
    %454 = vmatprep.subr.mxu0 0.0
    %455 = vmatpush1.msra.mxu0 0.0
    %456 = vmatprep.subr.mxu0 0.0
    %457 = vmatpush1.msra.mxu0 0.0
    %458 = vmatprep.subr.mxu0 0.0
    %459 = vmatpush1.msra.mxu0 0.0
    %460 = vmatprep.subr.mxu0 0.0
    %461 = vmatpush1.msra.mxu0 0.0
    %462 = vmatprep.subr.mxu0 0.0
    %463 = vmatpush1.msra.mxu0 0.0
    %464 = vmatprep.mubr.f32.mxu0 0.0
    %465 = vmatmul.mubr.f32.gmra.mrb[0].mxu0 %v302
    %v466 = vpop.f32.mrb[0].mxu0
    %v467 = vadd.f32 0.0, %v466
    %v468 = vpop.f32.mrb[0].mxu0
    %469 = vdwg.mxu0
    %v470 = vadd.f32 %v299, %v467
    %v471 = vtanh.pop %v470
    %v472 = vxor.u32 %v470, 2147483648
    %v473 = vmul.f32 %v472, 1.442695
    %v474 = vpow.pop %v473
    %v475 = vadd.f32 %v474, 1.0
    %v476 = vrcp.pop %v475
    %v477 = vmul.f32 1.0, %v476
    %v478 = vsel %vm111, %v471, %v477
    %v479 = vmul.f32 %v478, 0.0
    %481 = vrot.lane.b32.xlu0 %v478, 64
    %v482 = vpop.permute.xlu0 %481
    %v484 = vmul.f32 %v478, %v482
    %486 = vrot.lane.b32.xlu0 %v484, 32
    %v487 = vpop.permute.xlu0 %486
    %v489 = vadd.f32 %v479, %v487
    %v490 = vtanh.pop %v489
    %492 = vrot.lane.b32.xlu0 %v490, 64
    %v493 = vpop.permute.xlu0 %492
    %v495 = vmul.f32 %v478, %v493
    %497 = vrot.lane.b32.xlu0 %v399, 32
    %v498 = vpop.permute.xlu0 %497
    %500 = vst.msk [vmem:[#allocation2] sm:$0xff] %vm300, %v498
    %502 = vrot.lane.b32.xlu0 %v495, 64
    %v503 = vpop.permute.xlu0 %502
    %vm505 = vcmask 523520
    %506 = vst.msk [vmem:[#allocation2 + $0x38] sm:$0xff] %vm505, %v503
    %v507 = vld [vmem:[#allocation4 + $0x10] sm:$0xff]
    %v508 = vld [vmem:[#allocation4 + $0x68] sm:$0xff]
    %v509 = vsel %vm300, %v498, 0
    %511 = vmatprep.subr.mxu0 0.0
    %512 = vmatpush1.msra.mxu0 %v290
    %513 = vmatprep.subr.mxu0 0.0
    %514 = vmatpush1.msra.mxu0 %v291
    %515 = vmatprep.subr.mxu0 0.0
    %516 = vmatpush1.msra.mxu0 %v292
    %517 = vmatprep.subr.mxu0 0.0
    %518 = vmatpush1.msra.mxu0 %v293
    %519 = vmatprep.subr.mxu0 0.0
    %520 = vmatpush1.msra.mxu0 0.0
    %521 = vmatprep.subr.mxu0 0.0
    %522 = vmatpush1.msra.mxu0 0.0
    %523 = vmatprep.subr.mxu0 0.0
    %524 = vmatpush1.msra.mxu0 0.0
    %525 = vmatprep.subr.mxu0 0.0
    %526 = vmatpush1.msra.mxu0 0.0
    %527 = vmatprep.subr.mxu0 0.0
    %528 = vmatpush1.msra.mxu0 0.0
    %529 = vmatprep.subr.mxu0 0.0
    %530 = vmatpush1.msra.mxu0 0.0
    %531 = vmatprep.subr.mxu0 0.0
    %532 = vmatpush1.msra.mxu0 0.0
    %533 = vmatprep.subr.mxu0 0.0
    %534 = vmatpush1.msra.mxu0 0.0
    %535 = vmatprep.subr.mxu0 0.0
    %536 = vmatpush1.msra.mxu0 0.0
    %537 = vmatprep.subr.mxu0 0.0
    %538 = vmatpush1.msra.mxu0 0.0
    %539 = vmatprep.subr.mxu0 0.0
    %540 = vmatpush1.msra.mxu0 0.0
    %541 = vmatprep.subr.mxu0 0.0
    %542 = vmatpush1.msra.mxu0 0.0
    %543 = vmatprep.subr.mxu0 0.0
    %544 = vmatpush1.msra.mxu0 0.0
    %545 = vmatprep.subr.mxu0 0.0
    %546 = vmatpush1.msra.mxu0 0.0
    %547 = vmatprep.subr.mxu0 0.0
    %548 = vmatpush1.msra.mxu0 0.0
    %549 = vmatprep.subr.mxu0 0.0
    %550 = vmatpush1.msra.mxu0 0.0
    %551 = vmatprep.subr.mxu0 0.0
    %552 = vmatpush1.msra.mxu0 0.0
    %553 = vmatprep.subr.mxu0 0.0
    %554 = vmatpush1.msra.mxu0 0.0
    %555 = vmatprep.subr.mxu0 0.0
    %556 = vmatpush1.msra.mxu0 0.0
    %557 = vmatprep.subr.mxu0 0.0
    %558 = vmatpush1.msra.mxu0 0.0
    %559 = vmatprep.subr.mxu0 0.0
    %560 = vmatpush1.msra.mxu0 0.0
    %561 = vmatprep.subr.mxu0 0.0
    %562 = vmatpush1.msra.mxu0 0.0
    %563 = vmatprep.subr.mxu0 0.0
    %564 = vmatpush1.msra.mxu0 0.0
    %565 = vmatprep.subr.mxu0 0.0
    %566 = vmatpush1.msra.mxu0 0.0
    %567 = vmatprep.subr.mxu0 0.0
    %568 = vmatpush1.msra.mxu0 0.0
    %569 = vmatprep.subr.mxu0 0.0
    %570 = vmatpush1.msra.mxu0 0.0
    %571 = vmatprep.subr.mxu0 0.0
    %572 = vmatpush1.msra.mxu0 0.0
    %573 = vmatprep.subr.mxu0 0.0
    %574 = vmatpush1.msra.mxu0 0.0
    %575 = vmatprep.mubr.f32.mxu0 0.0
    %576 = vmatmul.mubr.f32.gmra.mrb[0].mxu0 %v509
    %v577 = vpop.f32.mrb[0].mxu0
    %v578 = vadd.f32 0.0, %v577
    %v579 = vpop.f32.mrb[0].mxu0
    %580 = vdwg.mxu0
    %v581 = vadd.f32 %v507, %v578
    %v582 = vtanh.pop %v581
    %v583 = vxor.u32 %v581, 2147483648
    %v584 = vmul.f32 %v583, 1.442695
    %v585 = vpow.pop %v584
    %v586 = vadd.f32 %v585, 1.0
    %v587 = vrcp.pop %v586
    %v588 = vmul.f32 1.0, %v587
    %v589 = vsel %vm111, %v582, %v588
    %v590 = vmul.f32 %v589, %v393
    %592 = vrot.lane.b32.xlu0 %v589, 64
    %v593 = vpop.permute.xlu0 %592
    %v595 = vmul.f32 %v589, %v593
    %597 = vrot.lane.b32.xlu0 %v595, 32
    %v598 = vpop.permute.xlu0 %597
    %v600 = vadd.f32 %v590, %v598
    %v601 = vtanh.pop %v600
    %603 = vrot.lane.b32.xlu0 %v601, 64
    %v604 = vpop.permute.xlu0 %603
    %v606 = vmul.f32 %v589, %v604
    %607 = vrot.lane.b32.xlu0 %v495, 32
    %v608 = vpop.permute.xlu0 %607
    %v609 = vsel %vm300, %v608, 0
    %611 = vmatprep.subr.mxu0 0.0
    %612 = vmatpush1.msra.mxu0 %v294
    %613 = vmatprep.subr.mxu0 0.0
    %614 = vmatpush1.msra.mxu0 %v295
    %615 = vmatprep.subr.mxu0 0.0
    %616 = vmatpush1.msra.mxu0 %v296
    %617 = vmatprep.subr.mxu0 0.0
    %618 = vmatpush1.msra.mxu0 %v297
    %619 = vmatprep.subr.mxu0 0.0
    %620 = vmatpush1.msra.mxu0 0.0
    %621 = vmatprep.subr.mxu0 0.0
    %622 = vmatpush1.msra.mxu0 0.0
    %623 = vmatprep.subr.mxu0 0.0
    %624 = vmatpush1.msra.mxu0 0.0
    %625 = vmatprep.subr.mxu0 0.0
    %626 = vmatpush1.msra.mxu0 0.0
    %627 = vmatprep.subr.mxu0 0.0
    %628 = vmatpush1.msra.mxu0 0.0
    %629 = vmatprep.subr.mxu0 0.0
    %630 = vmatpush1.msra.mxu0 0.0
    %631 = vmatprep.subr.mxu0 0.0
    %632 = vmatpush1.msra.mxu0 0.0
    %633 = vmatprep.subr.mxu0 0.0
    %634 = vmatpush1.msra.mxu0 0.0
    %635 = vmatprep.subr.mxu0 0.0
    %636 = vmatpush1.msra.mxu0 0.0
    %637 = vmatprep.subr.mxu0 0.0
    %638 = vmatpush1.msra.mxu0 0.0
    %639 = vmatprep.subr.mxu0 0.0
    %640 = vmatpush1.msra.mxu0 0.0
    %641 = vmatprep.subr.mxu0 0.0
    %642 = vmatpush1.msra.mxu0 0.0
    %643 = vmatprep.subr.mxu0 0.0
    %644 = vmatpush1.msra.mxu0 0.0
    %645 = vmatprep.subr.mxu0 0.0
    %646 = vmatpush1.msra.mxu0 0.0
    %647 = vmatprep.subr.mxu0 0.0
    %648 = vmatpush1.msra.mxu0 0.0
    %649 = vmatprep.subr.mxu0 0.0
    %650 = vmatpush1.msra.mxu0 0.0
    %651 = vmatprep.subr.mxu0 0.0
    %652 = vmatpush1.msra.mxu0 0.0
    %653 = vmatprep.subr.mxu0 0.0
    %654 = vmatpush1.msra.mxu0 0.0
    %655 = vmatprep.subr.mxu0 0.0
    %656 = vmatpush1.msra.mxu0 0.0
    %657 = vmatprep.subr.mxu0 0.0
    %658 = vmatpush1.msra.mxu0 0.0
    %659 = vmatprep.subr.mxu0 0.0
    %660 = vmatpush1.msra.mxu0 0.0
    %661 = vmatprep.subr.mxu0 0.0
    %662 = vmatpush1.msra.mxu0 0.0
    %663 = vmatprep.subr.mxu0 0.0
    %664 = vmatpush1.msra.mxu0 0.0
    %665 = vmatprep.subr.mxu0 0.0
    %666 = vmatpush1.msra.mxu0 0.0
    %667 = vmatprep.subr.mxu0 0.0
    %668 = vmatpush1.msra.mxu0 0.0
    %669 = vmatprep.subr.mxu0 0.0
    %670 = vmatpush1.msra.mxu0 0.0
    %671 = vmatprep.subr.mxu0 0.0
    %672 = vmatpush1.msra.mxu0 0.0
    %673 = vmatprep.subr.mxu0 0.0
    %674 = vmatpush1.msra.mxu0 0.0
    %675 = vmatprep.mubr.f32.mxu0 0.0
    %676 = vmatmul.mubr.f32.gmra.mrb[0].mxu0 %v609
    %v677 = vpop.f32.mrb[0].mxu0
    %v678 = vadd.f32 0.0, %v677
    %v679 = vpop.f32.mrb[0].mxu0
    %680 = vdwg.mxu0
    %v681 = vadd.f32 %v508, %v678
    %v682 = vtanh.pop %v681
    %v683 = vxor.u32 %v681, 2147483648
    %v684 = vmul.f32 %v683, 1.442695
    %v685 = vpow.pop %v684
    %v686 = vadd.f32 %v685, 1.0
    %v687 = vrcp.pop %v686
    %v688 = vmul.f32 1.0, %v687
    %v689 = vsel %vm111, %v682, %v688
    %v690 = vmul.f32 %v689, %v489
    %692 = vrot.lane.b32.xlu0 %v689, 64
    %v693 = vpop.permute.xlu0 %692
    %v695 = vmul.f32 %v689, %v693
    %697 = vrot.lane.b32.xlu0 %v695, 32
    %v698 = vpop.permute.xlu0 %697
    %v700 = vadd.f32 %v690, %v698
    %v701 = vtanh.pop %v700
    %703 = vrot.lane.b32.xlu0 %v701, 64
    %v704 = vpop.permute.xlu0 %703
    %v706 = vmul.f32 %v689, %v704
    %708 = vrot.lane.b32.xlu0 %v606, 32
    %v709 = vpop.permute.xlu0 %708
    %711 = vst.msk [vmem:[#allocation2 + $0x8] sm:$0xff] %vm300, %v709
    %713 = vrot.lane.b32.xlu0 %v706, 64
    %v714 = vpop.permute.xlu0 %713
    %716 = vst.msk [vmem:[#allocation2 + $0x30] sm:$0xff] %vm505, %v714
    %v717 = vld [vmem:[#allocation4 + $0x20] sm:$0xff]
    %v718 = vld [vmem:[#allocation4 + $0x58] sm:$0xff]
    %v719 = vsel %vm300, %v709, 0
    %721 = vmatprep.subr.mxu0 0.0
    %722 = vmatpush1.msra.mxu0 %v290
    %723 = vmatprep.subr.mxu0 0.0
    %724 = vmatpush1.msra.mxu0 %v291
    %725 = vmatprep.subr.mxu0 0.0
    %726 = vmatpush1.msra.mxu0 %v292
    %727 = vmatprep.subr.mxu0 0.0
    %728 = vmatpush1.msra.mxu0 %v293
    %729 = vmatprep.subr.mxu0 0.0
    %730 = vmatpush1.msra.mxu0 0.0
    %731 = vmatprep.subr.mxu0 0.0
    %732 = vmatpush1.msra.mxu0 0.0
    %733 = vmatprep.subr.mxu0 0.0
    %734 = vmatpush1.msra.mxu0 0.0
    %735 = vmatprep.subr.mxu0 0.0
    %736 = vmatpush1.msra.mxu0 0.0
    %737 = vmatprep.subr.mxu0 0.0
    %738 = vmatpush1.msra.mxu0 0.0
    %739 = vmatprep.subr.mxu0 0.0
    %740 = vmatpush1.msra.mxu0 0.0
    %741 = vmatprep.subr.mxu0 0.0
    %742 = vmatpush1.msra.mxu0 0.0
    %743 = vmatprep.subr.mxu0 0.0
    %744 = vmatpush1.msra.mxu0 0.0
    %745 = vmatprep.subr.mxu0 0.0
    %746 = vmatpush1.msra.mxu0 0.0
    %747 = vmatprep.subr.mxu0 0.0
    %748 = vmatpush1.msra.mxu0 0.0
    %749 = vmatprep.subr.mxu0 0.0
    %750 = vmatpush1.msra.mxu0 0.0
    %751 = vmatprep.subr.mxu0 0.0
    %752 = vmatpush1.msra.mxu0 0.0
    %753 = vmatprep.subr.mxu0 0.0
    %754 = vmatpush1.msra.mxu0 0.0
    %755 = vmatprep.subr.mxu0 0.0
    %756 = vmatpush1.msra.mxu0 0.0
    %757 = vmatprep.subr.mxu0 0.0
    %758 = vmatpush1.msra.mxu0 0.0
    %759 = vmatprep.subr.mxu0 0.0
    %760 = vmatpush1.msra.mxu0 0.0
    %761 = vmatprep.subr.mxu0 0.0
    %762 = vmatpush1.msra.mxu0 0.0
    %763 = vmatprep.subr.mxu0 0.0
    %764 = vmatpush1.msra.mxu0 0.0
    %765 = vmatprep.subr.mxu0 0.0
    %766 = vmatpush1.msra.mxu0 0.0
    %767 = vmatprep.subr.mxu0 0.0
    %768 = vmatpush1.msra.mxu0 0.0
    %769 = vmatprep.subr.mxu0 0.0
    %770 = vmatpush1.msra.mxu0 0.0
    %771 = vmatprep.subr.mxu0 0.0
    %772 = vmatpush1.msra.mxu0 0.0
    %773 = vmatprep.subr.mxu0 0.0
    %774 = vmatpush1.msra.mxu0 0.0
    %775 = vmatprep.subr.mxu0 0.0
    %776 = vmatpush1.msra.mxu0 0.0
    %777 = vmatprep.subr.mxu0 0.0
    %778 = vmatpush1.msra.mxu0 0.0
    %779 = vmatprep.subr.mxu0 0.0
    %780 = vmatpush1.msra.mxu0 0.0
    %781 = vmatprep.subr.mxu0 0.0
    %782 = vmatpush1.msra.mxu0 0.0
    %783 = vmatprep.subr.mxu0 0.0
    %784 = vmatpush1.msra.mxu0 0.0
    %785 = vmatprep.mubr.f32.mxu0 0.0
    %786 = vmatmul.mubr.f32.gmra.mrb[0].mxu0 %v719
    %v787 = vpop.f32.mrb[0].mxu0
    %v788 = vadd.f32 0.0, %v787
    %v789 = vpop.f32.mrb[0].mxu0
    %790 = vdwg.mxu0
    %v791 = vadd.f32 %v717, %v788
    %v792 = vtanh.pop %v791
    %v793 = vxor.u32 %v791, 2147483648
    %v794 = vmul.f32 %v793, 1.442695
    %v795 = vpow.pop %v794
    %v796 = vadd.f32 %v795, 1.0
    %v797 = vrcp.pop %v796
    %v798 = vmul.f32 1.0, %v797
    %v799 = vsel %vm111, %v792, %v798
    %v800 = vmul.f32 %v799, %v600
    %802 = vrot.lane.b32.xlu0 %v799, 64
    %v803 = vpop.permute.xlu0 %802
    %v805 = vmul.f32 %v799, %v803
    %807 = vrot.lane.b32.xlu0 %v805, 32
    %v808 = vpop.permute.xlu0 %807
    %v810 = vadd.f32 %v800, %v808
    %v811 = vtanh.pop %v810
    %813 = vrot.lane.b32.xlu0 %v811, 64
    %v814 = vpop.permute.xlu0 %813
    %v816 = vmul.f32 %v799, %v814
    %817 = vrot.lane.b32.xlu0 %v706, 32
    %v818 = vpop.permute.xlu0 %817
    %v819 = vsel %vm300, %v818, 0
    %821 = vmatprep.subr.mxu0 0.0
    %822 = vmatpush1.msra.mxu0 %v294
    %823 = vmatprep.subr.mxu0 0.0
    %824 = vmatpush1.msra.mxu0 %v295
    %825 = vmatprep.subr.mxu0 0.0
    %826 = vmatpush1.msra.mxu0 %v296
    %827 = vmatprep.subr.mxu0 0.0
    %828 = vmatpush1.msra.mxu0 %v297
    %829 = vmatprep.subr.mxu0 0.0
    %830 = vmatpush1.msra.mxu0 0.0
    %831 = vmatprep.subr.mxu0 0.0
    %832 = vmatpush1.msra.mxu0 0.0
    %833 = vmatprep.subr.mxu0 0.0
    %834 = vmatpush1.msra.mxu0 0.0
    %835 = vmatprep.subr.mxu0 0.0
    %836 = vmatpush1.msra.mxu0 0.0
    %837 = vmatprep.subr.mxu0 0.0
    %838 = vmatpush1.msra.mxu0 0.0
    %839 = vmatprep.subr.mxu0 0.0
    %840 = vmatpush1.msra.mxu0 0.0
    %841 = vmatprep.subr.mxu0 0.0
    %842 = vmatpush1.msra.mxu0 0.0
    %843 = vmatprep.subr.mxu0 0.0
    %844 = vmatpush1.msra.mxu0 0.0
    %845 = vmatprep.subr.mxu0 0.0
    %846 = vmatpush1.msra.mxu0 0.0
    %847 = vmatprep.subr.mxu0 0.0
    %848 = vmatpush1.msra.mxu0 0.0
    %849 = vmatprep.subr.mxu0 0.0
    %850 = vmatpush1.msra.mxu0 0.0
    %851 = vmatprep.subr.mxu0 0.0
    %852 = vmatpush1.msra.mxu0 0.0
    %853 = vmatprep.subr.mxu0 0.0
    %854 = vmatpush1.msra.mxu0 0.0
    %855 = vmatprep.subr.mxu0 0.0
    %856 = vmatpush1.msra.mxu0 0.0
    %857 = vmatprep.subr.mxu0 0.0
    %858 = vmatpush1.msra.mxu0 0.0
    %859 = vmatprep.subr.mxu0 0.0
    %860 = vmatpush1.msra.mxu0 0.0
    %861 = vmatprep.subr.mxu0 0.0
    %862 = vmatpush1.msra.mxu0 0.0
    %863 = vmatprep.subr.mxu0 0.0
    %864 = vmatpush1.msra.mxu0 0.0
    %865 = vmatprep.subr.mxu0 0.0
    %866 = vmatpush1.msra.mxu0 0.0
    %867 = vmatprep.subr.mxu0 0.0
    %868 = vmatpush1.msra.mxu0 0.0
    %869 = vmatprep.subr.mxu0 0.0
    %870 = vmatpush1.msra.mxu0 0.0
    %871 = vmatprep.subr.mxu0 0.0
    %872 = vmatpush1.msra.mxu0 0.0
    %873 = vmatprep.subr.mxu0 0.0
    %874 = vmatpush1.msra.mxu0 0.0
    %875 = vmatprep.subr.mxu0 0.0
    %876 = vmatpush1.msra.mxu0 0.0
    %877 = vmatprep.subr.mxu0 0.0
    %878 = vmatpush1.msra.mxu0 0.0
    %879 = vmatprep.subr.mxu0 0.0
    %880 = vmatpush1.msra.mxu0 0.0
    %881 = vmatprep.subr.mxu0 0.0
    %882 = vmatpush1.msra.mxu0 0.0
    %883 = vmatprep.subr.mxu0 0.0
    %884 = vmatpush1.msra.mxu0 0.0
    %885 = vmatprep.mubr.f32.mxu0 0.0
    %886 = vmatmul.mubr.f32.gmra.mrb[0].mxu0 %v819
    %v887 = vpop.f32.mrb[0].mxu0
    %v888 = vadd.f32 0.0, %v887
    %v889 = vpop.f32.mrb[0].mxu0
    %890 = vdwg.mxu0
    %v891 = vadd.f32 %v718, %v888
    %v892 = vtanh.pop %v891
    %v893 = vxor.u32 %v891, 2147483648
    %v894 = vmul.f32 %v893, 1.442695
    %v895 = vpow.pop %v894
    %v896 = vadd.f32 %v895, 1.0
    %v897 = vrcp.pop %v896
    %v898 = vmul.f32 1.0, %v897
    %v899 = vsel %vm111, %v892, %v898
    %v900 = vmul.f32 %v899, %v700
    %902 = vrot.lane.b32.xlu0 %v899, 64
    %v903 = vpop.permute.xlu0 %902
    %v905 = vmul.f32 %v899, %v903
    %907 = vrot.lane.b32.xlu0 %v905, 32
    %v908 = vpop.permute.xlu0 %907
    %v910 = vadd.f32 %v900, %v908
    %v911 = vtanh.pop %v910
    %913 = vrot.lane.b32.xlu0 %v911, 64
    %v914 = vpop.permute.xlu0 %913
    %v916 = vmul.f32 %v899, %v914
    %918 = vrot.lane.b32.xlu0 %v816, 32
    %v919 = vpop.permute.xlu0 %918
    %921 = vst.msk [vmem:[#allocation2 + $0x10] sm:$0xff] %vm300, %v919
    %923 = vrot.lane.b32.xlu0 %v916, 64
    %v924 = vpop.permute.xlu0 %923
    %926 = vst.msk [vmem:[#allocation2 + $0x28] sm:$0xff] %vm505, %v924
    %v927 = vld [vmem:[#allocation4 + $0x30] sm:$0xff]
    %v928 = vld [vmem:[#allocation4 + $0x48] sm:$0xff]
    %v929 = vsel %vm300, %v919, 0
    %931 = vmatprep.subr.mxu0 0.0
    %932 = vmatpush1.msra.mxu0 %v290
    %933 = vmatprep.subr.mxu0 0.0
    %934 = vmatpush1.msra.mxu0 %v291
    %935 = vmatprep.subr.mxu0 0.0
    %936 = vmatpush1.msra.mxu0 %v292
    %937 = vmatprep.subr.mxu0 0.0
    %938 = vmatpush1.msra.mxu0 %v293
    %939 = vmatprep.subr.mxu0 0.0
    %940 = vmatpush1.msra.mxu0 0.0
    %941 = vmatprep.subr.mxu0 0.0
    %942 = vmatpush1.msra.mxu0 0.0
    %943 = vmatprep.subr.mxu0 0.0
    %944 = vmatpush1.msra.mxu0 0.0
    %945 = vmatprep.subr.mxu0 0.0
    %946 = vmatpush1.msra.mxu0 0.0
    %947 = vmatprep.subr.mxu0 0.0
    %948 = vmatpush1.msra.mxu0 0.0
    %949 = vmatprep.subr.mxu0 0.0
    %950 = vmatpush1.msra.mxu0 0.0
    %951 = vmatprep.subr.mxu0 0.0
    %952 = vmatpush1.msra.mxu0 0.0
    %953 = vmatprep.subr.mxu0 0.0
    %954 = vmatpush1.msra.mxu0 0.0
    %955 = vmatprep.subr.mxu0 0.0
    %956 = vmatpush1.msra.mxu0 0.0
    %957 = vmatprep.subr.mxu0 0.0
    %958 = vmatpush1.msra.mxu0 0.0
    %959 = vmatprep.subr.mxu0 0.0
    %960 = vmatpush1.msra.mxu0 0.0
    %961 = vmatprep.subr.mxu0 0.0
    %962 = vmatpush1.msra.mxu0 0.0
    %963 = vmatprep.subr.mxu0 0.0
    %964 = vmatpush1.msra.mxu0 0.0
    %965 = vmatprep.subr.mxu0 0.0
    %966 = vmatpush1.msra.mxu0 0.0
    %967 = vmatprep.subr.mxu0 0.0
    %968 = vmatpush1.msra.mxu0 0.0
    %969 = vmatprep.subr.mxu0 0.0
    %970 = vmatpush1.msra.mxu0 0.0
    %971 = vmatprep.subr.mxu0 0.0
    %972 = vmatpush1.msra.mxu0 0.0
    %973 = vmatprep.subr.mxu0 0.0
    %974 = vmatpush1.msra.mxu0 0.0
    %975 = vmatprep.subr.mxu0 0.0
    %976 = vmatpush1.msra.mxu0 0.0
    %977 = vmatprep.subr.mxu0 0.0
    %978 = vmatpush1.msra.mxu0 0.0
    %979 = vmatprep.subr.mxu0 0.0
    %980 = vmatpush1.msra.mxu0 0.0
    %981 = vmatprep.subr.mxu0 0.0
    %982 = vmatpush1.msra.mxu0 0.0
    %983 = vmatprep.subr.mxu0 0.0
    %984 = vmatpush1.msra.mxu0 0.0
    %985 = vmatprep.subr.mxu0 0.0
    %986 = vmatpush1.msra.mxu0 0.0
    %987 = vmatprep.subr.mxu0 0.0
    %988 = vmatpush1.msra.mxu0 0.0
    %989 = vmatprep.subr.mxu0 0.0
    %990 = vmatpush1.msra.mxu0 0.0
    %991 = vmatprep.subr.mxu0 0.0
    %992 = vmatpush1.msra.mxu0 0.0
    %993 = vmatprep.subr.mxu0 0.0
    %994 = vmatpush1.msra.mxu0 0.0
    %995 = vmatprep.mubr.f32.mxu0 0.0
    %996 = vmatmul.mubr.f32.gmra.mrb[0].mxu0 %v929
    %v997 = vpop.f32.mrb[0].mxu0
    %v998 = vadd.f32 0.0, %v997
    %v999 = vpop.f32.mrb[0].mxu0
    %1000 = vdwg.mxu0
    %v1001 = vadd.f32 %v927, %v998
    %v1002 = vtanh.pop %v1001
    %v1003 = vxor.u32 %v1001, 2147483648
    %v1004 = vmul.f32 %v1003, 1.442695
    %v1005 = vpow.pop %v1004
    %v1006 = vadd.f32 %v1005, 1.0
    %v1007 = vrcp.pop %v1006
    %v1008 = vmul.f32 1.0, %v1007
    %v1009 = vsel %vm111, %v1002, %v1008
    %v1010 = vmul.f32 %v1009, %v810
    %1012 = vrot.lane.b32.xlu0 %v1009, 64
    %v1013 = vpop.permute.xlu0 %1012
    %v1015 = vmul.f32 %v1009, %v1013
    %1017 = vrot.lane.b32.xlu0 %v1015, 32
    %v1018 = vpop.permute.xlu0 %1017
    %v1020 = vadd.f32 %v1010, %v1018
    %v1021 = vtanh.pop %v1020
    %1023 = vrot.lane.b32.xlu0 %v1021, 64
    %v1024 = vpop.permute.xlu0 %1023
    %v1026 = vmul.f32 %v1009, %v1024
    %1027 = vrot.lane.b32.xlu0 %v916, 32
    %v1028 = vpop.permute.xlu0 %1027
    %v1029 = vsel %vm300, %v1028, 0
    %1031 = vmatprep.subr.mxu0 0.0
    %1032 = vmatpush1.msra.mxu0 %v294
    %1033 = vmatprep.subr.mxu0 0.0
    %1034 = vmatpush1.msra.mxu0 %v295
    %1035 = vmatprep.subr.mxu0 0.0
    %1036 = vmatpush1.msra.mxu0 %v296
    %1037 = vmatprep.subr.mxu0 0.0
    %1038 = vmatpush1.msra.mxu0 %v297
    %1039 = vmatprep.subr.mxu0 0.0
    %1040 = vmatpush1.msra.mxu0 0.0
    %1041 = vmatprep.subr.mxu0 0.0
    %1042 = vmatpush1.msra.mxu0 0.0
    %1043 = vmatprep.subr.mxu0 0.0
    %1044 = vmatpush1.msra.mxu0 0.0
    %1045 = vmatprep.subr.mxu0 0.0
    %1046 = vmatpush1.msra.mxu0 0.0
    %1047 = vmatprep.subr.mxu0 0.0
    %1048 = vmatpush1.msra.mxu0 0.0
    %1049 = vmatprep.subr.mxu0 0.0
    %1050 = vmatpush1.msra.mxu0 0.0
    %1051 = vmatprep.subr.mxu0 0.0
    %1052 = vmatpush1.msra.mxu0 0.0
    %1053 = vmatprep.subr.mxu0 0.0
    %1054 = vmatpush1.msra.mxu0 0.0
    %1055 = vmatprep.subr.mxu0 0.0
    %1056 = vmatpush1.msra.mxu0 0.0
    %1057 = vmatprep.subr.mxu0 0.0
    %1058 = vmatpush1.msra.mxu0 0.0
    %1059 = vmatprep.subr.mxu0 0.0
    %1060 = vmatpush1.msra.mxu0 0.0
    %1061 = vmatprep.subr.mxu0 0.0
    %1062 = vmatpush1.msra.mxu0 0.0
    %1063 = vmatprep.subr.mxu0 0.0
    %1064 = vmatpush1.msra.mxu0 0.0
    %1065 = vmatprep.subr.mxu0 0.0
    %1066 = vmatpush1.msra.mxu0 0.0
    %1067 = vmatprep.subr.mxu0 0.0
    %1068 = vmatpush1.msra.mxu0 0.0
    %1069 = vmatprep.subr.mxu0 0.0
    %1070 = vmatpush1.msra.mxu0 0.0
    %1071 = vmatprep.subr.mxu0 0.0
    %1072 = vmatpush1.msra.mxu0 0.0
    %1073 = vmatprep.subr.mxu0 0.0
    %1074 = vmatpush1.msra.mxu0 0.0
    %1075 = vmatprep.subr.mxu0 0.0
    %1076 = vmatpush1.msra.mxu0 0.0
    %1077 = vmatprep.subr.mxu0 0.0
    %1078 = vmatpush1.msra.mxu0 0.0
    %1079 = vmatprep.subr.mxu0 0.0
    %1080 = vmatpush1.msra.mxu0 0.0
    %1081 = vmatprep.subr.mxu0 0.0
    %1082 = vmatpush1.msra.mxu0 0.0
    %1083 = vmatprep.subr.mxu0 0.0
    %1084 = vmatpush1.msra.mxu0 0.0
    %1085 = vmatprep.subr.mxu0 0.0
    %1086 = vmatpush1.msra.mxu0 0.0
    %1087 = vmatprep.subr.mxu0 0.0
    %1088 = vmatpush1.msra.mxu0 0.0
    %1089 = vmatprep.subr.mxu0 0.0
    %1090 = vmatpush1.msra.mxu0 0.0
    %1091 = vmatprep.subr.mxu0 0.0
    %1092 = vmatpush1.msra.mxu0 0.0
    %1093 = vmatprep.subr.mxu0 0.0
    %1094 = vmatpush1.msra.mxu0 0.0
    %1095 = vmatprep.mubr.f32.mxu0 0.0
    %1096 = vmatmul.mubr.f32.gmra.mrb[0].mxu0 %v1029
    %v1097 = vpop.f32.mrb[0].mxu0
    %v1098 = vadd.f32 0.0, %v1097
    %v1099 = vpop.f32.mrb[0].mxu0
    %1100 = vdwg.mxu0
    %v1101 = vadd.f32 %v928, %v1098
    %v1102 = vtanh.pop %v1101
    %v1103 = vxor.u32 %v1101, 2147483648
    %v1104 = vmul.f32 %v1103, 1.442695
    %v1105 = vpow.pop %v1104
    %v1106 = vadd.f32 %v1105, 1.0
    %v1107 = vrcp.pop %v1106
    %v1108 = vmul.f32 1.0, %v1107
    %v1109 = vsel %vm111, %v1102, %v1108
    %v1110 = vmul.f32 %v1109, %v910
    %1112 = vrot.lane.b32.xlu0 %v1109, 64
    %v1113 = vpop.permute.xlu0 %1112
    %v1115 = vmul.f32 %v1109, %v1113
    %1117 = vrot.lane.b32.xlu0 %v1115, 32
    %v1118 = vpop.permute.xlu0 %1117
    %v1120 = vadd.f32 %v1110, %v1118
    %v1121 = vtanh.pop %v1120
    %1123 = vrot.lane.b32.xlu0 %v1121, 64
    %v1124 = vpop.permute.xlu0 %1123
    %v1126 = vmul.f32 %v1109, %v1124
    %1128 = vrot.lane.b32.xlu0 %v1026, 32
    %v1129 = vpop.permute.xlu0 %1128
    %1131 = vst.msk [vmem:[#allocation2 + $0x18] sm:$0xff] %vm300, %v1129
    %1133 = vrot.lane.b32.xlu0 %v1126, 64
    %v1134 = vpop.permute.xlu0 %1133
    %1136 = vst.msk [vmem:[#allocation2 + $0x20] sm:$0xff] %vm505, %v1134
    %v1137 = vld [vmem:[#allocation4 + $0x40] sm:$0xff]
    %v1138 = vld [vmem:[#allocation4 + $0x38] sm:$0xff]
    %v1139 = vsel %vm300, %v1129, 0
    %1141 = vmatprep.subr.mxu0 0.0
    %1142 = vmatpush1.msra.mxu0 %v290
    %1143 = vmatprep.subr.mxu0 0.0
    %1144 = vmatpush1.msra.mxu0 %v291
    %1145 = vmatprep.subr.mxu0 0.0
    %1146 = vmatpush1.msra.mxu0 %v292
    %1147 = vmatprep.subr.mxu0 0.0
    %1148 = vmatpush1.msra.mxu0 %v293
    %1149 = vmatprep.subr.mxu0 0.0
    %1150 = vmatpush1.msra.mxu0 0.0
    %1151 = vmatprep.subr.mxu0 0.0
    %1152 = vmatpush1.msra.mxu0 0.0
    %1153 = vmatprep.subr.mxu0 0.0
    %1154 = vmatpush1.msra.mxu0 0.0
    %1155 = vmatprep.subr.mxu0 0.0
    %1156 = vmatpush1.msra.mxu0 0.0
    %1157 = vmatprep.subr.mxu0 0.0
    %1158 = vmatpush1.msra.mxu0 0.0
    %1159 = vmatprep.subr.mxu0 0.0
    %1160 = vmatpush1.msra.mxu0 0.0
    %1161 = vmatprep.subr.mxu0 0.0
    %1162 = vmatpush1.msra.mxu0 0.0
    %1163 = vmatprep.subr.mxu0 0.0
    %1164 = vmatpush1.msra.mxu0 0.0
    %1165 = vmatprep.subr.mxu0 0.0
    %1166 = vmatpush1.msra.mxu0 0.0
    %1167 = vmatprep.subr.mxu0 0.0
    %1168 = vmatpush1.msra.mxu0 0.0
    %1169 = vmatprep.subr.mxu0 0.0
    %1170 = vmatpush1.msra.mxu0 0.0
    %1171 = vmatprep.subr.mxu0 0.0
    %1172 = vmatpush1.msra.mxu0 0.0
    %1173 = vmatprep.subr.mxu0 0.0
    %1174 = vmatpush1.msra.mxu0 0.0
    %1175 = vmatprep.subr.mxu0 0.0
    %1176 = vmatpush1.msra.mxu0 0.0
    %1177 = vmatprep.subr.mxu0 0.0
    %1178 = vmatpush1.msra.mxu0 0.0
    %1179 = vmatprep.subr.mxu0 0.0
    %1180 = vmatpush1.msra.mxu0 0.0
    %1181 = vmatprep.subr.mxu0 0.0
    %1182 = vmatpush1.msra.mxu0 0.0
    %1183 = vmatprep.subr.mxu0 0.0
    %1184 = vmatpush1.msra.mxu0 0.0
    %1185 = vmatprep.subr.mxu0 0.0
    %1186 = vmatpush1.msra.mxu0 0.0
    %1187 = vmatprep.subr.mxu0 0.0
    %1188 = vmatpush1.msra.mxu0 0.0
    %1189 = vmatprep.subr.mxu0 0.0
    %1190 = vmatpush1.msra.mxu0 0.0
    %1191 = vmatprep.subr.mxu0 0.0
    %1192 = vmatpush1.msra.mxu0 0.0
    %1193 = vmatprep.subr.mxu0 0.0
    %1194 = vmatpush1.msra.mxu0 0.0
    %1195 = vmatprep.subr.mxu0 0.0
    %1196 = vmatpush1.msra.mxu0 0.0
    %1197 = vmatprep.subr.mxu0 0.0
    %1198 = vmatpush1.msra.mxu0 0.0
    %1199 = vmatprep.subr.mxu0 0.0
    %1200 = vmatpush1.msra.mxu0 0.0
    %1201 = vmatprep.subr.mxu0 0.0
    %1202 = vmatpush1.msra.mxu0 0.0
    %1203 = vmatprep.subr.mxu0 0.0
    %1204 = vmatpush1.msra.mxu0 0.0
    %1205 = vmatprep.mubr.f32.mxu0 0.0
    %1206 = vmatmul.mubr.f32.gmra.mrb[0].mxu0 %v1139
    %v1207 = vpop.f32.mrb[0].mxu0
    %v1208 = vadd.f32 0.0, %v1207
    %v1209 = vpop.f32.mrb[0].mxu0
    %1210 = vdwg.mxu0
    %v1211 = vadd.f32 %v1137, %v1208
    %v1212 = vtanh.pop %v1211
    %v1213 = vxor.u32 %v1211, 2147483648
    %v1214 = vmul.f32 %v1213, 1.442695
    %v1215 = vpow.pop %v1214
    %v1216 = vadd.f32 %v1215, 1.0
    %v1217 = vrcp.pop %v1216
    %v1218 = vmul.f32 1.0, %v1217
    %v1219 = vsel %vm111, %v1212, %v1218
    %v1220 = vmul.f32 %v1219, %v1020
    %1222 = vrot.lane.b32.xlu0 %v1219, 64
    %v1223 = vpop.permute.xlu0 %1222
    %v1225 = vmul.f32 %v1219, %v1223
    %1227 = vrot.lane.b32.xlu0 %v1225, 32
    %v1228 = vpop.permute.xlu0 %1227
    %v1230 = vadd.f32 %v1220, %v1228
    %v1231 = vtanh.pop %v1230
    %1233 = vrot.lane.b32.xlu0 %v1231, 64
    %v1234 = vpop.permute.xlu0 %1233
    %v1236 = vmul.f32 %v1219, %v1234
    %1237 = vrot.lane.b32.xlu0 %v1126, 32
    %v1238 = vpop.permute.xlu0 %1237
    %v1239 = vsel %vm300, %v1238, 0
    %1241 = vmatprep.subr.mxu0 0.0
    %1242 = vmatpush1.msra.mxu0 %v294
    %1243 = vmatprep.subr.mxu0 0.0
    %1244 = vmatpush1.msra.mxu0 %v295
    %1245 = vmatprep.subr.mxu0 0.0
    %1246 = vmatpush1.msra.mxu0 %v296
    %1247 = vmatprep.subr.mxu0 0.0
    %1248 = vmatpush1.msra.mxu0 %v297
    %1249 = vmatprep.subr.mxu0 0.0
    %1250 = vmatpush1.msra.mxu0 0.0
    %1251 = vmatprep.subr.mxu0 0.0
    %1252 = vmatpush1.msra.mxu0 0.0
    %1253 = vmatprep.subr.mxu0 0.0
    %1254 = vmatpush1.msra.mxu0 0.0
    %1255 = vmatprep.subr.mxu0 0.0
    %1256 = vmatpush1.msra.mxu0 0.0
    %1257 = vmatprep.subr.mxu0 0.0
    %1258 = vmatpush1.msra.mxu0 0.0
    %1259 = vmatprep.subr.mxu0 0.0
    %1260 = vmatpush1.msra.mxu0 0.0
    %1261 = vmatprep.subr.mxu0 0.0
    %1262 = vmatpush1.msra.mxu0 0.0
    %1263 = vmatprep.subr.mxu0 0.0
    %1264 = vmatpush1.msra.mxu0 0.0
    %1265 = vmatprep.subr.mxu0 0.0
    %1266 = vmatpush1.msra.mxu0 0.0
    %1267 = vmatprep.subr.mxu0 0.0
    %1268 = vmatpush1.msra.mxu0 0.0
    %1269 = vmatprep.subr.mxu0 0.0
    %1270 = vmatpush1.msra.mxu0 0.0
    %1271 = vmatprep.subr.mxu0 0.0
    %1272 = vmatpush1.msra.mxu0 0.0
    %1273 = vmatprep.subr.mxu0 0.0
    %1274 = vmatpush1.msra.mxu0 0.0
    %1275 = vmatprep.subr.mxu0 0.0
    %1276 = vmatpush1.msra.mxu0 0.0
    %1277 = vmatprep.subr.mxu0 0.0
    %1278 = vmatpush1.msra.mxu0 0.0
    %1279 = vmatprep.subr.mxu0 0.0
    %1280 = vmatpush1.msra.mxu0 0.0
    %1281 = vmatprep.subr.mxu0 0.0
    %1282 = vmatpush1.msra.mxu0 0.0
    %1283 = vmatprep.subr.mxu0 0.0
    %1284 = vmatpush1.msra.mxu0 0.0
    %1285 = vmatprep.subr.mxu0 0.0
    %1286 = vmatpush1.msra.mxu0 0.0
    %1287 = vmatprep.subr.mxu0 0.0
    %1288 = vmatpush1.msra.mxu0 0.0
    %1289 = vmatprep.subr.mxu0 0.0
    %1290 = vmatpush1.msra.mxu0 0.0
    %1291 = vmatprep.subr.mxu0 0.0
    %1292 = vmatpush1.msra.mxu0 0.0
    %1293 = vmatprep.subr.mxu0 0.0
    %1294 = vmatpush1.msra.mxu0 0.0
    %1295 = vmatprep.subr.mxu0 0.0
    %1296 = vmatpush1.msra.mxu0 0.0
    %1297 = vmatprep.subr.mxu0 0.0
    %1298 = vmatpush1.msra.mxu0 0.0
    %1299 = vmatprep.subr.mxu0 0.0
    %1300 = vmatpush1.msra.mxu0 0.0
    %1301 = vmatprep.subr.mxu0 0.0
    %1302 = vmatpush1.msra.mxu0 0.0
    %1303 = vmatprep.subr.mxu0 0.0
    %1304 = vmatpush1.msra.mxu0 0.0
    %1305 = vmatprep.mubr.f32.mxu0 0.0
    %1306 = vmatmul.mubr.f32.gmra.mrb[0].mxu0 %v1239
    %v1307 = vpop.f32.mrb[0].mxu0
    %v1308 = vadd.f32 0.0, %v1307
    %v1309 = vpop.f32.mrb[0].mxu0
    %1310 = vdwg.mxu0
    %v1311 = vadd.f32 %v1138, %v1308
    %v1312 = vtanh.pop %v1311
    %v1313 = vxor.u32 %v1311, 2147483648
    %v1314 = vmul.f32 %v1313, 1.442695
    %v1315 = vpow.pop %v1314
    %v1316 = vadd.f32 %v1315, 1.0
    %v1317 = vrcp.pop %v1316
    %v1318 = vmul.f32 1.0, %v1317
    %v1319 = vsel %vm111, %v1312, %v1318
    %v1320 = vmul.f32 %v1319, %v1120
    %1322 = vrot.lane.b32.xlu0 %v1319, 64
    %v1323 = vpop.permute.xlu0 %1322
    %v1325 = vmul.f32 %v1319, %v1323
    %1327 = vrot.lane.b32.xlu0 %v1325, 32
    %v1328 = vpop.permute.xlu0 %1327
    %v1330 = vadd.f32 %v1320, %v1328
    %v1331 = vtanh.pop %v1330
    %1333 = vrot.lane.b32.xlu0 %v1331, 64
    %v1334 = vpop.permute.xlu0 %1333
    %v1336 = vmul.f32 %v1319, %v1334
    %1338 = vrot.lane.b32.xlu0 %v1236, 32
    %v1339 = vpop.permute.xlu0 %1338
    %1341 = vst.msk [vmem:[#allocation2 + $0x20] sm:$0xff] %vm300, %v1339
    %1343 = vrot.lane.b32.xlu0 %v1336, 64
    %v1344 = vpop.permute.xlu0 %1343
    %1346 = vst.msk [vmem:[#allocation2 + $0x18] sm:$0xff] %vm505, %v1344
    %v1347 = vld [vmem:[#allocation4 + $0x50] sm:$0xff]
    %v1348 = vld [vmem:[#allocation4 + $0x28] sm:$0xff]
    %v1349 = vsel %vm300, %v1339, 0
    %1351 = vmatprep.subr.mxu0 0.0
    %1352 = vmatpush1.msra.mxu0 %v290
    %1353 = vmatprep.subr.mxu0 0.0
    %1354 = vmatpush1.msra.mxu0 %v291
    %1355 = vmatprep.subr.mxu0 0.0
    %1356 = vmatpush1.msra.mxu0 %v292
    %1357 = vmatprep.subr.mxu0 0.0
    %1358 = vmatpush1.msra.mxu0 %v293
    %1359 = vmatprep.subr.mxu0 0.0
    %1360 = vmatpush1.msra.mxu0 0.0
    %1361 = vmatprep.subr.mxu0 0.0
    %1362 = vmatpush1.msra.mxu0 0.0
    %1363 = vmatprep.subr.mxu0 0.0
    %1364 = vmatpush1.msra.mxu0 0.0
    %1365 = vmatprep.subr.mxu0 0.0
    %1366 = vmatpush1.msra.mxu0 0.0
    %1367 = vmatprep.subr.mxu0 0.0
    %1368 = vmatpush1.msra.mxu0 0.0
    %1369 = vmatprep.subr.mxu0 0.0
    %1370 = vmatpush1.msra.mxu0 0.0
    %1371 = vmatprep.subr.mxu0 0.0
    %1372 = vmatpush1.msra.mxu0 0.0
    %1373 = vmatprep.subr.mxu0 0.0
    %1374 = vmatpush1.msra.mxu0 0.0
    %1375 = vmatprep.subr.mxu0 0.0
    %1376 = vmatpush1.msra.mxu0 0.0
    %1377 = vmatprep.subr.mxu0 0.0
    %1378 = vmatpush1.msra.mxu0 0.0
    %1379 = vmatprep.subr.mxu0 0.0
    %1380 = vmatpush1.msra.mxu0 0.0
    %1381 = vmatprep.subr.mxu0 0.0
    %1382 = vmatpush1.msra.mxu0 0.0
    %1383 = vmatprep.subr.mxu0 0.0
    %1384 = vmatpush1.msra.mxu0 0.0
    %1385 = vmatprep.subr.mxu0 0.0
    %1386 = vmatpush1.msra.mxu0 0.0
    %1387 = vmatprep.subr.mxu0 0.0
    %1388 = vmatpush1.msra.mxu0 0.0
    %1389 = vmatprep.subr.mxu0 0.0
    %1390 = vmatpush1.msra.mxu0 0.0
    %1391 = vmatprep.subr.mxu0 0.0
    %1392 = vmatpush1.msra.mxu0 0.0
    %1393 = vmatprep.subr.mxu0 0.0
    %1394 = vmatpush1.msra.mxu0 0.0
    %1395 = vmatprep.subr.mxu0 0.0
    %1396 = vmatpush1.msra.mxu0 0.0
    %1397 = vmatprep.subr.mxu0 0.0
    %1398 = vmatpush1.msra.mxu0 0.0
    %1399 = vmatprep.subr.mxu0 0.0
    %1400 = vmatpush1.msra.mxu0 0.0
    %1401 = vmatprep.subr.mxu0 0.0
    %1402 = vmatpush1.msra.mxu0 0.0
    %1403 = vmatprep.subr.mxu0 0.0
    %1404 = vmatpush1.msra.mxu0 0.0
    %1405 = vmatprep.subr.mxu0 0.0
    %1406 = vmatpush1.msra.mxu0 0.0
    %1407 = vmatprep.subr.mxu0 0.0
    %1408 = vmatpush1.msra.mxu0 0.0
    %1409 = vmatprep.subr.mxu0 0.0
    %1410 = vmatpush1.msra.mxu0 0.0
    %1411 = vmatprep.subr.mxu0 0.0
    %1412 = vmatpush1.msra.mxu0 0.0
    %1413 = vmatprep.subr.mxu0 0.0
    %1414 = vmatpush1.msra.mxu0 0.0
    %1415 = vmatprep.mubr.f32.mxu0 0.0
    %1416 = vmatmul.mubr.f32.gmra.mrb[0].mxu0 %v1349
    %v1417 = vpop.f32.mrb[0].mxu0
    %v1418 = vadd.f32 0.0, %v1417
    %v1419 = vpop.f32.mrb[0].mxu0
    %1420 = vdwg.mxu0
    %v1421 = vadd.f32 %v1347, %v1418
    %v1422 = vtanh.pop %v1421
    %v1423 = vxor.u32 %v1421, 2147483648
    %v1424 = vmul.f32 %v1423, 1.442695
    %v1425 = vpow.pop %v1424
    %v1426 = vadd.f32 %v1425, 1.0
    %v1427 = vrcp.pop %v1426
    %v1428 = vmul.f32 1.0, %v1427
    %v1429 = vsel %vm111, %v1422, %v1428
    %v1430 = vmul.f32 %v1429, %v1230
    %1432 = vrot.lane.b32.xlu0 %v1429, 64
    %v1433 = vpop.permute.xlu0 %1432
    %v1435 = vmul.f32 %v1429, %v1433
    %1437 = vrot.lane.b32.xlu0 %v1435, 32
    %v1438 = vpop.permute.xlu0 %1437
    %v1440 = vadd.f32 %v1430, %v1438
    %v1441 = vtanh.pop %v1440
    %1443 = vrot.lane.b32.xlu0 %v1441, 64
    %v1444 = vpop.permute.xlu0 %1443
    %v1446 = vmul.f32 %v1429, %v1444
    %1447 = vrot.lane.b32.xlu0 %v1336, 32
    %v1448 = vpop.permute.xlu0 %1447
    %v1449 = vsel %vm300, %v1448, 0
    %1451 = vmatprep.subr.mxu0 0.0
    %1452 = vmatpush1.msra.mxu0 %v294
    %1453 = vmatprep.subr.mxu0 0.0
    %1454 = vmatpush1.msra.mxu0 %v295
    %1455 = vmatprep.subr.mxu0 0.0
    %1456 = vmatpush1.msra.mxu0 %v296
    %1457 = vmatprep.subr.mxu0 0.0
    %1458 = vmatpush1.msra.mxu0 %v297
    %1459 = vmatprep.subr.mxu0 0.0
    %1460 = vmatpush1.msra.mxu0 0.0
    %1461 = vmatprep.subr.mxu0 0.0
    %1462 = vmatpush1.msra.mxu0 0.0
    %1463 = vmatprep.subr.mxu0 0.0
    %1464 = vmatpush1.msra.mxu0 0.0
    %1465 = vmatprep.subr.mxu0 0.0
    %1466 = vmatpush1.msra.mxu0 0.0
    %1467 = vmatprep.subr.mxu0 0.0
    %1468 = vmatpush1.msra.mxu0 0.0
    %1469 = vmatprep.subr.mxu0 0.0
    %1470 = vmatpush1.msra.mxu0 0.0
    %1471 = vmatprep.subr.mxu0 0.0
    %1472 = vmatpush1.msra.mxu0 0.0
    %1473 = vmatprep.subr.mxu0 0.0
    %1474 = vmatpush1.msra.mxu0 0.0
    %1475 = vmatprep.subr.mxu0 0.0
    %1476 = vmatpush1.msra.mxu0 0.0
    %1477 = vmatprep.subr.mxu0 0.0
    %1478 = vmatpush1.msra.mxu0 0.0
    %1479 = vmatprep.subr.mxu0 0.0
    %1480 = vmatpush1.msra.mxu0 0.0
    %1481 = vmatprep.subr.mxu0 0.0
    %1482 = vmatpush1.msra.mxu0 0.0
    %1483 = vmatprep.subr.mxu0 0.0
    %1484 = vmatpush1.msra.mxu0 0.0
    %1485 = vmatprep.subr.mxu0 0.0
    %1486 = vmatpush1.msra.mxu0 0.0
    %1487 = vmatprep.subr.mxu0 0.0
    %1488 = vmatpush1.msra.mxu0 0.0
    %1489 = vmatprep.subr.mxu0 0.0
    %1490 = vmatpush1.msra.mxu0 0.0
    %1491 = vmatprep.subr.mxu0 0.0
    %1492 = vmatpush1.msra.mxu0 0.0
    %1493 = vmatprep.subr.mxu0 0.0
    %1494 = vmatpush1.msra.mxu0 0.0
    %1495 = vmatprep.subr.mxu0 0.0
    %1496 = vmatpush1.msra.mxu0 0.0
    %1497 = vmatprep.subr.mxu0 0.0
    %1498 = vmatpush1.msra.mxu0 0.0
    %1499 = vmatprep.subr.mxu0 0.0
    %1500 = vmatpush1.msra.mxu0 0.0
    %1501 = vmatprep.subr.mxu0 0.0
    %1502 = vmatpush1.msra.mxu0 0.0
    %1503 = vmatprep.subr.mxu0 0.0
    %1504 = vmatpush1.msra.mxu0 0.0
    %1505 = vmatprep.subr.mxu0 0.0
    %1506 = vmatpush1.msra.mxu0 0.0
    %1507 = vmatprep.subr.mxu0 0.0
    %1508 = vmatpush1.msra.mxu0 0.0
    %1509 = vmatprep.subr.mxu0 0.0
    %1510 = vmatpush1.msra.mxu0 0.0
    %1511 = vmatprep.subr.mxu0 0.0
    %1512 = vmatpush1.msra.mxu0 0.0
    %1513 = vmatprep.subr.mxu0 0.0
    %1514 = vmatpush1.msra.mxu0 0.0
    %1515 = vmatprep.mubr.f32.mxu0 0.0
    %1516 = vmatmul.mubr.f32.gmra.mrb[0].mxu0 %v1449
    %v1517 = vpop.f32.mrb[0].mxu0
    %v1518 = vadd.f32 0.0, %v1517
    %v1519 = vpop.f32.mrb[0].mxu0
    %1520 = vdwg.mxu0
    %v1521 = vadd.f32 %v1348, %v1518
    %v1522 = vtanh.pop %v1521
    %v1523 = vxor.u32 %v1521, 2147483648
    %v1524 = vmul.f32 %v1523, 1.442695
    %v1525 = vpow.pop %v1524
    %v1526 = vadd.f32 %v1525, 1.0
    %v1527 = vrcp.pop %v1526
    %v1528 = vmul.f32 1.0, %v1527
    %v1529 = vsel %vm111, %v1522, %v1528
    %v1530 = vmul.f32 %v1529, %v1330
    %1532 = vrot.lane.b32.xlu0 %v1529, 64
    %v1533 = vpop.permute.xlu0 %1532
    %v1535 = vmul.f32 %v1529, %v1533
    %1537 = vrot.lane.b32.xlu0 %v1535, 32
    %v1538 = vpop.permute.xlu0 %1537
    %v1540 = vadd.f32 %v1530, %v1538
    %v1541 = vtanh.pop %v1540
    %1543 = vrot.lane.b32.xlu0 %v1541, 64
    %v1544 = vpop.permute.xlu0 %1543
    %v1546 = vmul.f32 %v1529, %v1544
    %1548 = vrot.lane.b32.xlu0 %v1446, 32
    %v1549 = vpop.permute.xlu0 %1548
    %1551 = vst.msk [vmem:[#allocation2 + $0x28] sm:$0xff] %vm300, %v1549
    %1553 = vrot.lane.b32.xlu0 %v1546, 64
    %v1554 = vpop.permute.xlu0 %1553
    %1556 = vst.msk [vmem:[#allocation2 + $0x10] sm:$0xff] %vm505, %v1554
    %v1557 = vld [vmem:[#allocation4 + $0x60] sm:$0xff]
    %v1558 = vld [vmem:[#allocation4 + $0x18] sm:$0xff]
    %v1559 = vsel %vm300, %v1549, 0
    %1561 = vmatprep.subr.mxu0 0.0
    %1562 = vmatpush1.msra.mxu0 %v290
    %1563 = vmatprep.subr.mxu0 0.0
    %1564 = vmatpush1.msra.mxu0 %v291
    %1565 = vmatprep.subr.mxu0 0.0
    %1566 = vmatpush1.msra.mxu0 %v292
    %1567 = vmatprep.subr.mxu0 0.0
    %1568 = vmatpush1.msra.mxu0 %v293
    %1569 = vmatprep.subr.mxu0 0.0
    %1570 = vmatpush1.msra.mxu0 0.0
    %1571 = vmatprep.subr.mxu0 0.0
    %1572 = vmatpush1.msra.mxu0 0.0
    %1573 = vmatprep.subr.mxu0 0.0
    %1574 = vmatpush1.msra.mxu0 0.0
    %1575 = vmatprep.subr.mxu0 0.0
    %1576 = vmatpush1.msra.mxu0 0.0
    %1577 = vmatprep.subr.mxu0 0.0
    %1578 = vmatpush1.msra.mxu0 0.0
    %1579 = vmatprep.subr.mxu0 0.0
    %1580 = vmatpush1.msra.mxu0 0.0
    %1581 = vmatprep.subr.mxu0 0.0
    %1582 = vmatpush1.msra.mxu0 0.0
    %1583 = vmatprep.subr.mxu0 0.0
    %1584 = vmatpush1.msra.mxu0 0.0
    %1585 = vmatprep.subr.mxu0 0.0
    %1586 = vmatpush1.msra.mxu0 0.0
    %1587 = vmatprep.subr.mxu0 0.0
    %1588 = vmatpush1.msra.mxu0 0.0
    %1589 = vmatprep.subr.mxu0 0.0
    %1590 = vmatpush1.msra.mxu0 0.0
    %1591 = vmatprep.subr.mxu0 0.0
    %1592 = vmatpush1.msra.mxu0 0.0
    %1593 = vmatprep.subr.mxu0 0.0
    %1594 = vmatpush1.msra.mxu0 0.0
    %1595 = vmatprep.subr.mxu0 0.0
    %1596 = vmatpush1.msra.mxu0 0.0
    %1597 = vmatprep.subr.mxu0 0.0
    %1598 = vmatpush1.msra.mxu0 0.0
    %1599 = vmatprep.subr.mxu0 0.0
    %1600 = vmatpush1.msra.mxu0 0.0
    %1601 = vmatprep.subr.mxu0 0.0
    %1602 = vmatpush1.msra.mxu0 0.0
    %1603 = vmatprep.subr.mxu0 0.0
    %1604 = vmatpush1.msra.mxu0 0.0
    %1605 = vmatprep.subr.mxu0 0.0
    %1606 = vmatpush1.msra.mxu0 0.0
    %1607 = vmatprep.subr.mxu0 0.0
    %1608 = vmatpush1.msra.mxu0 0.0
    %1609 = vmatprep.subr.mxu0 0.0
    %1610 = vmatpush1.msra.mxu0 0.0
    %1611 = vmatprep.subr.mxu0 0.0
    %1612 = vmatpush1.msra.mxu0 0.0
    %1613 = vmatprep.subr.mxu0 0.0
    %1614 = vmatpush1.msra.mxu0 0.0
    %1615 = vmatprep.subr.mxu0 0.0
    %1616 = vmatpush1.msra.mxu0 0.0
    %1617 = vmatprep.subr.mxu0 0.0
    %1618 = vmatpush1.msra.mxu0 0.0
    %1619 = vmatprep.subr.mxu0 0.0
    %1620 = vmatpush1.msra.mxu0 0.0
    %1621 = vmatprep.subr.mxu0 0.0
    %1622 = vmatpush1.msra.mxu0 0.0
    %1623 = vmatprep.subr.mxu0 0.0
    %1624 = vmatpush1.msra.mxu0 0.0
    %1625 = vmatprep.mubr.f32.mxu0 0.0
    %1626 = vmatmul.mubr.f32.gmra.mrb[0].mxu0 %v1559
    %v1627 = vpop.f32.mrb[0].mxu0
    %v1628 = vadd.f32 0.0, %v1627
    %v1629 = vpop.f32.mrb[0].mxu0
    %1630 = vdwg.mxu0
    %v1631 = vadd.f32 %v1557, %v1628
    %v1632 = vtanh.pop %v1631
    %v1633 = vxor.u32 %v1631, 2147483648
    %v1634 = vmul.f32 %v1633, 1.442695
    %v1635 = vpow.pop %v1634
    %v1636 = vadd.f32 %v1635, 1.0
    %v1637 = vrcp.pop %v1636
    %v1638 = vmul.f32 1.0, %v1637
    %v1639 = vsel %vm111, %v1632, %v1638
    %v1640 = vmul.f32 %v1639, %v1440
    %1642 = vrot.lane.b32.xlu0 %v1639, 64
    %v1643 = vpop.permute.xlu0 %1642
    %v1645 = vmul.f32 %v1639, %v1643
    %1647 = vrot.lane.b32.xlu0 %v1645, 32
    %v1648 = vpop.permute.xlu0 %1647
    %v1650 = vadd.f32 %v1640, %v1648
    %v1651 = vtanh.pop %v1650
    %1653 = vrot.lane.b32.xlu0 %v1651, 64
    %v1654 = vpop.permute.xlu0 %1653
    %v1656 = vmul.f32 %v1639, %v1654
    %1657 = vrot.lane.b32.xlu0 %v1546, 32
    %v1658 = vpop.permute.xlu0 %1657
    %v1659 = vsel %vm300, %v1658, 0
    %1661 = vmatprep.subr.mxu0 0.0
    %1662 = vmatpush1.msra.mxu0 %v294
    %1663 = vmatprep.subr.mxu0 0.0
    %1664 = vmatpush1.msra.mxu0 %v295
    %1665 = vmatprep.subr.mxu0 0.0
    %1666 = vmatpush1.msra.mxu0 %v296
    %1667 = vmatprep.subr.mxu0 0.0
    %1668 = vmatpush1.msra.mxu0 %v297
    %1669 = vmatprep.subr.mxu0 0.0
    %1670 = vmatpush1.msra.mxu0 0.0
    %1671 = vmatprep.subr.mxu0 0.0
    %1672 = vmatpush1.msra.mxu0 0.0
    %1673 = vmatprep.subr.mxu0 0.0
    %1674 = vmatpush1.msra.mxu0 0.0
    %1675 = vmatprep.subr.mxu0 0.0
    %1676 = vmatpush1.msra.mxu0 0.0
    %1677 = vmatprep.subr.mxu0 0.0
    %1678 = vmatpush1.msra.mxu0 0.0
    %1679 = vmatprep.subr.mxu0 0.0
    %1680 = vmatpush1.msra.mxu0 0.0
    %1681 = vmatprep.subr.mxu0 0.0
    %1682 = vmatpush1.msra.mxu0 0.0
    %1683 = vmatprep.subr.mxu0 0.0
    %1684 = vmatpush1.msra.mxu0 0.0
    %1685 = vmatprep.subr.mxu0 0.0
    %1686 = vmatpush1.msra.mxu0 0.0
    %1687 = vmatprep.subr.mxu0 0.0
    %1688 = vmatpush1.msra.mxu0 0.0
    %1689 = vmatprep.subr.mxu0 0.0
    %1690 = vmatpush1.msra.mxu0 0.0
    %1691 = vmatprep.subr.mxu0 0.0
    %1692 = vmatpush1.msra.mxu0 0.0
    %1693 = vmatprep.subr.mxu0 0.0
    %1694 = vmatpush1.msra.mxu0 0.0
    %1695 = vmatprep.subr.mxu0 0.0
    %1696 = vmatpush1.msra.mxu0 0.0
    %1697 = vmatprep.subr.mxu0 0.0
    %1698 = vmatpush1.msra.mxu0 0.0
    %1699 = vmatprep.subr.mxu0 0.0
    %1700 = vmatpush1.msra.mxu0 0.0
    %1701 = vmatprep.subr.mxu0 0.0
    %1702 = vmatpush1.msra.mxu0 0.0
    %1703 = vmatprep.subr.mxu0 0.0
    %1704 = vmatpush1.msra.mxu0 0.0
    %1705 = vmatprep.subr.mxu0 0.0
    %1706 = vmatpush1.msra.mxu0 0.0
    %1707 = vmatprep.subr.mxu0 0.0
    %1708 = vmatpush1.msra.mxu0 0.0
    %1709 = vmatprep.subr.mxu0 0.0
    %1710 = vmatpush1.msra.mxu0 0.0
    %1711 = vmatprep.subr.mxu0 0.0
    %1712 = vmatpush1.msra.mxu0 0.0
    %1713 = vmatprep.subr.mxu0 0.0
    %1714 = vmatpush1.msra.mxu0 0.0
    %1715 = vmatprep.subr.mxu0 0.0
    %1716 = vmatpush1.msra.mxu0 0.0
    %1717 = vmatprep.subr.mxu0 0.0
    %1718 = vmatpush1.msra.mxu0 0.0
    %1719 = vmatprep.subr.mxu0 0.0
    %1720 = vmatpush1.msra.mxu0 0.0
    %1721 = vmatprep.subr.mxu0 0.0
    %1722 = vmatpush1.msra.mxu0 0.0
    %1723 = vmatprep.subr.mxu0 0.0
    %1724 = vmatpush1.msra.mxu0 0.0
    %1725 = vmatprep.mubr.f32.mxu0 0.0
    %1726 = vmatmul.mubr.f32.gmra.mrb[0].mxu0 %v1659
    %v1727 = vpop.f32.mrb[0].mxu0
    %v1728 = vadd.f32 0.0, %v1727
    %v1729 = vpop.f32.mrb[0].mxu0
    %1730 = vdwg.mxu0
    %v1731 = vadd.f32 %v1558, %v1728
    %v1732 = vtanh.pop %v1731
    %v1733 = vxor.u32 %v1731, 2147483648
    %v1734 = vmul.f32 %v1733, 1.442695
    %v1735 = vpow.pop %v1734
    %v1736 = vadd.f32 %v1735, 1.0
    %v1737 = vrcp.pop %v1736
    %v1738 = vmul.f32 1.0, %v1737
    %v1739 = vsel %vm111, %v1732, %v1738
    %v1740 = vmul.f32 %v1739, %v1540
    %1742 = vrot.lane.b32.xlu0 %v1739, 64
    %v1743 = vpop.permute.xlu0 %1742
    %v1745 = vmul.f32 %v1739, %v1743
    %1747 = vrot.lane.b32.xlu0 %v1745, 32
    %v1748 = vpop.permute.xlu0 %1747
    %v1750 = vadd.f32 %v1740, %v1748
    %v1751 = vtanh.pop %v1750
    %1753 = vrot.lane.b32.xlu0 %v1751, 64
    %v1754 = vpop.permute.xlu0 %1753
    %v1756 = vmul.f32 %v1739, %v1754
    %1758 = vrot.lane.b32.xlu0 %v1656, 32
    %v1759 = vpop.permute.xlu0 %1758
    %1761 = vst.msk [vmem:[#allocation2 + $0x30] sm:$0xff] %vm300, %v1759
    %1763 = vrot.lane.b32.xlu0 %v1756, 64
    %v1764 = vpop.permute.xlu0 %1763
    %1766 = vst.msk [vmem:[#allocation2 + $0x8] sm:$0xff] %vm505, %v1764
    %v1767 = vld [vmem:[#allocation4 + $0x70] sm:$0xff]
    %v1768 = vld [vmem:[#allocation4 + $0x8] sm:$0xff]
    %v1769 = vsel %vm300, %v1759, 0
    %1771 = vmatprep.subr.mxu0 0.0
    %1772 = vmatpush1.msra.mxu0 %v290
    %1773 = vmatprep.subr.mxu0 0.0
    %1774 = vmatpush1.msra.mxu0 %v291
    %1775 = vmatprep.subr.mxu0 0.0
    %1776 = vmatpush1.msra.mxu0 %v292
    %1777 = vmatprep.subr.mxu0 0.0
    %1778 = vmatpush1.msra.mxu0 %v293
    %1779 = vmatprep.subr.mxu0 0.0
    %1780 = vmatpush1.msra.mxu0 0.0
    %1781 = vmatprep.subr.mxu0 0.0
    %1782 = vmatpush1.msra.mxu0 0.0
    %1783 = vmatprep.subr.mxu0 0.0
    %1784 = vmatpush1.msra.mxu0 0.0
    %1785 = vmatprep.subr.mxu0 0.0
    %1786 = vmatpush1.msra.mxu0 0.0
    %1787 = vmatprep.subr.mxu0 0.0
    %1788 = vmatpush1.msra.mxu0 0.0
    %1789 = vmatprep.subr.mxu0 0.0
    %1790 = vmatpush1.msra.mxu0 0.0
    %1791 = vmatprep.subr.mxu0 0.0
    %1792 = vmatpush1.msra.mxu0 0.0
    %1793 = vmatprep.subr.mxu0 0.0
    %1794 = vmatpush1.msra.mxu0 0.0
    %1795 = vmatprep.subr.mxu0 0.0
    %1796 = vmatpush1.msra.mxu0 0.0
    %1797 = vmatprep.subr.mxu0 0.0
    %1798 = vmatpush1.msra.mxu0 0.0
    %1799 = vmatprep.subr.mxu0 0.0
    %1800 = vmatpush1.msra.mxu0 0.0
    %1801 = vmatprep.subr.mxu0 0.0
    %1802 = vmatpush1.msra.mxu0 0.0
    %1803 = vmatprep.subr.mxu0 0.0
    %1804 = vmatpush1.msra.mxu0 0.0
    %1805 = vmatprep.subr.mxu0 0.0
    %1806 = vmatpush1.msra.mxu0 0.0
    %1807 = vmatprep.subr.mxu0 0.0
    %1808 = vmatpush1.msra.mxu0 0.0
    %1809 = vmatprep.subr.mxu0 0.0
    %1810 = vmatpush1.msra.mxu0 0.0
    %1811 = vmatprep.subr.mxu0 0.0
    %1812 = vmatpush1.msra.mxu0 0.0
    %1813 = vmatprep.subr.mxu0 0.0
    %1814 = vmatpush1.msra.mxu0 0.0
    %1815 = vmatprep.subr.mxu0 0.0
    %1816 = vmatpush1.msra.mxu0 0.0
    %1817 = vmatprep.subr.mxu0 0.0
    %1818 = vmatpush1.msra.mxu0 0.0
    %1819 = vmatprep.subr.mxu0 0.0
    %1820 = vmatpush1.msra.mxu0 0.0
    %1821 = vmatprep.subr.mxu0 0.0
    %1822 = vmatpush1.msra.mxu0 0.0
    %1823 = vmatprep.subr.mxu0 0.0
    %1824 = vmatpush1.msra.mxu0 0.0
    %1825 = vmatprep.subr.mxu0 0.0
    %1826 = vmatpush1.msra.mxu0 0.0
    %1827 = vmatprep.subr.mxu0 0.0
    %1828 = vmatpush1.msra.mxu0 0.0
    %1829 = vmatprep.subr.mxu0 0.0
    %1830 = vmatpush1.msra.mxu0 0.0
    %1831 = vmatprep.subr.mxu0 0.0
    %1832 = vmatpush1.msra.mxu0 0.0
    %1833 = vmatprep.subr.mxu0 0.0
    %1834 = vmatpush1.msra.mxu0 0.0
    %1835 = vmatprep.mubr.f32.mxu0 0.0
    %1836 = vmatmul.mubr.f32.gmra.mrb[0].mxu0 %v1769
    %v1837 = vpop.f32.mrb[0].mxu0
    %v1838 = vadd.f32 0.0, %v1837
    %v1839 = vpop.f32.mrb[0].mxu0
    %1840 = vdwg.mxu0
    %v1841 = vadd.f32 %v1767, %v1838
    %v1842 = vtanh.pop %v1841
    %v1843 = vxor.u32 %v1841, 2147483648
    %v1844 = vmul.f32 %v1843, 1.442695
    %v1845 = vpow.pop %v1844
    %v1846 = vadd.f32 %v1845, 1.0
    %v1847 = vrcp.pop %v1846
    %v1848 = vmul.f32 1.0, %v1847
    %v1849 = vsel %vm111, %v1842, %v1848
    %v1850 = vmul.f32 %v1849, %v1650
    %1852 = vrot.lane.b32.xlu0 %v1849, 64
    %v1853 = vpop.permute.xlu0 %1852
    %v1855 = vmul.f32 %v1849, %v1853
    %1857 = vrot.lane.b32.xlu0 %v1855, 32
    %v1858 = vpop.permute.xlu0 %1857
    %v1860 = vadd.f32 %v1850, %v1858
    %v1861 = vtanh.pop %v1860
    %1863 = vrot.lane.b32.xlu0 %v1861, 64
    %v1864 = vpop.permute.xlu0 %1863
    %v1866 = vmul.f32 %v1849, %v1864
    %1867 = vrot.lane.b32.xlu0 %v1756, 32
    %v1868 = vpop.permute.xlu0 %1867
    %v1869 = vsel %vm300, %v1868, 0
    %1871 = vmatprep.subr.mxu0 0.0
    %1872 = vmatpush1.msra.mxu0 %v294
    %1873 = vmatprep.subr.mxu0 0.0
    %1874 = vmatpush1.msra.mxu0 %v295
    %1875 = vmatprep.subr.mxu0 0.0
    %1876 = vmatpush1.msra.mxu0 %v296
    %1877 = vmatprep.subr.mxu0 0.0
    %1878 = vmatpush1.msra.mxu0 %v297
    %1879 = vmatprep.subr.mxu0 0.0
    %1880 = vmatpush1.msra.mxu0 0.0
    %1881 = vmatprep.subr.mxu0 0.0
    %1882 = vmatpush1.msra.mxu0 0.0
    %1883 = vmatprep.subr.mxu0 0.0
    %1884 = vmatpush1.msra.mxu0 0.0
    %1885 = vmatprep.subr.mxu0 0.0
    %1886 = vmatpush1.msra.mxu0 0.0
    %1887 = vmatprep.subr.mxu0 0.0
    %1888 = vmatpush1.msra.mxu0 0.0
    %1889 = vmatprep.subr.mxu0 0.0
    %1890 = vmatpush1.msra.mxu0 0.0
    %1891 = vmatprep.subr.mxu0 0.0
    %1892 = vmatpush1.msra.mxu0 0.0
    %1893 = vmatprep.subr.mxu0 0.0
    %1894 = vmatpush1.msra.mxu0 0.0
    %1895 = vmatprep.subr.mxu0 0.0
    %1896 = vmatpush1.msra.mxu0 0.0
    %1897 = vmatprep.subr.mxu0 0.0
    %1898 = vmatpush1.msra.mxu0 0.0
    %1899 = vmatprep.subr.mxu0 0.0
    %1900 = vmatpush1.msra.mxu0 0.0
    %1901 = vmatprep.subr.mxu0 0.0
    %1902 = vmatpush1.msra.mxu0 0.0
    %1903 = vmatprep.subr.mxu0 0.0
    %1904 = vmatpush1.msra.mxu0 0.0
    %1905 = vmatprep.subr.mxu0 0.0
    %1906 = vmatpush1.msra.mxu0 0.0
    %1907 = vmatprep.subr.mxu0 0.0
    %1908 = vmatpush1.msra.mxu0 0.0
    %1909 = vmatprep.subr.mxu0 0.0
    %1910 = vmatpush1.msra.mxu0 0.0
    %1911 = vmatprep.subr.mxu0 0.0
    %1912 = vmatpush1.msra.mxu0 0.0
    %1913 = vmatprep.subr.mxu0 0.0
    %1914 = vmatpush1.msra.mxu0 0.0
    %1915 = vmatprep.subr.mxu0 0.0
    %1916 = vmatpush1.msra.mxu0 0.0
    %1917 = vmatprep.subr.mxu0 0.0
    %1918 = vmatpush1.msra.mxu0 0.0
    %1919 = vmatprep.subr.mxu0 0.0
    %1920 = vmatpush1.msra.mxu0 0.0
    %1921 = vmatprep.subr.mxu0 0.0
    %1922 = vmatpush1.msra.mxu0 0.0
    %1923 = vmatprep.subr.mxu0 0.0
    %1924 = vmatpush1.msra.mxu0 0.0
    %1925 = vmatprep.subr.mxu0 0.0
    %1926 = vmatpush1.msra.mxu0 0.0
    %1927 = vmatprep.subr.mxu0 0.0
    %1928 = vmatpush1.msra.mxu0 0.0
    %1929 = vmatprep.subr.mxu0 0.0
    %1930 = vmatpush1.msra.mxu0 0.0
    %1931 = vmatprep.subr.mxu0 0.0
    %1932 = vmatpush1.msra.mxu0 0.0
    %1933 = vmatprep.subr.mxu0 0.0
    %1934 = vmatpush1.msra.mxu0 0.0
    %1935 = vmatprep.mubr.f32.mxu0 0.0
    %1936 = vmatmul.mubr.f32.gmra.mrb[0].mxu0 %v1869
    %v1937 = vpop.f32.mrb[0].mxu0
    %v1938 = vadd.f32 0.0, %v1937
    %v1939 = vpop.f32.mrb[0].mxu0
    %1940 = vdwg.mxu0
    %v1941 = vadd.f32 %v1768, %v1938
    %v1942 = vtanh.pop %v1941
    %v1943 = vxor.u32 %v1941, 2147483648
    %v1944 = vmul.f32 %v1943, 1.442695
    %v1945 = vpow.pop %v1944
    %v1946 = vadd.f32 %v1945, 1.0
    %v1947 = vrcp.pop %v1946
    %v1948 = vmul.f32 1.0, %v1947
    %v1949 = vsel %vm111, %v1942, %v1948
    %v1950 = vmul.f32 %v1949, %v1750
    %1952 = vrot.lane.b32.xlu0 %v1949, 64
    %v1953 = vpop.permute.xlu0 %1952
    %v1955 = vmul.f32 %v1949, %v1953
    %1957 = vrot.lane.b32.xlu0 %v1955, 32
    %v1958 = vpop.permute.xlu0 %1957
    %v1960 = vadd.f32 %v1950, %v1958
    %v1961 = vtanh.pop %v1960
    %1963 = vrot.lane.b32.xlu0 %v1961, 64
    %v1964 = vpop.permute.xlu0 %1963
    %v1966 = vmul.f32 %v1949, %v1964
    %1968 = vrot.lane.b32.xlu0 %v1866, 32
    %v1969 = vpop.permute.xlu0 %1968
    %1971 = vst.msk [vmem:[#allocation2 + $0x38] sm:$0xff] %vm300, %v1969
    %1973 = vrot.lane.b32.xlu0 %v1966, 64
    %v1974 = vpop.permute.xlu0 %1973
    %1976 = vst.msk [vmem:[#allocation2] sm:$0xff] %vm505, %v1974
    %v1977 = vld [vmem:[#allocation2] sm:$0xff]
    %v1978 = vld [vmem:[#allocation2 + $0x8] sm:$0xff]
    %v1979 = vld [vmem:[#allocation2 + $0x10] sm:$0xff]
    %v1980 = vld [vmem:[#allocation2 + $0x18] sm:$0xff]
    %v1981 = vld [vmem:[#allocation2 + $0x20] sm:$0xff]
    %v1982 = vld [vmem:[#allocation2 + $0x28] sm:$0xff]
    %v1983 = vld [vmem:[#allocation2 + $0x30] sm:$0xff]
    %v1984 = vld [vmem:[#allocation2 + $0x38] sm:$0xff]
    %v1985 = vld [vmem:[#allocation10] sm:$0xff]
    %v1986 = vld [vmem:[#allocation10 + $0x8] sm:$0xff]
    %v1987 = vld [vmem:[#allocation10 + $0x10] sm:$0xff]
    %v1988 = vld [vmem:[#allocation10 + $0x18] sm:$0xff]
    %v1989 = vld [vmem:[#allocation10 + $0x20] sm:$0xff]
    %v1990 = vld [vmem:[#allocation10 + $0x28] sm:$0xff]
    %v1991 = vld [vmem:[#allocation10 + $0x30] sm:$0xff]
    %v1992 = vld [vmem:[#allocation10 + $0x38] sm:$0xff]
    %v1993 = vld [vmem:[#allocation10 + $0x40] sm:$0xff]
    %v1994 = vld [vmem:[#allocation10 + $0x48] sm:$0xff]
    %v1995 = vld [vmem:[#allocation10 + $0x50] sm:$0xff]
    %v1996 = vld [vmem:[#allocation10 + $0x58] sm:$0xff]
    %v1997 = vld [vmem:[#allocation10 + $0x60] sm:$0xff]
    %v1998 = vld [vmem:[#allocation10 + $0x68] sm:$0xff]
    %v1999 = vld [vmem:[#allocation10 + $0x70] sm:$0xff]
    %v2000 = vld [vmem:[#allocation10 + $0x78] sm:$0xff]
    %v2001 = vld [vmem:[%s8] sm:$0x3]
    %v2003 = vlaneseq
    %v2004 = vshrl.u32 %v2003, 7
    %v2005 = vsub.s32 0, %v2004
    %v2006 = vrot.slane %v2001, %v2005
    %v2007 = vlaneseq
    %v2008 = vshrl.u32 %v2007, 7
    %v2009 = vsub.s32 1, %v2008
    %v2010 = vrot.slane %v2001, %v2009
    %vm2013 = vcmask 523264
    %v2015 = vsel %vm2013, %v1977, 0
    %v2018 = vsel %vm2013, %v1978, 0
    %v2021 = vsel %vm2013, %v1979, 0
    %v2024 = vsel %vm2013, %v1980, 0
    %v2027 = vsel %vm2013, %v1981, 0
    %v2030 = vsel %vm2013, %v1982, 0
    %v2033 = vsel %vm2013, %v1983, 0
    %v2036 = vsel %vm2013, %v1984, 0
    %2038 = vmatprep.subr.mxu0 %v1986
    %2039 = vmatpush1.msra.mxu0 %v1985
    %2040 = vmatprep.subr.mxu0 %v1988
    %2041 = vmatpush1.msra.mxu0 %v1987
    %2042 = vmatprep.subr.mxu0 %v1990
    %2043 = vmatpush1.msra.mxu0 %v1989
    %2044 = vmatprep.subr.mxu0 %v1992
    %2045 = vmatpush1.msra.mxu0 %v1991
    %2046 = vmatprep.subr.mxu0 %v1994
    %2047 = vmatpush1.msra.mxu0 %v1993
    %2048 = vmatprep.subr.mxu0 %v1996
    %2049 = vmatpush1.msra.mxu0 %v1995
    %2050 = vmatprep.subr.mxu0 %v1998
    %2051 = vmatpush1.msra.mxu0 %v1997
    %2052 = vmatprep.subr.mxu0 %v2000
    %2053 = vmatpush1.msra.mxu0 %v1999
    %2054 = vmatprep.subr.mxu0 0.0
    %2055 = vmatpush1.msra.mxu0 0.0
    %2056 = vmatprep.subr.mxu0 0.0
    %2057 = vmatpush1.msra.mxu0 0.0
    %2058 = vmatprep.subr.mxu0 0.0
    %2059 = vmatpush1.msra.mxu0 0.0
    %2060 = vmatprep.subr.mxu0 0.0
    %2061 = vmatpush1.msra.mxu0 0.0
    %2062 = vmatprep.subr.mxu0 0.0
    %2063 = vmatpush1.msra.mxu0 0.0
    %2064 = vmatprep.subr.mxu0 0.0
    %2065 = vmatpush1.msra.mxu0 0.0
    %2066 = vmatprep.subr.mxu0 0.0
    %2067 = vmatpush1.msra.mxu0 0.0
    %2068 = vmatprep.subr.mxu0 0.0
    %2069 = vmatpush1.msra.mxu0 0.0
    %2070 = vmatprep.subr.mxu0 0.0
    %2071 = vmatpush1.msra.mxu0 0.0
    %2072 = vmatprep.subr.mxu0 0.0
    %2073 = vmatpush1.msra.mxu0 0.0
    %2074 = vmatprep.subr.mxu0 0.0
    %2075 = vmatpush1.msra.mxu0 0.0
    %2076 = vmatprep.subr.mxu0 0.0
    %2077 = vmatpush1.msra.mxu0 0.0
    %2078 = vmatprep.subr.mxu0 0.0
    %2079 = vmatpush1.msra.mxu0 0.0
    %2080 = vmatprep.subr.mxu0 0.0
    %2081 = vmatpush1.msra.mxu0 0.0
    %2082 = vmatprep.subr.mxu0 0.0
    %2083 = vmatpush1.msra.mxu0 0.0
    %2084 = vmatprep.subr.mxu0 0.0
    %2085 = vmatpush1.msra.mxu0 0.0
    %2086 = vmatprep.subr.mxu0 0.0
    %2087 = vmatpush1.msra.mxu0 0.0
    %2088 = vmatprep.subr.mxu0 0.0
    %2089 = vmatpush1.msra.mxu0 0.0
    %2090 = vmatprep.subr.mxu0 0.0
    %2091 = vmatpush1.msra.mxu0 0.0
    %2092 = vmatprep.subr.mxu0 0.0
    %2093 = vmatpush1.msra.mxu0 0.0
    %2094 = vmatprep.subr.mxu0 0.0
    %2095 = vmatpush1.msra.mxu0 0.0
    %2096 = vmatprep.subr.mxu0 0.0
    %2097 = vmatpush1.msra.mxu0 0.0
    %2098 = vmatprep.subr.mxu0 0.0
    %2099 = vmatpush1.msra.mxu0 0.0
    %2100 = vmatprep.subr.mxu0 0.0
    %2101 = vmatpush1.msra.mxu0 0.0
    %2102 = vmatprep.mubr.f32.mxu0 0.0
    %2103 = vmatmul.mubr.f32.gmra.mrb[0].mxu0 %v2015
    %v2104 = vpop.f32.mrb[0].mxu0
    %v2105 = vadd.f32 %v2006, %v2104
    %v2106 = vpop.f32.mrb[0].mxu0
    %v2107 = vadd.f32 %v2010, %v2106
    %2108 = vmatprep.mubr.f32.mxu0 0.0
    %2109 = vmatmul.mubr.f32.gmra.mrb[0].mxu0 %v2018
    %v2110 = vpop.f32.mrb[0].mxu0
    %v2111 = vadd.f32 %v2006, %v2110
    %v2112 = vpop.f32.mrb[0].mxu0
    %v2113 = vadd.f32 %v2010, %v2112
    %2114 = vmatprep.mubr.f32.mxu0 0.0
    %2115 = vmatmul.mubr.f32.gmra.mrb[0].mxu0 %v2021
    %v2116 = vpop.f32.mrb[0].mxu0
    %v2117 = vadd.f32 %v2006, %v2116
    %v2118 = vpop.f32.mrb[0].mxu0
    %v2119 = vadd.f32 %v2010, %v2118
    %2120 = vmatprep.mubr.f32.mxu0 0.0
    %2121 = vmatmul.mubr.f32.gmra.mrb[0].mxu0 %v2024
    %v2122 = vpop.f32.mrb[0].mxu0
    %v2123 = vadd.f32 %v2006, %v2122
    %v2124 = vpop.f32.mrb[0].mxu0
    %v2125 = vadd.f32 %v2010, %v2124
    %2126 = vmatprep.mubr.f32.mxu0 0.0
    %2127 = vmatmul.mubr.f32.gmra.mrb[0].mxu0 %v2027
    %v2128 = vpop.f32.mrb[0].mxu0
    %v2129 = vadd.f32 %v2006, %v2128
    %v2130 = vpop.f32.mrb[0].mxu0
    %v2131 = vadd.f32 %v2010, %v2130
    %2132 = vmatprep.mubr.f32.mxu0 0.0
    %2133 = vmatmul.mubr.f32.gmra.mrb[0].mxu0 %v2030
    %v2134 = vpop.f32.mrb[0].mxu0
    %v2135 = vadd.f32 %v2006, %v2134
    %v2136 = vpop.f32.mrb[0].mxu0
    %v2137 = vadd.f32 %v2010, %v2136
    %2138 = vmatprep.mubr.f32.mxu0 0.0
    %2139 = vmatmul.mubr.f32.gmra.mrb[0].mxu0 %v2033
    %v2140 = vpop.f32.mrb[0].mxu0
    %v2141 = vadd.f32 %v2006, %v2140
    %v2142 = vpop.f32.mrb[0].mxu0
    %v2143 = vadd.f32 %v2010, %v2142
    %2144 = vmatprep.mubr.f32.mxu0 0.0
    %2145 = vmatmul.mubr.f32.gmra.mrb[0].mxu0 %v2036
    %v2146 = vpop.f32.mrb[0].mxu0
    %v2147 = vadd.f32 %v2006, %v2146
    %v2148 = vpop.f32.mrb[0].mxu0
    %v2149 = vadd.f32 %v2010, %v2148
    %2150 = vdwg.mxu0
    %2151 = vst [vmem:[#allocation4] sm:$0xff] %v2105
    %2152 = vst [vmem:[#allocation4 + $0x8] sm:$0xff] %v2107
    %2153 = vst [vmem:[#allocation4 + $0x10] sm:$0xff] %v2111
    %2154 = vst [vmem:[#allocation4 + $0x18] sm:$0xff] %v2113
    %2155 = vst [vmem:[#allocation4 + $0x20] sm:$0xff] %v2117
    %2156 = vst [vmem:[#allocation4 + $0x28] sm:$0xff] %v2119
    %2157 = vst [vmem:[#allocation4 + $0x30] sm:$0xff] %v2123
    %2158 = vst [vmem:[#allocation4 + $0x38] sm:$0xff] %v2125
    %2159 = vst [vmem:[#allocation4 + $0x40] sm:$0xff] %v2129
    %2160 = vst [vmem:[#allocation4 + $0x48] sm:$0xff] %v2131
    %2161 = vst [vmem:[#allocation4 + $0x50] sm:$0xff] %v2135
    %2162 = vst [vmem:[#allocation4 + $0x58] sm:$0xff] %v2137
    %2163 = vst [vmem:[#allocation4 + $0x60] sm:$0xff] %v2141
    %2164 = vst [vmem:[#allocation4 + $0x68] sm:$0xff] %v2143
    %2165 = vst [vmem:[#allocation4 + $0x70] sm:$0xff] %v2147
    %2166 = vst [vmem:[#allocation4 + $0x78] sm:$0xff] %v2149
    %v2167 = vld [vmem:[#allocation11] sm:$0xff]
    %v2168 = vld [vmem:[#allocation11 + $0x8] sm:$0xff]
    %v2169 = vld [vmem:[#allocation11 + $0x10] sm:$0xff]
    %v2170 = vld [vmem:[#allocation11 + $0x18] sm:$0xff]
    %v2171 = vld [vmem:[#allocation13] sm:$0xff]
    %v2172 = vld [vmem:[#allocation13 + $0x8] sm:$0xff]
    %v2173 = vld [vmem:[#allocation13 + $0x10] sm:$0xff]
    %v2174 = vld [vmem:[#allocation13 + $0x18] sm:$0xff]
    %v2175 = vld [vmem:[#allocation4] sm:$0xff]
    %v2176 = vld [vmem:[#allocation4 + $0x78] sm:$0xff]
    %2177 = vmatprep.subr.mxu0 0.0
    %2178 = vmatpush1.msra.mxu0 %v2167
    %2179 = vmatprep.subr.mxu0 0.0
    %2180 = vmatpush1.msra.mxu0 %v2168
    %2181 = vmatprep.subr.mxu0 0.0
    %2182 = vmatpush1.msra.mxu0 %v2169
    %2183 = vmatprep.subr.mxu0 0.0
    %2184 = vmatpush1.msra.mxu0 %v2170
    %2185 = vmatprep.subr.mxu0 0.0
    %2186 = vmatpush1.msra.mxu0 0.0
    %2187 = vmatprep.subr.mxu0 0.0
    %2188 = vmatpush1.msra.mxu0 0.0
    %2189 = vmatprep.subr.mxu0 0.0
    %2190 = vmatpush1.msra.mxu0 0.0
    %2191 = vmatprep.subr.mxu0 0.0
    %2192 = vmatpush1.msra.mxu0 0.0
    %2193 = vmatprep.subr.mxu0 0.0
    %2194 = vmatpush1.msra.mxu0 0.0
    %2195 = vmatprep.subr.mxu0 0.0
    %2196 = vmatpush1.msra.mxu0 0.0
    %2197 = vmatprep.subr.mxu0 0.0
    %2198 = vmatpush1.msra.mxu0 0.0
    %2199 = vmatprep.subr.mxu0 0.0
    %2200 = vmatpush1.msra.mxu0 0.0
    %2201 = vmatprep.subr.mxu0 0.0
    %2202 = vmatpush1.msra.mxu0 0.0
    %2203 = vmatprep.subr.mxu0 0.0
    %2204 = vmatpush1.msra.mxu0 0.0
    %2205 = vmatprep.subr.mxu0 0.0
    %2206 = vmatpush1.msra.mxu0 0.0
    %2207 = vmatprep.subr.mxu0 0.0
    %2208 = vmatpush1.msra.mxu0 0.0
    %2209 = vmatprep.subr.mxu0 0.0
    %2210 = vmatpush1.msra.mxu0 0.0
    %2211 = vmatprep.subr.mxu0 0.0
    %2212 = vmatpush1.msra.mxu0 0.0
    %2213 = vmatprep.subr.mxu0 0.0
    %2214 = vmatpush1.msra.mxu0 0.0
    %2215 = vmatprep.subr.mxu0 0.0
    %2216 = vmatpush1.msra.mxu0 0.0
    %2217 = vmatprep.subr.mxu0 0.0
    %2218 = vmatpush1.msra.mxu0 0.0
    %2219 = vmatprep.subr.mxu0 0.0
    %2220 = vmatpush1.msra.mxu0 0.0
    %2221 = vmatprep.subr.mxu0 0.0
    %2222 = vmatpush1.msra.mxu0 0.0
    %2223 = vmatprep.subr.mxu0 0.0
    %2224 = vmatpush1.msra.mxu0 0.0
    %2225 = vmatprep.subr.mxu0 0.0
    %2226 = vmatpush1.msra.mxu0 0.0
    %2227 = vmatprep.subr.mxu0 0.0
    %2228 = vmatpush1.msra.mxu0 0.0
    %2229 = vmatprep.subr.mxu0 0.0
    %2230 = vmatpush1.msra.mxu0 0.0
    %2231 = vmatprep.subr.mxu0 0.0
    %2232 = vmatpush1.msra.mxu0 0.0
    %2233 = vmatprep.subr.mxu0 0.0
    %2234 = vmatpush1.msra.mxu0 0.0
    %2235 = vmatprep.subr.mxu0 0.0
    %2236 = vmatpush1.msra.mxu0 0.0
    %2237 = vmatprep.subr.mxu0 0.0
    %2238 = vmatpush1.msra.mxu0 0.0
    %2239 = vmatprep.subr.mxu0 0.0
    %2240 = vmatpush1.msra.mxu0 0.0
    %2241 = vmatprep.mubr.f32.mxu0 0.0
    %2242 = vmatmul.mubr.f32.gmra.mrb[0].mxu0 %v302
    %v2243 = vpop.f32.mrb[0].mxu0
    %v2244 = vadd.f32 0.0, %v2243
    %v2245 = vpop.f32.mrb[0].mxu0
    %2246 = vdwg.mxu0
    %v2247 = vadd.f32 %v2175, %v2244
    %v2248 = vtanh.pop %v2247
    %v2249 = vxor.u32 %v2247, 2147483648
    %v2250 = vmul.f32 %v2249, 1.442695
    %v2251 = vpow.pop %v2250
    %v2252 = vadd.f32 %v2251, 1.0
    %v2253 = vrcp.pop %v2252
    %v2254 = vmul.f32 1.0, %v2253
    %v2255 = vsel %vm111, %v2248, %v2254
    %v2256 = vmul.f32 %v2255, 0.0
    %2258 = vrot.lane.b32.xlu0 %v2255, 64
    %v2259 = vpop.permute.xlu0 %2258
    %v2261 = vmul.f32 %v2255, %v2259
    %2263 = vrot.lane.b32.xlu0 %v2261, 32
    %v2264 = vpop.permute.xlu0 %2263
    %v2266 = vadd.f32 %v2256, %v2264
    %v2267 = vtanh.pop %v2266
    %2269 = vrot.lane.b32.xlu0 %v2267, 64
    %v2270 = vpop.permute.xlu0 %2269
    %v2272 = vmul.f32 %v2255, %v2270
    %2273 = vmatprep.subr.mxu0 0.0
    %2274 = vmatpush1.msra.mxu0 %v2171
    %2275 = vmatprep.subr.mxu0 0.0
    %2276 = vmatpush1.msra.mxu0 %v2172
    %2277 = vmatprep.subr.mxu0 0.0
    %2278 = vmatpush1.msra.mxu0 %v2173
    %2279 = vmatprep.subr.mxu0 0.0
    %2280 = vmatpush1.msra.mxu0 %v2174
    %2281 = vmatprep.subr.mxu0 0.0
    %2282 = vmatpush1.msra.mxu0 0.0
    %2283 = vmatprep.subr.mxu0 0.0
    %2284 = vmatpush1.msra.mxu0 0.0
    %2285 = vmatprep.subr.mxu0 0.0
    %2286 = vmatpush1.msra.mxu0 0.0
    %2287 = vmatprep.subr.mxu0 0.0
    %2288 = vmatpush1.msra.mxu0 0.0
    %2289 = vmatprep.subr.mxu0 0.0
    %2290 = vmatpush1.msra.mxu0 0.0
    %2291 = vmatprep.subr.mxu0 0.0
    %2292 = vmatpush1.msra.mxu0 0.0
    %2293 = vmatprep.subr.mxu0 0.0
    %2294 = vmatpush1.msra.mxu0 0.0
    %2295 = vmatprep.subr.mxu0 0.0
    %2296 = vmatpush1.msra.mxu0 0.0
    %2297 = vmatprep.subr.mxu0 0.0
    %2298 = vmatpush1.msra.mxu0 0.0
    %2299 = vmatprep.subr.mxu0 0.0
    %2300 = vmatpush1.msra.mxu0 0.0
    %2301 = vmatprep.subr.mxu0 0.0
    %2302 = vmatpush1.msra.mxu0 0.0
    %2303 = vmatprep.subr.mxu0 0.0
    %2304 = vmatpush1.msra.mxu0 0.0
    %2305 = vmatprep.subr.mxu0 0.0
    %2306 = vmatpush1.msra.mxu0 0.0
    %2307 = vmatprep.subr.mxu0 0.0
    %2308 = vmatpush1.msra.mxu0 0.0
    %2309 = vmatprep.subr.mxu0 0.0
    %2310 = vmatpush1.msra.mxu0 0.0
    %2311 = vmatprep.subr.mxu0 0.0
    %2312 = vmatpush1.msra.mxu0 0.0
    %2313 = vmatprep.subr.mxu0 0.0
    %2314 = vmatpush1.msra.mxu0 0.0
    %2315 = vmatprep.subr.mxu0 0.0
    %2316 = vmatpush1.msra.mxu0 0.0
    %2317 = vmatprep.subr.mxu0 0.0
    %2318 = vmatpush1.msra.mxu0 0.0
    %2319 = vmatprep.subr.mxu0 0.0
    %2320 = vmatpush1.msra.mxu0 0.0
    %2321 = vmatprep.subr.mxu0 0.0
    %2322 = vmatpush1.msra.mxu0 0.0
    %2323 = vmatprep.subr.mxu0 0.0
    %2324 = vmatpush1.msra.mxu0 0.0
    %2325 = vmatprep.subr.mxu0 0.0
    %2326 = vmatpush1.msra.mxu0 0.0
    %2327 = vmatprep.subr.mxu0 0.0
    %2328 = vmatpush1.msra.mxu0 0.0
    %2329 = vmatprep.subr.mxu0 0.0
    %2330 = vmatpush1.msra.mxu0 0.0
    %2331 = vmatprep.subr.mxu0 0.0
    %2332 = vmatpush1.msra.mxu0 0.0
    %2333 = vmatprep.subr.mxu0 0.0
    %2334 = vmatpush1.msra.mxu0 0.0
    %2335 = vmatprep.subr.mxu0 0.0
    %2336 = vmatpush1.msra.mxu0 0.0
    %2337 = vmatprep.mubr.f32.mxu0 0.0
    %2338 = vmatmul.mubr.f32.gmra.mrb[0].mxu0 %v302
    %v2339 = vpop.f32.mrb[0].mxu0
    %v2340 = vadd.f32 0.0, %v2339
    %v2341 = vpop.f32.mrb[0].mxu0
    %2342 = vdwg.mxu0
    %v2343 = vadd.f32 %v2176, %v2340
    %v2344 = vtanh.pop %v2343
    %v2345 = vxor.u32 %v2343, 2147483648
    %v2346 = vmul.f32 %v2345, 1.442695
    %v2347 = vpow.pop %v2346
    %v2348 = vadd.f32 %v2347, 1.0
    %v2349 = vrcp.pop %v2348
    %v2350 = vmul.f32 1.0, %v2349
    %v2351 = vsel %vm111, %v2344, %v2350
    %v2352 = vmul.f32 %v2351, 0.0
    %2354 = vrot.lane.b32.xlu0 %v2351, 64
    %v2355 = vpop.permute.xlu0 %2354
    %v2357 = vmul.f32 %v2351, %v2355
    %2359 = vrot.lane.b32.xlu0 %v2357, 32
    %v2360 = vpop.permute.xlu0 %2359
    %v2362 = vadd.f32 %v2352, %v2360
    %v2363 = vtanh.pop %v2362
    %2365 = vrot.lane.b32.xlu0 %v2363, 64
    %v2366 = vpop.permute.xlu0 %2365
    %v2368 = vmul.f32 %v2351, %v2366
    %2370 = vrot.lane.b32.xlu0 %v2272, 32
    %v2371 = vpop.permute.xlu0 %2370
    %2373 = vst.msk [vmem:[#allocation3] sm:$0xff] %vm300, %v2371
    %2375 = vrot.lane.b32.xlu0 %v2368, 64
    %v2376 = vpop.permute.xlu0 %2375
    %2378 = vst.msk [vmem:[#allocation3 + $0x38] sm:$0xff] %vm505, %v2376
    %v2379 = vld [vmem:[#allocation4 + $0x10] sm:$0xff]
    %v2380 = vld [vmem:[#allocation4 + $0x68] sm:$0xff]
    %v2381 = vsel %vm300, %v2371, 0
    %2383 = vmatprep.subr.mxu0 0.0
    %2384 = vmatpush1.msra.mxu0 %v2167
    %2385 = vmatprep.subr.mxu0 0.0
    %2386 = vmatpush1.msra.mxu0 %v2168
    %2387 = vmatprep.subr.mxu0 0.0
    %2388 = vmatpush1.msra.mxu0 %v2169
    %2389 = vmatprep.subr.mxu0 0.0
    %2390 = vmatpush1.msra.mxu0 %v2170
    %2391 = vmatprep.subr.mxu0 0.0
    %2392 = vmatpush1.msra.mxu0 0.0
    %2393 = vmatprep.subr.mxu0 0.0
    %2394 = vmatpush1.msra.mxu0 0.0
    %2395 = vmatprep.subr.mxu0 0.0
    %2396 = vmatpush1.msra.mxu0 0.0
    %2397 = vmatprep.subr.mxu0 0.0
    %2398 = vmatpush1.msra.mxu0 0.0
    %2399 = vmatprep.subr.mxu0 0.0
    %2400 = vmatpush1.msra.mxu0 0.0
    %2401 = vmatprep.subr.mxu0 0.0
    %2402 = vmatpush1.msra.mxu0 0.0
    %2403 = vmatprep.subr.mxu0 0.0
    %2404 = vmatpush1.msra.mxu0 0.0
    %2405 = vmatprep.subr.mxu0 0.0
    %2406 = vmatpush1.msra.mxu0 0.0
    %2407 = vmatprep.subr.mxu0 0.0
    %2408 = vmatpush1.msra.mxu0 0.0
    %2409 = vmatprep.subr.mxu0 0.0
    %2410 = vmatpush1.msra.mxu0 0.0
    %2411 = vmatprep.subr.mxu0 0.0
    %2412 = vmatpush1.msra.mxu0 0.0
    %2413 = vmatprep.subr.mxu0 0.0
    %2414 = vmatpush1.msra.mxu0 0.0
    %2415 = vmatprep.subr.mxu0 0.0
    %2416 = vmatpush1.msra.mxu0 0.0
    %2417 = vmatprep.subr.mxu0 0.0
    %2418 = vmatpush1.msra.mxu0 0.0
    %2419 = vmatprep.subr.mxu0 0.0
    %2420 = vmatpush1.msra.mxu0 0.0
    %2421 = vmatprep.subr.mxu0 0.0
    %2422 = vmatpush1.msra.mxu0 0.0
    %2423 = vmatprep.subr.mxu0 0.0
    %2424 = vmatpush1.msra.mxu0 0.0
    %2425 = vmatprep.subr.mxu0 0.0
    %2426 = vmatpush1.msra.mxu0 0.0
    %2427 = vmatprep.subr.mxu0 0.0
    %2428 = vmatpush1.msra.mxu0 0.0
    %2429 = vmatprep.subr.mxu0 0.0
    %2430 = vmatpush1.msra.mxu0 0.0
    %2431 = vmatprep.subr.mxu0 0.0
    %2432 = vmatpush1.msra.mxu0 0.0
    %2433 = vmatprep.subr.mxu0 0.0
    %2434 = vmatpush1.msra.mxu0 0.0
    %2435 = vmatprep.subr.mxu0 0.0
    %2436 = vmatpush1.msra.mxu0 0.0
    %2437 = vmatprep.subr.mxu0 0.0
    %2438 = vmatpush1.msra.mxu0 0.0
    %2439 = vmatprep.subr.mxu0 0.0
    %2440 = vmatpush1.msra.mxu0 0.0
    %2441 = vmatprep.subr.mxu0 0.0
    %2442 = vmatpush1.msra.mxu0 0.0
    %2443 = vmatprep.subr.mxu0 0.0
    %2444 = vmatpush1.msra.mxu0 0.0
    %2445 = vmatprep.subr.mxu0 0.0
    %2446 = vmatpush1.msra.mxu0 0.0
    %2447 = vmatprep.mubr.f32.mxu0 0.0
    %2448 = vmatmul.mubr.f32.gmra.mrb[0].mxu0 %v2381
    %v2449 = vpop.f32.mrb[0].mxu0
    %v2450 = vadd.f32 0.0, %v2449
    %v2451 = vpop.f32.mrb[0].mxu0
    %2452 = vdwg.mxu0
    %v2453 = vadd.f32 %v2379, %v2450
    %v2454 = vtanh.pop %v2453
    %v2455 = vxor.u32 %v2453, 2147483648
    %v2456 = vmul.f32 %v2455, 1.442695
    %v2457 = vpow.pop %v2456
    %v2458 = vadd.f32 %v2457, 1.0
    %v2459 = vrcp.pop %v2458
    %v2460 = vmul.f32 1.0, %v2459
    %v2461 = vsel %vm111, %v2454, %v2460
    %v2462 = vmul.f32 %v2461, %v2266
    %2464 = vrot.lane.b32.xlu0 %v2461, 64
    %v2465 = vpop.permute.xlu0 %2464
    %v2467 = vmul.f32 %v2461, %v2465
    %2469 = vrot.lane.b32.xlu0 %v2467, 32
    %v2470 = vpop.permute.xlu0 %2469
    %v2472 = vadd.f32 %v2462, %v2470
    %v2473 = vtanh.pop %v2472
    %2475 = vrot.lane.b32.xlu0 %v2473, 64
    %v2476 = vpop.permute.xlu0 %2475
    %v2478 = vmul.f32 %v2461, %v2476
    %2479 = vrot.lane.b32.xlu0 %v2368, 32
    %v2480 = vpop.permute.xlu0 %2479
    %v2481 = vsel %vm300, %v2480, 0
    %2483 = vmatprep.subr.mxu0 0.0
    %2484 = vmatpush1.msra.mxu0 %v2171
    %2485 = vmatprep.subr.mxu0 0.0
    %2486 = vmatpush1.msra.mxu0 %v2172
    %2487 = vmatprep.subr.mxu0 0.0
    %2488 = vmatpush1.msra.mxu0 %v2173
    %2489 = vmatprep.subr.mxu0 0.0
    %2490 = vmatpush1.msra.mxu0 %v2174
    %2491 = vmatprep.subr.mxu0 0.0
    %2492 = vmatpush1.msra.mxu0 0.0
    %2493 = vmatprep.subr.mxu0 0.0
    %2494 = vmatpush1.msra.mxu0 0.0
    %2495 = vmatprep.subr.mxu0 0.0
    %2496 = vmatpush1.msra.mxu0 0.0
    %2497 = vmatprep.subr.mxu0 0.0
    %2498 = vmatpush1.msra.mxu0 0.0
    %2499 = vmatprep.subr.mxu0 0.0
    %2500 = vmatpush1.msra.mxu0 0.0
    %2501 = vmatprep.subr.mxu0 0.0
    %2502 = vmatpush1.msra.mxu0 0.0
    %2503 = vmatprep.subr.mxu0 0.0
    %2504 = vmatpush1.msra.mxu0 0.0
    %2505 = vmatprep.subr.mxu0 0.0
    %2506 = vmatpush1.msra.mxu0 0.0
    %2507 = vmatprep.subr.mxu0 0.0
    %2508 = vmatpush1.msra.mxu0 0.0
    %2509 = vmatprep.subr.mxu0 0.0
    %2510 = vmatpush1.msra.mxu0 0.0
    %2511 = vmatprep.subr.mxu0 0.0
    %2512 = vmatpush1.msra.mxu0 0.0
    %2513 = vmatprep.subr.mxu0 0.0
    %2514 = vmatpush1.msra.mxu0 0.0
    %2515 = vmatprep.subr.mxu0 0.0
    %2516 = vmatpush1.msra.mxu0 0.0
    %2517 = vmatprep.subr.mxu0 0.0
    %2518 = vmatpush1.msra.mxu0 0.0
    %2519 = vmatprep.subr.mxu0 0.0
    %2520 = vmatpush1.msra.mxu0 0.0
    %2521 = vmatprep.subr.mxu0 0.0
    %2522 = vmatpush1.msra.mxu0 0.0
    %2523 = vmatprep.subr.mxu0 0.0
    %2524 = vmatpush1.msra.mxu0 0.0
    %2525 = vmatprep.subr.mxu0 0.0
    %2526 = vmatpush1.msra.mxu0 0.0
    %2527 = vmatprep.subr.mxu0 0.0
    %2528 = vmatpush1.msra.mxu0 0.0
    %2529 = vmatprep.subr.mxu0 0.0
    %2530 = vmatpush1.msra.mxu0 0.0
    %2531 = vmatprep.subr.mxu0 0.0
    %2532 = vmatpush1.msra.mxu0 0.0
    %2533 = vmatprep.subr.mxu0 0.0
    %2534 = vmatpush1.msra.mxu0 0.0
    %2535 = vmatprep.subr.mxu0 0.0
    %2536 = vmatpush1.msra.mxu0 0.0
    %2537 = vmatprep.subr.mxu0 0.0
    %2538 = vmatpush1.msra.mxu0 0.0
    %2539 = vmatprep.subr.mxu0 0.0
    %2540 = vmatpush1.msra.mxu0 0.0
    %2541 = vmatprep.subr.mxu0 0.0
    %2542 = vmatpush1.msra.mxu0 0.0
    %2543 = vmatprep.subr.mxu0 0.0
    %2544 = vmatpush1.msra.mxu0 0.0
    %2545 = vmatprep.subr.mxu0 0.0
    %2546 = vmatpush1.msra.mxu0 0.0
    %2547 = vmatprep.mubr.f32.mxu0 0.0
    %2548 = vmatmul.mubr.f32.gmra.mrb[0].mxu0 %v2481
    %v2549 = vpop.f32.mrb[0].mxu0
    %v2550 = vadd.f32 0.0, %v2549
    %v2551 = vpop.f32.mrb[0].mxu0
    %2552 = vdwg.mxu0
    %v2553 = vadd.f32 %v2380, %v2550
    %v2554 = vtanh.pop %v2553
    %v2555 = vxor.u32 %v2553, 2147483648
    %v2556 = vmul.f32 %v2555, 1.442695
    %v2557 = vpow.pop %v2556
    %v2558 = vadd.f32 %v2557, 1.0
    %v2559 = vrcp.pop %v2558
    %v2560 = vmul.f32 1.0, %v2559
    %v2561 = vsel %vm111, %v2554, %v2560
    %v2562 = vmul.f32 %v2561, %v2362
    %2564 = vrot.lane.b32.xlu0 %v2561, 64
    %v2565 = vpop.permute.xlu0 %2564
    %v2567 = vmul.f32 %v2561, %v2565
    %2569 = vrot.lane.b32.xlu0 %v2567, 32
    %v2570 = vpop.permute.xlu0 %2569
    %v2572 = vadd.f32 %v2562, %v2570
    %v2573 = vtanh.pop %v2572
    %2575 = vrot.lane.b32.xlu0 %v2573, 64
    %v2576 = vpop.permute.xlu0 %2575
    %v2578 = vmul.f32 %v2561, %v2576
    %2580 = vrot.lane.b32.xlu0 %v2478, 32
    %v2581 = vpop.permute.xlu0 %2580
    %2583 = vst.msk [vmem:[#allocation3 + $0x8] sm:$0xff] %vm300, %v2581
    %2585 = vrot.lane.b32.xlu0 %v2578, 64
    %v2586 = vpop.permute.xlu0 %2585
    %2588 = vst.msk [vmem:[#allocation3 + $0x30] sm:$0xff] %vm505, %v2586
    %v2589 = vld [vmem:[#allocation4 + $0x20] sm:$0xff]
    %v2590 = vld [vmem:[#allocation4 + $0x58] sm:$0xff]
    %v2591 = vsel %vm300, %v2581, 0
    %2593 = vmatprep.subr.mxu0 0.0
    %2594 = vmatpush1.msra.mxu0 %v2167
    %2595 = vmatprep.subr.mxu0 0.0
    %2596 = vmatpush1.msra.mxu0 %v2168
    %2597 = vmatprep.subr.mxu0 0.0
    %2598 = vmatpush1.msra.mxu0 %v2169
    %2599 = vmatprep.subr.mxu0 0.0
    %2600 = vmatpush1.msra.mxu0 %v2170
    %2601 = vmatprep.subr.mxu0 0.0
    %2602 = vmatpush1.msra.mxu0 0.0
    %2603 = vmatprep.subr.mxu0 0.0
    %2604 = vmatpush1.msra.mxu0 0.0
    %2605 = vmatprep.subr.mxu0 0.0
    %2606 = vmatpush1.msra.mxu0 0.0
    %2607 = vmatprep.subr.mxu0 0.0
    %2608 = vmatpush1.msra.mxu0 0.0
    %2609 = vmatprep.subr.mxu0 0.0
    %2610 = vmatpush1.msra.mxu0 0.0
    %2611 = vmatprep.subr.mxu0 0.0
    %2612 = vmatpush1.msra.mxu0 0.0
    %2613 = vmatprep.subr.mxu0 0.0
    %2614 = vmatpush1.msra.mxu0 0.0
    %2615 = vmatprep.subr.mxu0 0.0
    %2616 = vmatpush1.msra.mxu0 0.0
    %2617 = vmatprep.subr.mxu0 0.0
    %2618 = vmatpush1.msra.mxu0 0.0
    %2619 = vmatprep.subr.mxu0 0.0
    %2620 = vmatpush1.msra.mxu0 0.0
    %2621 = vmatprep.subr.mxu0 0.0
    %2622 = vmatpush1.msra.mxu0 0.0
    %2623 = vmatprep.subr.mxu0 0.0
    %2624 = vmatpush1.msra.mxu0 0.0
    %2625 = vmatprep.subr.mxu0 0.0
    %2626 = vmatpush1.msra.mxu0 0.0
    %2627 = vmatprep.subr.mxu0 0.0
    %2628 = vmatpush1.msra.mxu0 0.0
    %2629 = vmatprep.subr.mxu0 0.0
    %2630 = vmatpush1.msra.mxu0 0.0
    %2631 = vmatprep.subr.mxu0 0.0
    %2632 = vmatpush1.msra.mxu0 0.0
    %2633 = vmatprep.subr.mxu0 0.0
    %2634 = vmatpush1.msra.mxu0 0.0
    %2635 = vmatprep.subr.mxu0 0.0
    %2636 = vmatpush1.msra.mxu0 0.0
    %2637 = vmatprep.subr.mxu0 0.0
    %2638 = vmatpush1.msra.mxu0 0.0
    %2639 = vmatprep.subr.mxu0 0.0
    %2640 = vmatpush1.msra.mxu0 0.0
    %2641 = vmatprep.subr.mxu0 0.0
    %2642 = vmatpush1.msra.mxu0 0.0
    %2643 = vmatprep.subr.mxu0 0.0
    %2644 = vmatpush1.msra.mxu0 0.0
    %2645 = vmatprep.subr.mxu0 0.0
    %2646 = vmatpush1.msra.mxu0 0.0
    %2647 = vmatprep.subr.mxu0 0.0
    %2648 = vmatpush1.msra.mxu0 0.0
    %2649 = vmatprep.subr.mxu0 0.0
    %2650 = vmatpush1.msra.mxu0 0.0
    %2651 = vmatprep.subr.mxu0 0.0
    %2652 = vmatpush1.msra.mxu0 0.0
    %2653 = vmatprep.subr.mxu0 0.0
    %2654 = vmatpush1.msra.mxu0 0.0
    %2655 = vmatprep.subr.mxu0 0.0
    %2656 = vmatpush1.msra.mxu0 0.0
    %2657 = vmatprep.mubr.f32.mxu0 0.0
    %2658 = vmatmul.mubr.f32.gmra.mrb[0].mxu0 %v2591
    %v2659 = vpop.f32.mrb[0].mxu0
    %v2660 = vadd.f32 0.0, %v2659
    %v2661 = vpop.f32.mrb[0].mxu0
    %2662 = vdwg.mxu0
    %v2663 = vadd.f32 %v2589, %v2660
    %v2664 = vtanh.pop %v2663
    %v2665 = vxor.u32 %v2663, 2147483648
    %v2666 = vmul.f32 %v2665, 1.442695
    %v2667 = vpow.pop %v2666
    %v2668 = vadd.f32 %v2667, 1.0
    %v2669 = vrcp.pop %v2668
    %v2670 = vmul.f32 1.0, %v2669
    %v2671 = vsel %vm111, %v2664, %v2670
    %v2672 = vmul.f32 %v2671, %v2472
    %2674 = vrot.lane.b32.xlu0 %v2671, 64
    %v2675 = vpop.permute.xlu0 %2674
    %v2677 = vmul.f32 %v2671, %v2675
    %2679 = vrot.lane.b32.xlu0 %v2677, 32
    %v2680 = vpop.permute.xlu0 %2679
    %v2682 = vadd.f32 %v2672, %v2680
    %v2683 = vtanh.pop %v2682
    %2685 = vrot.lane.b32.xlu0 %v2683, 64
    %v2686 = vpop.permute.xlu0 %2685
    %v2688 = vmul.f32 %v2671, %v2686
    %2689 = vrot.lane.b32.xlu0 %v2578, 32
    %v2690 = vpop.permute.xlu0 %2689
    %v2691 = vsel %vm300, %v2690, 0
    %2693 = vmatprep.subr.mxu0 0.0
    %2694 = vmatpush1.msra.mxu0 %v2171
    %2695 = vmatprep.subr.mxu0 0.0
    %2696 = vmatpush1.msra.mxu0 %v2172
    %2697 = vmatprep.subr.mxu0 0.0
    %2698 = vmatpush1.msra.mxu0 %v2173
    %2699 = vmatprep.subr.mxu0 0.0
    %2700 = vmatpush1.msra.mxu0 %v2174
    %2701 = vmatprep.subr.mxu0 0.0
    %2702 = vmatpush1.msra.mxu0 0.0
    %2703 = vmatprep.subr.mxu0 0.0
    %2704 = vmatpush1.msra.mxu0 0.0
    %2705 = vmatprep.subr.mxu0 0.0
    %2706 = vmatpush1.msra.mxu0 0.0
    %2707 = vmatprep.subr.mxu0 0.0
    %2708 = vmatpush1.msra.mxu0 0.0
    %2709 = vmatprep.subr.mxu0 0.0
    %2710 = vmatpush1.msra.mxu0 0.0
    %2711 = vmatprep.subr.mxu0 0.0
    %2712 = vmatpush1.msra.mxu0 0.0
    %2713 = vmatprep.subr.mxu0 0.0
    %2714 = vmatpush1.msra.mxu0 0.0
    %2715 = vmatprep.subr.mxu0 0.0
    %2716 = vmatpush1.msra.mxu0 0.0
    %2717 = vmatprep.subr.mxu0 0.0
    %2718 = vmatpush1.msra.mxu0 0.0
    %2719 = vmatprep.subr.mxu0 0.0
    %2720 = vmatpush1.msra.mxu0 0.0
    %2721 = vmatprep.subr.mxu0 0.0
    %2722 = vmatpush1.msra.mxu0 0.0
    %2723 = vmatprep.subr.mxu0 0.0
    %2724 = vmatpush1.msra.mxu0 0.0
    %2725 = vmatprep.subr.mxu0 0.0
    %2726 = vmatpush1.msra.mxu0 0.0
    %2727 = vmatprep.subr.mxu0 0.0
    %2728 = vmatpush1.msra.mxu0 0.0
    %2729 = vmatprep.subr.mxu0 0.0
    %2730 = vmatpush1.msra.mxu0 0.0
    %2731 = vmatprep.subr.mxu0 0.0
    %2732 = vmatpush1.msra.mxu0 0.0
    %2733 = vmatprep.subr.mxu0 0.0
    %2734 = vmatpush1.msra.mxu0 0.0
    %2735 = vmatprep.subr.mxu0 0.0
    %2736 = vmatpush1.msra.mxu0 0.0
    %2737 = vmatprep.subr.mxu0 0.0
    %2738 = vmatpush1.msra.mxu0 0.0
    %2739 = vmatprep.subr.mxu0 0.0
    %2740 = vmatpush1.msra.mxu0 0.0
    %2741 = vmatprep.subr.mxu0 0.0
    %2742 = vmatpush1.msra.mxu0 0.0
    %2743 = vmatprep.subr.mxu0 0.0
    %2744 = vmatpush1.msra.mxu0 0.0
    %2745 = vmatprep.subr.mxu0 0.0
    %2746 = vmatpush1.msra.mxu0 0.0
    %2747 = vmatprep.subr.mxu0 0.0
    %2748 = vmatpush1.msra.mxu0 0.0
    %2749 = vmatprep.subr.mxu0 0.0
    %2750 = vmatpush1.msra.mxu0 0.0
    %2751 = vmatprep.subr.mxu0 0.0
    %2752 = vmatpush1.msra.mxu0 0.0
    %2753 = vmatprep.subr.mxu0 0.0
    %2754 = vmatpush1.msra.mxu0 0.0
    %2755 = vmatprep.subr.mxu0 0.0
    %2756 = vmatpush1.msra.mxu0 0.0
    %2757 = vmatprep.mubr.f32.mxu0 0.0
    %2758 = vmatmul.mubr.f32.gmra.mrb[0].mxu0 %v2691
    %v2759 = vpop.f32.mrb[0].mxu0
    %v2760 = vadd.f32 0.0, %v2759
    %v2761 = vpop.f32.mrb[0].mxu0
    %2762 = vdwg.mxu0
    %v2763 = vadd.f32 %v2590, %v2760
    %v2764 = vtanh.pop %v2763
    %v2765 = vxor.u32 %v2763, 2147483648
    %v2766 = vmul.f32 %v2765, 1.442695
    %v2767 = vpow.pop %v2766
    %v2768 = vadd.f32 %v2767, 1.0
    %v2769 = vrcp.pop %v2768
    %v2770 = vmul.f32 1.0, %v2769
    %v2771 = vsel %vm111, %v2764, %v2770
    %v2772 = vmul.f32 %v2771, %v2572
    %2774 = vrot.lane.b32.xlu0 %v2771, 64
    %v2775 = vpop.permute.xlu0 %2774
    %v2777 = vmul.f32 %v2771, %v2775
    %2779 = vrot.lane.b32.xlu0 %v2777, 32
    %v2780 = vpop.permute.xlu0 %2779
    %v2782 = vadd.f32 %v2772, %v2780
    %v2783 = vtanh.pop %v2782
    %2785 = vrot.lane.b32.xlu0 %v2783, 64
    %v2786 = vpop.permute.xlu0 %2785
    %v2788 = vmul.f32 %v2771, %v2786
    %2790 = vrot.lane.b32.xlu0 %v2688, 32
    %v2791 = vpop.permute.xlu0 %2790
    %2793 = vst.msk [vmem:[#allocation3 + $0x10] sm:$0xff] %vm300, %v2791
    %2795 = vrot.lane.b32.xlu0 %v2788, 64
    %v2796 = vpop.permute.xlu0 %2795
    %2798 = vst.msk [vmem:[#allocation3 + $0x28] sm:$0xff] %vm505, %v2796
    %v2799 = vld [vmem:[#allocation4 + $0x30] sm:$0xff]
    %v2800 = vld [vmem:[#allocation4 + $0x48] sm:$0xff]
    %v2801 = vsel %vm300, %v2791, 0
    %2803 = vmatprep.subr.mxu0 0.0
    %2804 = vmatpush1.msra.mxu0 %v2167
    %2805 = vmatprep.subr.mxu0 0.0
    %2806 = vmatpush1.msra.mxu0 %v2168
    %2807 = vmatprep.subr.mxu0 0.0
    %2808 = vmatpush1.msra.mxu0 %v2169
    %2809 = vmatprep.subr.mxu0 0.0
    %2810 = vmatpush1.msra.mxu0 %v2170
    %2811 = vmatprep.subr.mxu0 0.0
    %2812 = vmatpush1.msra.mxu0 0.0
    %2813 = vmatprep.subr.mxu0 0.0
    %2814 = vmatpush1.msra.mxu0 0.0
    %2815 = vmatprep.subr.mxu0 0.0
    %2816 = vmatpush1.msra.mxu0 0.0
    %2817 = vmatprep.subr.mxu0 0.0
    %2818 = vmatpush1.msra.mxu0 0.0
    %2819 = vmatprep.subr.mxu0 0.0
    %2820 = vmatpush1.msra.mxu0 0.0
    %2821 = vmatprep.subr.mxu0 0.0
    %2822 = vmatpush1.msra.mxu0 0.0
    %2823 = vmatprep.subr.mxu0 0.0
    %2824 = vmatpush1.msra.mxu0 0.0
    %2825 = vmatprep.subr.mxu0 0.0
    %2826 = vmatpush1.msra.mxu0 0.0
    %2827 = vmatprep.subr.mxu0 0.0
    %2828 = vmatpush1.msra.mxu0 0.0
    %2829 = vmatprep.subr.mxu0 0.0
    %2830 = vmatpush1.msra.mxu0 0.0
    %2831 = vmatprep.subr.mxu0 0.0
    %2832 = vmatpush1.msra.mxu0 0.0
    %2833 = vmatprep.subr.mxu0 0.0
    %2834 = vmatpush1.msra.mxu0 0.0
    %2835 = vmatprep.subr.mxu0 0.0
    %2836 = vmatpush1.msra.mxu0 0.0
    %2837 = vmatprep.subr.mxu0 0.0
    %2838 = vmatpush1.msra.mxu0 0.0
    %2839 = vmatprep.subr.mxu0 0.0
    %2840 = vmatpush1.msra.mxu0 0.0
    %2841 = vmatprep.subr.mxu0 0.0
    %2842 = vmatpush1.msra.mxu0 0.0
    %2843 = vmatprep.subr.mxu0 0.0
    %2844 = vmatpush1.msra.mxu0 0.0
    %2845 = vmatprep.subr.mxu0 0.0
    %2846 = vmatpush1.msra.mxu0 0.0
    %2847 = vmatprep.subr.mxu0 0.0
    %2848 = vmatpush1.msra.mxu0 0.0
    %2849 = vmatprep.subr.mxu0 0.0
    %2850 = vmatpush1.msra.mxu0 0.0
    %2851 = vmatprep.subr.mxu0 0.0
    %2852 = vmatpush1.msra.mxu0 0.0
    %2853 = vmatprep.subr.mxu0 0.0
    %2854 = vmatpush1.msra.mxu0 0.0
    %2855 = vmatprep.subr.mxu0 0.0
    %2856 = vmatpush1.msra.mxu0 0.0
    %2857 = vmatprep.subr.mxu0 0.0
    %2858 = vmatpush1.msra.mxu0 0.0
    %2859 = vmatprep.subr.mxu0 0.0
    %2860 = vmatpush1.msra.mxu0 0.0
    %2861 = vmatprep.subr.mxu0 0.0
    %2862 = vmatpush1.msra.mxu0 0.0
    %2863 = vmatprep.subr.mxu0 0.0
    %2864 = vmatpush1.msra.mxu0 0.0
    %2865 = vmatprep.subr.mxu0 0.0
    %2866 = vmatpush1.msra.mxu0 0.0
    %2867 = vmatprep.mubr.f32.mxu0 0.0
    %2868 = vmatmul.mubr.f32.gmra.mrb[0].mxu0 %v2801
    %v2869 = vpop.f32.mrb[0].mxu0
    %v2870 = vadd.f32 0.0, %v2869
    %v2871 = vpop.f32.mrb[0].mxu0
    %2872 = vdwg.mxu0
    %v2873 = vadd.f32 %v2799, %v2870
    %v2874 = vtanh.pop %v2873
    %v2875 = vxor.u32 %v2873, 2147483648
    %v2876 = vmul.f32 %v2875, 1.442695
    %v2877 = vpow.pop %v2876
    %v2878 = vadd.f32 %v2877, 1.0
    %v2879 = vrcp.pop %v2878
    %v2880 = vmul.f32 1.0, %v2879
    %v2881 = vsel %vm111, %v2874, %v2880
    %v2882 = vmul.f32 %v2881, %v2682
    %2884 = vrot.lane.b32.xlu0 %v2881, 64
    %v2885 = vpop.permute.xlu0 %2884
    %v2887 = vmul.f32 %v2881, %v2885
    %2889 = vrot.lane.b32.xlu0 %v2887, 32
    %v2890 = vpop.permute.xlu0 %2889
    %v2892 = vadd.f32 %v2882, %v2890
    %v2893 = vtanh.pop %v2892
    %2895 = vrot.lane.b32.xlu0 %v2893, 64
    %v2896 = vpop.permute.xlu0 %2895
    %v2898 = vmul.f32 %v2881, %v2896
    %2899 = vrot.lane.b32.xlu0 %v2788, 32
    %v2900 = vpop.permute.xlu0 %2899
    %v2901 = vsel %vm300, %v2900, 0
    %2903 = vmatprep.subr.mxu0 0.0
    %2904 = vmatpush1.msra.mxu0 %v2171
    %2905 = vmatprep.subr.mxu0 0.0
    %2906 = vmatpush1.msra.mxu0 %v2172
    %2907 = vmatprep.subr.mxu0 0.0
    %2908 = vmatpush1.msra.mxu0 %v2173
    %2909 = vmatprep.subr.mxu0 0.0
    %2910 = vmatpush1.msra.mxu0 %v2174
    %2911 = vmatprep.subr.mxu0 0.0
    %2912 = vmatpush1.msra.mxu0 0.0
    %2913 = vmatprep.subr.mxu0 0.0
    %2914 = vmatpush1.msra.mxu0 0.0
    %2915 = vmatprep.subr.mxu0 0.0
    %2916 = vmatpush1.msra.mxu0 0.0
    %2917 = vmatprep.subr.mxu0 0.0
    %2918 = vmatpush1.msra.mxu0 0.0
    %2919 = vmatprep.subr.mxu0 0.0
    %2920 = vmatpush1.msra.mxu0 0.0
    %2921 = vmatprep.subr.mxu0 0.0
    %2922 = vmatpush1.msra.mxu0 0.0
    %2923 = vmatprep.subr.mxu0 0.0
    %2924 = vmatpush1.msra.mxu0 0.0
    %2925 = vmatprep.subr.mxu0 0.0
    %2926 = vmatpush1.msra.mxu0 0.0
    %2927 = vmatprep.subr.mxu0 0.0
    %2928 = vmatpush1.msra.mxu0 0.0
    %2929 = vmatprep.subr.mxu0 0.0
    %2930 = vmatpush1.msra.mxu0 0.0
    %2931 = vmatprep.subr.mxu0 0.0
    %2932 = vmatpush1.msra.mxu0 0.0
    %2933 = vmatprep.subr.mxu0 0.0
    %2934 = vmatpush1.msra.mxu0 0.0
    %2935 = vmatprep.subr.mxu0 0.0
    %2936 = vmatpush1.msra.mxu0 0.0
    %2937 = vmatprep.subr.mxu0 0.0
    %2938 = vmatpush1.msra.mxu0 0.0
    %2939 = vmatprep.subr.mxu0 0.0
    %2940 = vmatpush1.msra.mxu0 0.0
    %2941 = vmatprep.subr.mxu0 0.0
    %2942 = vmatpush1.msra.mxu0 0.0
    %2943 = vmatprep.subr.mxu0 0.0
    %2944 = vmatpush1.msra.mxu0 0.0
    %2945 = vmatprep.subr.mxu0 0.0
    %2946 = vmatpush1.msra.mxu0 0.0
    %2947 = vmatprep.subr.mxu0 0.0
    %2948 = vmatpush1.msra.mxu0 0.0
    %2949 = vmatprep.subr.mxu0 0.0
    %2950 = vmatpush1.msra.mxu0 0.0
    %2951 = vmatprep.subr.mxu0 0.0
    %2952 = vmatpush1.msra.mxu0 0.0
    %2953 = vmatprep.subr.mxu0 0.0
    %2954 = vmatpush1.msra.mxu0 0.0
    %2955 = vmatprep.subr.mxu0 0.0
    %2956 = vmatpush1.msra.mxu0 0.0
    %2957 = vmatprep.subr.mxu0 0.0
    %2958 = vmatpush1.msra.mxu0 0.0
    %2959 = vmatprep.subr.mxu0 0.0
    %2960 = vmatpush1.msra.mxu0 0.0
    %2961 = vmatprep.subr.mxu0 0.0
    %2962 = vmatpush1.msra.mxu0 0.0
    %2963 = vmatprep.subr.mxu0 0.0
    %2964 = vmatpush1.msra.mxu0 0.0
    %2965 = vmatprep.subr.mxu0 0.0
    %2966 = vmatpush1.msra.mxu0 0.0
    %2967 = vmatprep.mubr.f32.mxu0 0.0
    %2968 = vmatmul.mubr.f32.gmra.mrb[0].mxu0 %v2901
    %v2969 = vpop.f32.mrb[0].mxu0
    %v2970 = vadd.f32 0.0, %v2969
    %v2971 = vpop.f32.mrb[0].mxu0
    %2972 = vdwg.mxu0
    %v2973 = vadd.f32 %v2800, %v2970
    %v2974 = vtanh.pop %v2973
    %v2975 = vxor.u32 %v2973, 2147483648
    %v2976 = vmul.f32 %v2975, 1.442695
    %v2977 = vpow.pop %v2976
    %v2978 = vadd.f32 %v2977, 1.0
    %v2979 = vrcp.pop %v2978
    %v2980 = vmul.f32 1.0, %v2979
    %v2981 = vsel %vm111, %v2974, %v2980
    %v2982 = vmul.f32 %v2981, %v2782
    %2984 = vrot.lane.b32.xlu0 %v2981, 64
    %v2985 = vpop.permute.xlu0 %2984
    %v2987 = vmul.f32 %v2981, %v2985
    %2989 = vrot.lane.b32.xlu0 %v2987, 32
    %v2990 = vpop.permute.xlu0 %2989
    %v2992 = vadd.f32 %v2982, %v2990
    %v2993 = vtanh.pop %v2992
    %2995 = vrot.lane.b32.xlu0 %v2993, 64
    %v2996 = vpop.permute.xlu0 %2995
    %v2998 = vmul.f32 %v2981, %v2996
    %3000 = vrot.lane.b32.xlu0 %v2898, 32
    %v3001 = vpop.permute.xlu0 %3000
    %3003 = vst.msk [vmem:[#allocation3 + $0x18] sm:$0xff] %vm300, %v3001
    %3005 = vrot.lane.b32.xlu0 %v2998, 64
    %v3006 = vpop.permute.xlu0 %3005
    %3008 = vst.msk [vmem:[#allocation3 + $0x20] sm:$0xff] %vm505, %v3006
    %v3009 = vld [vmem:[#allocation4 + $0x40] sm:$0xff]
    %v3010 = vld [vmem:[#allocation4 + $0x38] sm:$0xff]
    %v3011 = vsel %vm300, %v3001, 0
    %3013 = vmatprep.subr.mxu0 0.0
    %3014 = vmatpush1.msra.mxu0 %v2167
    %3015 = vmatprep.subr.mxu0 0.0
    %3016 = vmatpush1.msra.mxu0 %v2168
    %3017 = vmatprep.subr.mxu0 0.0
    %3018 = vmatpush1.msra.mxu0 %v2169
    %3019 = vmatprep.subr.mxu0 0.0
    %3020 = vmatpush1.msra.mxu0 %v2170
    %3021 = vmatprep.subr.mxu0 0.0
    %3022 = vmatpush1.msra.mxu0 0.0
    %3023 = vmatprep.subr.mxu0 0.0
    %3024 = vmatpush1.msra.mxu0 0.0
    %3025 = vmatprep.subr.mxu0 0.0
    %3026 = vmatpush1.msra.mxu0 0.0
    %3027 = vmatprep.subr.mxu0 0.0
    %3028 = vmatpush1.msra.mxu0 0.0
    %3029 = vmatprep.subr.mxu0 0.0
    %3030 = vmatpush1.msra.mxu0 0.0
    %3031 = vmatprep.subr.mxu0 0.0
    %3032 = vmatpush1.msra.mxu0 0.0
    %3033 = vmatprep.subr.mxu0 0.0
    %3034 = vmatpush1.msra.mxu0 0.0
    %3035 = vmatprep.subr.mxu0 0.0
    %3036 = vmatpush1.msra.mxu0 0.0
    %3037 = vmatprep.subr.mxu0 0.0
    %3038 = vmatpush1.msra.mxu0 0.0
    %3039 = vmatprep.subr.mxu0 0.0
    %3040 = vmatpush1.msra.mxu0 0.0
    %3041 = vmatprep.subr.mxu0 0.0
    %3042 = vmatpush1.msra.mxu0 0.0
    %3043 = vmatprep.subr.mxu0 0.0
    %3044 = vmatpush1.msra.mxu0 0.0
    %3045 = vmatprep.subr.mxu0 0.0
    %3046 = vmatpush1.msra.mxu0 0.0
    %3047 = vmatprep.subr.mxu0 0.0
    %3048 = vmatpush1.msra.mxu0 0.0
    %3049 = vmatprep.subr.mxu0 0.0
    %3050 = vmatpush1.msra.mxu0 0.0
    %3051 = vmatprep.subr.mxu0 0.0
    %3052 = vmatpush1.msra.mxu0 0.0
    %3053 = vmatprep.subr.mxu0 0.0
    %3054 = vmatpush1.msra.mxu0 0.0
    %3055 = vmatprep.subr.mxu0 0.0
    %3056 = vmatpush1.msra.mxu0 0.0
    %3057 = vmatprep.subr.mxu0 0.0
    %3058 = vmatpush1.msra.mxu0 0.0
    %3059 = vmatprep.subr.mxu0 0.0
    %3060 = vmatpush1.msra.mxu0 0.0
    %3061 = vmatprep.subr.mxu0 0.0
    %3062 = vmatpush1.msra.mxu0 0.0
    %3063 = vmatprep.subr.mxu0 0.0
    %3064 = vmatpush1.msra.mxu0 0.0
    %3065 = vmatprep.subr.mxu0 0.0
    %3066 = vmatpush1.msra.mxu0 0.0
    %3067 = vmatprep.subr.mxu0 0.0
    %3068 = vmatpush1.msra.mxu0 0.0
    %3069 = vmatprep.subr.mxu0 0.0
    %3070 = vmatpush1.msra.mxu0 0.0
    %3071 = vmatprep.subr.mxu0 0.0
    %3072 = vmatpush1.msra.mxu0 0.0
    %3073 = vmatprep.subr.mxu0 0.0
    %3074 = vmatpush1.msra.mxu0 0.0
    %3075 = vmatprep.subr.mxu0 0.0
    %3076 = vmatpush1.msra.mxu0 0.0
    %3077 = vmatprep.mubr.f32.mxu0 0.0
    %3078 = vmatmul.mubr.f32.gmra.mrb[0].mxu0 %v3011
    %v3079 = vpop.f32.mrb[0].mxu0
    %v3080 = vadd.f32 0.0, %v3079
    %v3081 = vpop.f32.mrb[0].mxu0
    %3082 = vdwg.mxu0
    %v3083 = vadd.f32 %v3009, %v3080
    %v3084 = vtanh.pop %v3083
    %v3085 = vxor.u32 %v3083, 2147483648
    %v3086 = vmul.f32 %v3085, 1.442695
    %v3087 = vpow.pop %v3086
    %v3088 = vadd.f32 %v3087, 1.0
    %v3089 = vrcp.pop %v3088
    %v3090 = vmul.f32 1.0, %v3089
    %v3091 = vsel %vm111, %v3084, %v3090
    %v3092 = vmul.f32 %v3091, %v2892
    %3094 = vrot.lane.b32.xlu0 %v3091, 64
    %v3095 = vpop.permute.xlu0 %3094
    %v3097 = vmul.f32 %v3091, %v3095
    %3099 = vrot.lane.b32.xlu0 %v3097, 32
    %v3100 = vpop.permute.xlu0 %3099
    %v3102 = vadd.f32 %v3092, %v3100
    %v3103 = vtanh.pop %v3102
    %3105 = vrot.lane.b32.xlu0 %v3103, 64
    %v3106 = vpop.permute.xlu0 %3105
    %v3108 = vmul.f32 %v3091, %v3106
    %3109 = vrot.lane.b32.xlu0 %v2998, 32
    %v3110 = vpop.permute.xlu0 %3109
    %v3111 = vsel %vm300, %v3110, 0
    %3113 = vmatprep.subr.mxu0 0.0
    %3114 = vmatpush1.msra.mxu0 %v2171
    %3115 = vmatprep.subr.mxu0 0.0
    %3116 = vmatpush1.msra.mxu0 %v2172
    %3117 = vmatprep.subr.mxu0 0.0
    %3118 = vmatpush1.msra.mxu0 %v2173
    %3119 = vmatprep.subr.mxu0 0.0
    %3120 = vmatpush1.msra.mxu0 %v2174
    %3121 = vmatprep.subr.mxu0 0.0
    %3122 = vmatpush1.msra.mxu0 0.0
    %3123 = vmatprep.subr.mxu0 0.0
    %3124 = vmatpush1.msra.mxu0 0.0
    %3125 = vmatprep.subr.mxu0 0.0
    %3126 = vmatpush1.msra.mxu0 0.0
    %3127 = vmatprep.subr.mxu0 0.0
    %3128 = vmatpush1.msra.mxu0 0.0
    %3129 = vmatprep.subr.mxu0 0.0
    %3130 = vmatpush1.msra.mxu0 0.0
    %3131 = vmatprep.subr.mxu0 0.0
    %3132 = vmatpush1.msra.mxu0 0.0
    %3133 = vmatprep.subr.mxu0 0.0
    %3134 = vmatpush1.msra.mxu0 0.0
    %3135 = vmatprep.subr.mxu0 0.0
    %3136 = vmatpush1.msra.mxu0 0.0
    %3137 = vmatprep.subr.mxu0 0.0
    %3138 = vmatpush1.msra.mxu0 0.0
    %3139 = vmatprep.subr.mxu0 0.0
    %3140 = vmatpush1.msra.mxu0 0.0
    %3141 = vmatprep.subr.mxu0 0.0
    %3142 = vmatpush1.msra.mxu0 0.0
    %3143 = vmatprep.subr.mxu0 0.0
    %3144 = vmatpush1.msra.mxu0 0.0
    %3145 = vmatprep.subr.mxu0 0.0
    %3146 = vmatpush1.msra.mxu0 0.0
    %3147 = vmatprep.subr.mxu0 0.0
    %3148 = vmatpush1.msra.mxu0 0.0
    %3149 = vmatprep.subr.mxu0 0.0
    %3150 = vmatpush1.msra.mxu0 0.0
    %3151 = vmatprep.subr.mxu0 0.0
    %3152 = vmatpush1.msra.mxu0 0.0
    %3153 = vmatprep.subr.mxu0 0.0
    %3154 = vmatpush1.msra.mxu0 0.0
    %3155 = vmatprep.subr.mxu0 0.0
    %3156 = vmatpush1.msra.mxu0 0.0
    %3157 = vmatprep.subr.mxu0 0.0
    %3158 = vmatpush1.msra.mxu0 0.0
    %3159 = vmatprep.subr.mxu0 0.0
    %3160 = vmatpush1.msra.mxu0 0.0
    %3161 = vmatprep.subr.mxu0 0.0
    %3162 = vmatpush1.msra.mxu0 0.0
    %3163 = vmatprep.subr.mxu0 0.0
    %3164 = vmatpush1.msra.mxu0 0.0
    %3165 = vmatprep.subr.mxu0 0.0
    %3166 = vmatpush1.msra.mxu0 0.0
    %3167 = vmatprep.subr.mxu0 0.0
    %3168 = vmatpush1.msra.mxu0 0.0
    %3169 = vmatprep.subr.mxu0 0.0
    %3170 = vmatpush1.msra.mxu0 0.0
    %3171 = vmatprep.subr.mxu0 0.0
    %3172 = vmatpush1.msra.mxu0 0.0
    %3173 = vmatprep.subr.mxu0 0.0
    %3174 = vmatpush1.msra.mxu0 0.0
    %3175 = vmatprep.subr.mxu0 0.0
    %3176 = vmatpush1.msra.mxu0 0.0
    %3177 = vmatprep.mubr.f32.mxu0 0.0
    %3178 = vmatmul.mubr.f32.gmra.mrb[0].mxu0 %v3111
    %v3179 = vpop.f32.mrb[0].mxu0
    %v3180 = vadd.f32 0.0, %v3179
    %v3181 = vpop.f32.mrb[0].mxu0
    %3182 = vdwg.mxu0
    %v3183 = vadd.f32 %v3010, %v3180
    %v3184 = vtanh.pop %v3183
    %v3185 = vxor.u32 %v3183, 2147483648
    %v3186 = vmul.f32 %v3185, 1.442695
    %v3187 = vpow.pop %v3186
    %v3188 = vadd.f32 %v3187, 1.0
    %v3189 = vrcp.pop %v3188
    %v3190 = vmul.f32 1.0, %v3189
    %v3191 = vsel %vm111, %v3184, %v3190
    %v3192 = vmul.f32 %v3191, %v2992
    %3194 = vrot.lane.b32.xlu0 %v3191, 64
    %v3195 = vpop.permute.xlu0 %3194
    %v3197 = vmul.f32 %v3191, %v3195
    %3199 = vrot.lane.b32.xlu0 %v3197, 32
    %v3200 = vpop.permute.xlu0 %3199
    %v3202 = vadd.f32 %v3192, %v3200
    %v3203 = vtanh.pop %v3202
    %3205 = vrot.lane.b32.xlu0 %v3203, 64
    %v3206 = vpop.permute.xlu0 %3205
    %v3208 = vmul.f32 %v3191, %v3206
    %3210 = vrot.lane.b32.xlu0 %v3108, 32
    %v3211 = vpop.permute.xlu0 %3210
    %3213 = vst.msk [vmem:[#allocation3 + $0x20] sm:$0xff] %vm300, %v3211
    %3215 = vrot.lane.b32.xlu0 %v3208, 64
    %v3216 = vpop.permute.xlu0 %3215
    %3218 = vst.msk [vmem:[#allocation3 + $0x18] sm:$0xff] %vm505, %v3216
    %v3219 = vld [vmem:[#allocation4 + $0x50] sm:$0xff]
    %v3220 = vld [vmem:[#allocation4 + $0x28] sm:$0xff]
    %v3221 = vsel %vm300, %v3211, 0
    %3223 = vmatprep.subr.mxu0 0.0
    %3224 = vmatpush1.msra.mxu0 %v2167
    %3225 = vmatprep.subr.mxu0 0.0
    %3226 = vmatpush1.msra.mxu0 %v2168
    %3227 = vmatprep.subr.mxu0 0.0
    %3228 = vmatpush1.msra.mxu0 %v2169
    %3229 = vmatprep.subr.mxu0 0.0
    %3230 = vmatpush1.msra.mxu0 %v2170
    %3231 = vmatprep.subr.mxu0 0.0
    %3232 = vmatpush1.msra.mxu0 0.0
    %3233 = vmatprep.subr.mxu0 0.0
    %3234 = vmatpush1.msra.mxu0 0.0
    %3235 = vmatprep.subr.mxu0 0.0
    %3236 = vmatpush1.msra.mxu0 0.0
    %3237 = vmatprep.subr.mxu0 0.0
    %3238 = vmatpush1.msra.mxu0 0.0
    %3239 = vmatprep.subr.mxu0 0.0
    %3240 = vmatpush1.msra.mxu0 0.0
    %3241 = vmatprep.subr.mxu0 0.0
    %3242 = vmatpush1.msra.mxu0 0.0
    %3243 = vmatprep.subr.mxu0 0.0
    %3244 = vmatpush1.msra.mxu0 0.0
    %3245 = vmatprep.subr.mxu0 0.0
    %3246 = vmatpush1.msra.mxu0 0.0
    %3247 = vmatprep.subr.mxu0 0.0
    %3248 = vmatpush1.msra.mxu0 0.0
    %3249 = vmatprep.subr.mxu0 0.0
    %3250 = vmatpush1.msra.mxu0 0.0
    %3251 = vmatprep.subr.mxu0 0.0
    %3252 = vmatpush1.msra.mxu0 0.0
    %3253 = vmatprep.subr.mxu0 0.0
    %3254 = vmatpush1.msra.mxu0 0.0
    %3255 = vmatprep.subr.mxu0 0.0
    %3256 = vmatpush1.msra.mxu0 0.0
    %3257 = vmatprep.subr.mxu0 0.0
    %3258 = vmatpush1.msra.mxu0 0.0
    %3259 = vmatprep.subr.mxu0 0.0
    %3260 = vmatpush1.msra.mxu0 0.0
    %3261 = vmatprep.subr.mxu0 0.0
    %3262 = vmatpush1.msra.mxu0 0.0
    %3263 = vmatprep.subr.mxu0 0.0
    %3264 = vmatpush1.msra.mxu0 0.0
    %3265 = vmatprep.subr.mxu0 0.0
    %3266 = vmatpush1.msra.mxu0 0.0
    %3267 = vmatprep.subr.mxu0 0.0
    %3268 = vmatpush1.msra.mxu0 0.0
    %3269 = vmatprep.subr.mxu0 0.0
    %3270 = vmatpush1.msra.mxu0 0.0
    %3271 = vmatprep.subr.mxu0 0.0
    %3272 = vmatpush1.msra.mxu0 0.0
    %3273 = vmatprep.subr.mxu0 0.0
    %3274 = vmatpush1.msra.mxu0 0.0
    %3275 = vmatprep.subr.mxu0 0.0
    %3276 = vmatpush1.msra.mxu0 0.0
    %3277 = vmatprep.subr.mxu0 0.0
    %3278 = vmatpush1.msra.mxu0 0.0
    %3279 = vmatprep.subr.mxu0 0.0
    %3280 = vmatpush1.msra.mxu0 0.0
    %3281 = vmatprep.subr.mxu0 0.0
    %3282 = vmatpush1.msra.mxu0 0.0
    %3283 = vmatprep.subr.mxu0 0.0
    %3284 = vmatpush1.msra.mxu0 0.0
    %3285 = vmatprep.subr.mxu0 0.0
    %3286 = vmatpush1.msra.mxu0 0.0
    %3287 = vmatprep.mubr.f32.mxu0 0.0
    %3288 = vmatmul.mubr.f32.gmra.mrb[0].mxu0 %v3221
    %v3289 = vpop.f32.mrb[0].mxu0
    %v3290 = vadd.f32 0.0, %v3289
    %v3291 = vpop.f32.mrb[0].mxu0
    %3292 = vdwg.mxu0
    %v3293 = vadd.f32 %v3219, %v3290
    %v3294 = vtanh.pop %v3293
    %v3295 = vxor.u32 %v3293, 2147483648
    %v3296 = vmul.f32 %v3295, 1.442695
    %v3297 = vpow.pop %v3296
    %v3298 = vadd.f32 %v3297, 1.0
    %v3299 = vrcp.pop %v3298
    %v3300 = vmul.f32 1.0, %v3299
    %v3301 = vsel %vm111, %v3294, %v3300
    %v3302 = vmul.f32 %v3301, %v3102
    %3304 = vrot.lane.b32.xlu0 %v3301, 64
    %v3305 = vpop.permute.xlu0 %3304
    %v3307 = vmul.f32 %v3301, %v3305
    %3309 = vrot.lane.b32.xlu0 %v3307, 32
    %v3310 = vpop.permute.xlu0 %3309
    %v3312 = vadd.f32 %v3302, %v3310
    %v3313 = vtanh.pop %v3312
    %3315 = vrot.lane.b32.xlu0 %v3313, 64
    %v3316 = vpop.permute.xlu0 %3315
    %v3318 = vmul.f32 %v3301, %v3316
    %3319 = vrot.lane.b32.xlu0 %v3208, 32
    %v3320 = vpop.permute.xlu0 %3319
    %v3321 = vsel %vm300, %v3320, 0
    %3323 = vmatprep.subr.mxu0 0.0
    %3324 = vmatpush1.msra.mxu0 %v2171
    %3325 = vmatprep.subr.mxu0 0.0
    %3326 = vmatpush1.msra.mxu0 %v2172
    %3327 = vmatprep.subr.mxu0 0.0
    %3328 = vmatpush1.msra.mxu0 %v2173
    %3329 = vmatprep.subr.mxu0 0.0
    %3330 = vmatpush1.msra.mxu0 %v2174
    %3331 = vmatprep.subr.mxu0 0.0
    %3332 = vmatpush1.msra.mxu0 0.0
    %3333 = vmatprep.subr.mxu0 0.0
    %3334 = vmatpush1.msra.mxu0 0.0
    %3335 = vmatprep.subr.mxu0 0.0
    %3336 = vmatpush1.msra.mxu0 0.0
    %3337 = vmatprep.subr.mxu0 0.0
    %3338 = vmatpush1.msra.mxu0 0.0
    %3339 = vmatprep.subr.mxu0 0.0
    %3340 = vmatpush1.msra.mxu0 0.0
    %3341 = vmatprep.subr.mxu0 0.0
    %3342 = vmatpush1.msra.mxu0 0.0
    %3343 = vmatprep.subr.mxu0 0.0
    %3344 = vmatpush1.msra.mxu0 0.0
    %3345 = vmatprep.subr.mxu0 0.0
    %3346 = vmatpush1.msra.mxu0 0.0
    %3347 = vmatprep.subr.mxu0 0.0
    %3348 = vmatpush1.msra.mxu0 0.0
    %3349 = vmatprep.subr.mxu0 0.0
    %3350 = vmatpush1.msra.mxu0 0.0
    %3351 = vmatprep.subr.mxu0 0.0
    %3352 = vmatpush1.msra.mxu0 0.0
    %3353 = vmatprep.subr.mxu0 0.0
    %3354 = vmatpush1.msra.mxu0 0.0
    %3355 = vmatprep.subr.mxu0 0.0
    %3356 = vmatpush1.msra.mxu0 0.0
    %3357 = vmatprep.subr.mxu0 0.0
    %3358 = vmatpush1.msra.mxu0 0.0
    %3359 = vmatprep.subr.mxu0 0.0
    %3360 = vmatpush1.msra.mxu0 0.0
    %3361 = vmatprep.subr.mxu0 0.0
    %3362 = vmatpush1.msra.mxu0 0.0
    %3363 = vmatprep.subr.mxu0 0.0
    %3364 = vmatpush1.msra.mxu0 0.0
    %3365 = vmatprep.subr.mxu0 0.0
    %3366 = vmatpush1.msra.mxu0 0.0
    %3367 = vmatprep.subr.mxu0 0.0
    %3368 = vmatpush1.msra.mxu0 0.0
    %3369 = vmatprep.subr.mxu0 0.0
    %3370 = vmatpush1.msra.mxu0 0.0
    %3371 = vmatprep.subr.mxu0 0.0
    %3372 = vmatpush1.msra.mxu0 0.0
    %3373 = vmatprep.subr.mxu0 0.0
    %3374 = vmatpush1.msra.mxu0 0.0
    %3375 = vmatprep.subr.mxu0 0.0
    %3376 = vmatpush1.msra.mxu0 0.0
    %3377 = vmatprep.subr.mxu0 0.0
    %3378 = vmatpush1.msra.mxu0 0.0
    %3379 = vmatprep.subr.mxu0 0.0
    %3380 = vmatpush1.msra.mxu0 0.0
    %3381 = vmatprep.subr.mxu0 0.0
    %3382 = vmatpush1.msra.mxu0 0.0
    %3383 = vmatprep.subr.mxu0 0.0
    %3384 = vmatpush1.msra.mxu0 0.0
    %3385 = vmatprep.subr.mxu0 0.0
    %3386 = vmatpush1.msra.mxu0 0.0
    %3387 = vmatprep.mubr.f32.mxu0 0.0
    %3388 = vmatmul.mubr.f32.gmra.mrb[0].mxu0 %v3321
    %v3389 = vpop.f32.mrb[0].mxu0
    %v3390 = vadd.f32 0.0, %v3389
    %v3391 = vpop.f32.mrb[0].mxu0
    %3392 = vdwg.mxu0
    %v3393 = vadd.f32 %v3220, %v3390
    %v3394 = vtanh.pop %v3393
    %v3395 = vxor.u32 %v3393, 2147483648
    %v3396 = vmul.f32 %v3395, 1.442695
    %v3397 = vpow.pop %v3396
    %v3398 = vadd.f32 %v3397, 1.0
    %v3399 = vrcp.pop %v3398
    %v3400 = vmul.f32 1.0, %v3399
    %v3401 = vsel %vm111, %v3394, %v3400
    %v3402 = vmul.f32 %v3401, %v3202
    %3404 = vrot.lane.b32.xlu0 %v3401, 64
    %v3405 = vpop.permute.xlu0 %3404
    %v3407 = vmul.f32 %v3401, %v3405
    %3409 = vrot.lane.b32.xlu0 %v3407, 32
    %v3410 = vpop.permute.xlu0 %3409
    %v3412 = vadd.f32 %v3402, %v3410
    %v3413 = vtanh.pop %v3412
    %3415 = vrot.lane.b32.xlu0 %v3413, 64
    %v3416 = vpop.permute.xlu0 %3415
    %v3418 = vmul.f32 %v3401, %v3416
    %3420 = vrot.lane.b32.xlu0 %v3318, 32
    %v3421 = vpop.permute.xlu0 %3420
    %3423 = vst.msk [vmem:[#allocation3 + $0x28] sm:$0xff] %vm300, %v3421
    %3425 = vrot.lane.b32.xlu0 %v3418, 64
    %v3426 = vpop.permute.xlu0 %3425
    %3428 = vst.msk [vmem:[#allocation3 + $0x10] sm:$0xff] %vm505, %v3426
    %v3429 = vld [vmem:[#allocation4 + $0x60] sm:$0xff]
    %v3430 = vld [vmem:[#allocation4 + $0x18] sm:$0xff]
    %v3431 = vsel %vm300, %v3421, 0
    %3433 = vmatprep.subr.mxu0 0.0
    %3434 = vmatpush1.msra.mxu0 %v2167
    %3435 = vmatprep.subr.mxu0 0.0
    %3436 = vmatpush1.msra.mxu0 %v2168
    %3437 = vmatprep.subr.mxu0 0.0
    %3438 = vmatpush1.msra.mxu0 %v2169
    %3439 = vmatprep.subr.mxu0 0.0
    %3440 = vmatpush1.msra.mxu0 %v2170
    %3441 = vmatprep.subr.mxu0 0.0
    %3442 = vmatpush1.msra.mxu0 0.0
    %3443 = vmatprep.subr.mxu0 0.0
    %3444 = vmatpush1.msra.mxu0 0.0
    %3445 = vmatprep.subr.mxu0 0.0
    %3446 = vmatpush1.msra.mxu0 0.0
    %3447 = vmatprep.subr.mxu0 0.0
    %3448 = vmatpush1.msra.mxu0 0.0
    %3449 = vmatprep.subr.mxu0 0.0
    %3450 = vmatpush1.msra.mxu0 0.0
    %3451 = vmatprep.subr.mxu0 0.0
    %3452 = vmatpush1.msra.mxu0 0.0
    %3453 = vmatprep.subr.mxu0 0.0
    %3454 = vmatpush1.msra.mxu0 0.0
    %3455 = vmatprep.subr.mxu0 0.0
    %3456 = vmatpush1.msra.mxu0 0.0
    %3457 = vmatprep.subr.mxu0 0.0
    %3458 = vmatpush1.msra.mxu0 0.0
    %3459 = vmatprep.subr.mxu0 0.0
    %3460 = vmatpush1.msra.mxu0 0.0
    %3461 = vmatprep.subr.mxu0 0.0
    %3462 = vmatpush1.msra.mxu0 0.0
    %3463 = vmatprep.subr.mxu0 0.0
    %3464 = vmatpush1.msra.mxu0 0.0
    %3465 = vmatprep.subr.mxu0 0.0
    %3466 = vmatpush1.msra.mxu0 0.0
    %3467 = vmatprep.subr.mxu0 0.0
    %3468 = vmatpush1.msra.mxu0 0.0
    %3469 = vmatprep.subr.mxu0 0.0
    %3470 = vmatpush1.msra.mxu0 0.0
    %3471 = vmatprep.subr.mxu0 0.0
    %3472 = vmatpush1.msra.mxu0 0.0
    %3473 = vmatprep.subr.mxu0 0.0
    %3474 = vmatpush1.msra.mxu0 0.0
    %3475 = vmatprep.subr.mxu0 0.0
    %3476 = vmatpush1.msra.mxu0 0.0
    %3477 = vmatprep.subr.mxu0 0.0
    %3478 = vmatpush1.msra.mxu0 0.0
    %3479 = vmatprep.subr.mxu0 0.0
    %3480 = vmatpush1.msra.mxu0 0.0
    %3481 = vmatprep.subr.mxu0 0.0
    %3482 = vmatpush1.msra.mxu0 0.0
    %3483 = vmatprep.subr.mxu0 0.0
    %3484 = vmatpush1.msra.mxu0 0.0
    %3485 = vmatprep.subr.mxu0 0.0
    %3486 = vmatpush1.msra.mxu0 0.0
    %3487 = vmatprep.subr.mxu0 0.0
    %3488 = vmatpush1.msra.mxu0 0.0
    %3489 = vmatprep.subr.mxu0 0.0
    %3490 = vmatpush1.msra.mxu0 0.0
    %3491 = vmatprep.subr.mxu0 0.0
    %3492 = vmatpush1.msra.mxu0 0.0
    %3493 = vmatprep.subr.mxu0 0.0
    %3494 = vmatpush1.msra.mxu0 0.0
    %3495 = vmatprep.subr.mxu0 0.0
    %3496 = vmatpush1.msra.mxu0 0.0
    %3497 = vmatprep.mubr.f32.mxu0 0.0
    %3498 = vmatmul.mubr.f32.gmra.mrb[0].mxu0 %v3431
    %v3499 = vpop.f32.mrb[0].mxu0
    %v3500 = vadd.f32 0.0, %v3499
    %v3501 = vpop.f32.mrb[0].mxu0
    %3502 = vdwg.mxu0
    %v3503 = vadd.f32 %v3429, %v3500
    %v3504 = vtanh.pop %v3503
    %v3505 = vxor.u32 %v3503, 2147483648
    %v3506 = vmul.f32 %v3505, 1.442695
    %v3507 = vpow.pop %v3506
    %v3508 = vadd.f32 %v3507, 1.0
    %v3509 = vrcp.pop %v3508
    %v3510 = vmul.f32 1.0, %v3509
    %v3511 = vsel %vm111, %v3504, %v3510
    %v3512 = vmul.f32 %v3511, %v3312
    %3514 = vrot.lane.b32.xlu0 %v3511, 64
    %v3515 = vpop.permute.xlu0 %3514
    %v3517 = vmul.f32 %v3511, %v3515
    %3519 = vrot.lane.b32.xlu0 %v3517, 32
    %v3520 = vpop.permute.xlu0 %3519
    %v3522 = vadd.f32 %v3512, %v3520
    %v3523 = vtanh.pop %v3522
    %3525 = vrot.lane.b32.xlu0 %v3523, 64
    %v3526 = vpop.permute.xlu0 %3525
    %v3528 = vmul.f32 %v3511, %v3526
    %3529 = vrot.lane.b32.xlu0 %v3418, 32
    %v3530 = vpop.permute.xlu0 %3529
    %v3531 = vsel %vm300, %v3530, 0
    %3533 = vmatprep.subr.mxu0 0.0
    %3534 = vmatpush1.msra.mxu0 %v2171
    %3535 = vmatprep.subr.mxu0 0.0
    %3536 = vmatpush1.msra.mxu0 %v2172
    %3537 = vmatprep.subr.mxu0 0.0
    %3538 = vmatpush1.msra.mxu0 %v2173
    %3539 = vmatprep.subr.mxu0 0.0
    %3540 = vmatpush1.msra.mxu0 %v2174
    %3541 = vmatprep.subr.mxu0 0.0
    %3542 = vmatpush1.msra.mxu0 0.0
    %3543 = vmatprep.subr.mxu0 0.0
    %3544 = vmatpush1.msra.mxu0 0.0
    %3545 = vmatprep.subr.mxu0 0.0
    %3546 = vmatpush1.msra.mxu0 0.0
    %3547 = vmatprep.subr.mxu0 0.0
    %3548 = vmatpush1.msra.mxu0 0.0
    %3549 = vmatprep.subr.mxu0 0.0
    %3550 = vmatpush1.msra.mxu0 0.0
    %3551 = vmatprep.subr.mxu0 0.0
    %3552 = vmatpush1.msra.mxu0 0.0
    %3553 = vmatprep.subr.mxu0 0.0
    %3554 = vmatpush1.msra.mxu0 0.0
    %3555 = vmatprep.subr.mxu0 0.0
    %3556 = vmatpush1.msra.mxu0 0.0
    %3557 = vmatprep.subr.mxu0 0.0
    %3558 = vmatpush1.msra.mxu0 0.0
    %3559 = vmatprep.subr.mxu0 0.0
    %3560 = vmatpush1.msra.mxu0 0.0
    %3561 = vmatprep.subr.mxu0 0.0
    %3562 = vmatpush1.msra.mxu0 0.0
    %3563 = vmatprep.subr.mxu0 0.0
    %3564 = vmatpush1.msra.mxu0 0.0
    %3565 = vmatprep.subr.mxu0 0.0
    %3566 = vmatpush1.msra.mxu0 0.0
    %3567 = vmatprep.subr.mxu0 0.0
    %3568 = vmatpush1.msra.mxu0 0.0
    %3569 = vmatprep.subr.mxu0 0.0
    %3570 = vmatpush1.msra.mxu0 0.0
    %3571 = vmatprep.subr.mxu0 0.0
    %3572 = vmatpush1.msra.mxu0 0.0
    %3573 = vmatprep.subr.mxu0 0.0
    %3574 = vmatpush1.msra.mxu0 0.0
    %3575 = vmatprep.subr.mxu0 0.0
    %3576 = vmatpush1.msra.mxu0 0.0
    %3577 = vmatprep.subr.mxu0 0.0
    %3578 = vmatpush1.msra.mxu0 0.0
    %3579 = vmatprep.subr.mxu0 0.0
    %3580 = vmatpush1.msra.mxu0 0.0
    %3581 = vmatprep.subr.mxu0 0.0
    %3582 = vmatpush1.msra.mxu0 0.0
    %3583 = vmatprep.subr.mxu0 0.0
    %3584 = vmatpush1.msra.mxu0 0.0
    %3585 = vmatprep.subr.mxu0 0.0
    %3586 = vmatpush1.msra.mxu0 0.0
    %3587 = vmatprep.subr.mxu0 0.0
    %3588 = vmatpush1.msra.mxu0 0.0
    %3589 = vmatprep.subr.mxu0 0.0
    %3590 = vmatpush1.msra.mxu0 0.0
    %3591 = vmatprep.subr.mxu0 0.0
    %3592 = vmatpush1.msra.mxu0 0.0
    %3593 = vmatprep.subr.mxu0 0.0
    %3594 = vmatpush1.msra.mxu0 0.0
    %3595 = vmatprep.subr.mxu0 0.0
    %3596 = vmatpush1.msra.mxu0 0.0
    %3597 = vmatprep.mubr.f32.mxu0 0.0
    %3598 = vmatmul.mubr.f32.gmra.mrb[0].mxu0 %v3531
    %v3599 = vpop.f32.mrb[0].mxu0
    %v3600 = vadd.f32 0.0, %v3599
    %v3601 = vpop.f32.mrb[0].mxu0
    %3602 = vdwg.mxu0
    %v3603 = vadd.f32 %v3430, %v3600
    %v3604 = vtanh.pop %v3603
    %v3605 = vxor.u32 %v3603, 2147483648
    %v3606 = vmul.f32 %v3605, 1.442695
    %v3607 = vpow.pop %v3606
    %v3608 = vadd.f32 %v3607, 1.0
    %v3609 = vrcp.pop %v3608
    %v3610 = vmul.f32 1.0, %v3609
    %v3611 = vsel %vm111, %v3604, %v3610
    %v3612 = vmul.f32 %v3611, %v3412
    %3614 = vrot.lane.b32.xlu0 %v3611, 64
    %v3615 = vpop.permute.xlu0 %3614
    %v3617 = vmul.f32 %v3611, %v3615
    %3619 = vrot.lane.b32.xlu0 %v3617, 32
    %v3620 = vpop.permute.xlu0 %3619
    %v3622 = vadd.f32 %v3612, %v3620
    %v3623 = vtanh.pop %v3622
    %3625 = vrot.lane.b32.xlu0 %v3623, 64
    %v3626 = vpop.permute.xlu0 %3625
    %v3628 = vmul.f32 %v3611, %v3626
    %3630 = vrot.lane.b32.xlu0 %v3528, 32
    %v3631 = vpop.permute.xlu0 %3630
    %3633 = vst.msk [vmem:[#allocation3 + $0x30] sm:$0xff] %vm300, %v3631
    %3635 = vrot.lane.b32.xlu0 %v3628, 64
    %v3636 = vpop.permute.xlu0 %3635
    %3638 = vst.msk [vmem:[#allocation3 + $0x8] sm:$0xff] %vm505, %v3636
    %v3639 = vld [vmem:[#allocation4 + $0x70] sm:$0xff]
    %v3640 = vld [vmem:[#allocation4 + $0x8] sm:$0xff]
    %v3641 = vsel %vm300, %v3631, 0
    %3643 = vmatprep.subr.mxu0 0.0
    %3644 = vmatpush1.msra.mxu0 %v2167
    %3645 = vmatprep.subr.mxu0 0.0
    %3646 = vmatpush1.msra.mxu0 %v2168
    %3647 = vmatprep.subr.mxu0 0.0
    %3648 = vmatpush1.msra.mxu0 %v2169
    %3649 = vmatprep.subr.mxu0 0.0
    %3650 = vmatpush1.msra.mxu0 %v2170
    %3651 = vmatprep.subr.mxu0 0.0
    %3652 = vmatpush1.msra.mxu0 0.0
    %3653 = vmatprep.subr.mxu0 0.0
    %3654 = vmatpush1.msra.mxu0 0.0
    %3655 = vmatprep.subr.mxu0 0.0
    %3656 = vmatpush1.msra.mxu0 0.0
    %3657 = vmatprep.subr.mxu0 0.0
    %3658 = vmatpush1.msra.mxu0 0.0
    %3659 = vmatprep.subr.mxu0 0.0
    %3660 = vmatpush1.msra.mxu0 0.0
    %3661 = vmatprep.subr.mxu0 0.0
    %3662 = vmatpush1.msra.mxu0 0.0
    %3663 = vmatprep.subr.mxu0 0.0
    %3664 = vmatpush1.msra.mxu0 0.0
    %3665 = vmatprep.subr.mxu0 0.0
    %3666 = vmatpush1.msra.mxu0 0.0
    %3667 = vmatprep.subr.mxu0 0.0
    %3668 = vmatpush1.msra.mxu0 0.0
    %3669 = vmatprep.subr.mxu0 0.0
    %3670 = vmatpush1.msra.mxu0 0.0
    %3671 = vmatprep.subr.mxu0 0.0
    %3672 = vmatpush1.msra.mxu0 0.0
    %3673 = vmatprep.subr.mxu0 0.0
    %3674 = vmatpush1.msra.mxu0 0.0
    %3675 = vmatprep.subr.mxu0 0.0
    %3676 = vmatpush1.msra.mxu0 0.0
    %3677 = vmatprep.subr.mxu0 0.0
    %3678 = vmatpush1.msra.mxu0 0.0
    %3679 = vmatprep.subr.mxu0 0.0
    %3680 = vmatpush1.msra.mxu0 0.0
    %3681 = vmatprep.subr.mxu0 0.0
    %3682 = vmatpush1.msra.mxu0 0.0
    %3683 = vmatprep.subr.mxu0 0.0
    %3684 = vmatpush1.msra.mxu0 0.0
    %3685 = vmatprep.subr.mxu0 0.0
    %3686 = vmatpush1.msra.mxu0 0.0
    %3687 = vmatprep.subr.mxu0 0.0
    %3688 = vmatpush1.msra.mxu0 0.0
    %3689 = vmatprep.subr.mxu0 0.0
    %3690 = vmatpush1.msra.mxu0 0.0
    %3691 = vmatprep.subr.mxu0 0.0
    %3692 = vmatpush1.msra.mxu0 0.0
    %3693 = vmatprep.subr.mxu0 0.0
    %3694 = vmatpush1.msra.mxu0 0.0
    %3695 = vmatprep.subr.mxu0 0.0
    %3696 = vmatpush1.msra.mxu0 0.0
    %3697 = vmatprep.subr.mxu0 0.0
    %3698 = vmatpush1.msra.mxu0 0.0
    %3699 = vmatprep.subr.mxu0 0.0
    %3700 = vmatpush1.msra.mxu0 0.0
    %3701 = vmatprep.subr.mxu0 0.0
    %3702 = vmatpush1.msra.mxu0 0.0
    %3703 = vmatprep.subr.mxu0 0.0
    %3704 = vmatpush1.msra.mxu0 0.0
    %3705 = vmatprep.subr.mxu0 0.0
    %3706 = vmatpush1.msra.mxu0 0.0
    %3707 = vmatprep.mubr.f32.mxu0 0.0
    %3708 = vmatmul.mubr.f32.gmra.mrb[0].mxu0 %v3641
    %v3709 = vpop.f32.mrb[0].mxu0
    %v3710 = vadd.f32 0.0, %v3709
    %v3711 = vpop.f32.mrb[0].mxu0
    %3712 = vdwg.mxu0
    %v3713 = vadd.f32 %v3639, %v3710
    %v3714 = vtanh.pop %v3713
    %v3715 = vxor.u32 %v3713, 2147483648
    %v3716 = vmul.f32 %v3715, 1.442695
    %v3717 = vpow.pop %v3716
    %v3718 = vadd.f32 %v3717, 1.0
    %v3719 = vrcp.pop %v3718
    %v3720 = vmul.f32 1.0, %v3719
    %v3721 = vsel %vm111, %v3714, %v3720
    %v3722 = vmul.f32 %v3721, %v3522
    %3724 = vrot.lane.b32.xlu0 %v3721, 64
    %v3725 = vpop.permute.xlu0 %3724
    %v3727 = vmul.f32 %v3721, %v3725
    %3729 = vrot.lane.b32.xlu0 %v3727, 32
    %v3730 = vpop.permute.xlu0 %3729
    %v3732 = vadd.f32 %v3722, %v3730
    %v3733 = vtanh.pop %v3732
    %3735 = vrot.lane.b32.xlu0 %v3733, 64
    %v3736 = vpop.permute.xlu0 %3735
    %v3738 = vmul.f32 %v3721, %v3736
    %3739 = vrot.lane.b32.xlu0 %v3628, 32
    %v3740 = vpop.permute.xlu0 %3739
    %v3741 = vsel %vm300, %v3740, 0
    %3743 = vmatprep.subr.mxu0 0.0
    %3744 = vmatpush1.msra.mxu0 %v2171
    %3745 = vmatprep.subr.mxu0 0.0
    %3746 = vmatpush1.msra.mxu0 %v2172
    %3747 = vmatprep.subr.mxu0 0.0
    %3748 = vmatpush1.msra.mxu0 %v2173
    %3749 = vmatprep.subr.mxu0 0.0
    %3750 = vmatpush1.msra.mxu0 %v2174
    %3751 = vmatprep.subr.mxu0 0.0
    %3752 = vmatpush1.msra.mxu0 0.0
    %3753 = vmatprep.subr.mxu0 0.0
    %3754 = vmatpush1.msra.mxu0 0.0
    %3755 = vmatprep.subr.mxu0 0.0
    %3756 = vmatpush1.msra.mxu0 0.0
    %3757 = vmatprep.subr.mxu0 0.0
    %3758 = vmatpush1.msra.mxu0 0.0
    %3759 = vmatprep.subr.mxu0 0.0
    %3760 = vmatpush1.msra.mxu0 0.0
    %3761 = vmatprep.subr.mxu0 0.0
    %3762 = vmatpush1.msra.mxu0 0.0
    %3763 = vmatprep.subr.mxu0 0.0
    %3764 = vmatpush1.msra.mxu0 0.0
    %3765 = vmatprep.subr.mxu0 0.0
    %3766 = vmatpush1.msra.mxu0 0.0
    %3767 = vmatprep.subr.mxu0 0.0
    %3768 = vmatpush1.msra.mxu0 0.0
    %3769 = vmatprep.subr.mxu0 0.0
    %3770 = vmatpush1.msra.mxu0 0.0
    %3771 = vmatprep.subr.mxu0 0.0
    %3772 = vmatpush1.msra.mxu0 0.0
    %3773 = vmatprep.subr.mxu0 0.0
    %3774 = vmatpush1.msra.mxu0 0.0
    %3775 = vmatprep.subr.mxu0 0.0
    %3776 = vmatpush1.msra.mxu0 0.0
    %3777 = vmatprep.subr.mxu0 0.0
    %3778 = vmatpush1.msra.mxu0 0.0
    %3779 = vmatprep.subr.mxu0 0.0
    %3780 = vmatpush1.msra.mxu0 0.0
    %3781 = vmatprep.subr.mxu0 0.0
    %3782 = vmatpush1.msra.mxu0 0.0
    %3783 = vmatprep.subr.mxu0 0.0
    %3784 = vmatpush1.msra.mxu0 0.0
    %3785 = vmatprep.subr.mxu0 0.0
    %3786 = vmatpush1.msra.mxu0 0.0
    %3787 = vmatprep.subr.mxu0 0.0
    %3788 = vmatpush1.msra.mxu0 0.0
    %3789 = vmatprep.subr.mxu0 0.0
    %3790 = vmatpush1.msra.mxu0 0.0
    %3791 = vmatprep.subr.mxu0 0.0
    %3792 = vmatpush1.msra.mxu0 0.0
    %3793 = vmatprep.subr.mxu0 0.0
    %3794 = vmatpush1.msra.mxu0 0.0
    %3795 = vmatprep.subr.mxu0 0.0
    %3796 = vmatpush1.msra.mxu0 0.0
    %3797 = vmatprep.subr.mxu0 0.0
    %3798 = vmatpush1.msra.mxu0 0.0
    %3799 = vmatprep.subr.mxu0 0.0
    %3800 = vmatpush1.msra.mxu0 0.0
    %3801 = vmatprep.subr.mxu0 0.0
    %3802 = vmatpush1.msra.mxu0 0.0
    %3803 = vmatprep.subr.mxu0 0.0
    %3804 = vmatpush1.msra.mxu0 0.0
    %3805 = vmatprep.subr.mxu0 0.0
    %3806 = vmatpush1.msra.mxu0 0.0
    %3807 = vmatprep.mubr.f32.mxu0 0.0
    %3808 = vmatmul.mubr.f32.gmra.mrb[0].mxu0 %v3741
    %v3809 = vpop.f32.mrb[0].mxu0
    %v3810 = vadd.f32 0.0, %v3809
    %v3811 = vpop.f32.mrb[0].mxu0
    %3812 = vdwg.mxu0
    %v3813 = vadd.f32 %v3640, %v3810
    %v3814 = vtanh.pop %v3813
    %v3815 = vxor.u32 %v3813, 2147483648
    %v3816 = vmul.f32 %v3815, 1.442695
    %v3817 = vpow.pop %v3816
    %v3818 = vadd.f32 %v3817, 1.0
    %v3819 = vrcp.pop %v3818
    %v3820 = vmul.f32 1.0, %v3819
    %v3821 = vsel %vm111, %v3814, %v3820
    %v3822 = vmul.f32 %v3821, %v3622
    %3824 = vrot.lane.b32.xlu0 %v3821, 64
    %v3825 = vpop.permute.xlu0 %3824
    %v3827 = vmul.f32 %v3821, %v3825
    %3829 = vrot.lane.b32.xlu0 %v3827, 32
    %v3830 = vpop.permute.xlu0 %3829
    %v3832 = vadd.f32 %v3822, %v3830
    %v3833 = vtanh.pop %v3832
    %3835 = vrot.lane.b32.xlu0 %v3833, 64
    %v3836 = vpop.permute.xlu0 %3835
    %v3838 = vmul.f32 %v3821, %v3836
    %3840 = vrot.lane.b32.xlu0 %v3738, 32
    %v3841 = vpop.permute.xlu0 %3840
    %3843 = vst.msk [vmem:[#allocation3 + $0x38] sm:$0xff] %vm300, %v3841
    %3845 = vrot.lane.b32.xlu0 %v3838, 64
    %v3846 = vpop.permute.xlu0 %3845
    %3848 = vst.msk [vmem:[#allocation3] sm:$0xff] %vm505, %v3846
    %v3849 = vld [vmem:[#allocation3 + $0x38] sm:$0xff]
    %v3850 = vld [vmem:[%s9] sm:$0xff]
    %v3851 = vld [vmem:[%s9 + $0x8] sm:$0xff]
    %v3852 = vld [vmem:[%s9 + $0x10] sm:$0xff]
    %v3853 = vld [vmem:[%s9 + $0x18] sm:$0xff]
    %v3854 = vld [vmem:[%s9 + $0x20] sm:$0xff]
    %v3855 = vld [vmem:[%s9 + $0x28] sm:$0xff]
    %v3856 = vld [vmem:[%s9 + $0x30] sm:$0xff]
    %v3857 = vld [vmem:[%s9 + $0x38] sm:$0xff]
    %v3858 = vld [vmem:[%s10] sm:$0x1]
    %v3860 = vlaneseq
    %v3861 = vshrl.u32 %v3860, 7
    %v3862 = vsub.s32 0, %v3861
    %v3863 = vrot.slane %v3858, %v3862
    %v3866 = vsel %vm2013, %v3849, 0
    %3868 = vmatprep.subr.mxu0 0.0
    %3869 = vmatpush1.msra.mxu0 %v3850
    %3870 = vmatprep.subr.mxu0 0.0
    %3871 = vmatpush1.msra.mxu0 %v3851
    %3872 = vmatprep.subr.mxu0 0.0
    %3873 = vmatpush1.msra.mxu0 %v3852
    %3874 = vmatprep.subr.mxu0 0.0
    %3875 = vmatpush1.msra.mxu0 %v3853
    %3876 = vmatprep.subr.mxu0 0.0
    %3877 = vmatpush1.msra.mxu0 %v3854
    %3878 = vmatprep.subr.mxu0 0.0
    %3879 = vmatpush1.msra.mxu0 %v3855
    %3880 = vmatprep.subr.mxu0 0.0
    %3881 = vmatpush1.msra.mxu0 %v3856
    %3882 = vmatprep.subr.mxu0 0.0
    %3883 = vmatpush1.msra.mxu0 %v3857
    %3884 = vmatprep.subr.mxu0 0.0
    %3885 = vmatpush1.msra.mxu0 0.0
    %3886 = vmatprep.subr.mxu0 0.0
    %3887 = vmatpush1.msra.mxu0 0.0
    %3888 = vmatprep.subr.mxu0 0.0
    %3889 = vmatpush1.msra.mxu0 0.0
    %3890 = vmatprep.subr.mxu0 0.0
    %3891 = vmatpush1.msra.mxu0 0.0
    %3892 = vmatprep.subr.mxu0 0.0
    %3893 = vmatpush1.msra.mxu0 0.0
    %3894 = vmatprep.subr.mxu0 0.0
    %3895 = vmatpush1.msra.mxu0 0.0
    %3896 = vmatprep.subr.mxu0 0.0
    %3897 = vmatpush1.msra.mxu0 0.0
    %3898 = vmatprep.subr.mxu0 0.0
    %3899 = vmatpush1.msra.mxu0 0.0
    %3900 = vmatprep.subr.mxu0 0.0
    %3901 = vmatpush1.msra.mxu0 0.0
    %3902 = vmatprep.subr.mxu0 0.0
    %3903 = vmatpush1.msra.mxu0 0.0
    %3904 = vmatprep.subr.mxu0 0.0
    %3905 = vmatpush1.msra.mxu0 0.0
    %3906 = vmatprep.subr.mxu0 0.0
    %3907 = vmatpush1.msra.mxu0 0.0
    %3908 = vmatprep.subr.mxu0 0.0
    %3909 = vmatpush1.msra.mxu0 0.0
    %3910 = vmatprep.subr.mxu0 0.0
    %3911 = vmatpush1.msra.mxu0 0.0
    %3912 = vmatprep.subr.mxu0 0.0
    %3913 = vmatpush1.msra.mxu0 0.0
    %3914 = vmatprep.subr.mxu0 0.0
    %3915 = vmatpush1.msra.mxu0 0.0
    %3916 = vmatprep.subr.mxu0 0.0
    %3917 = vmatpush1.msra.mxu0 0.0
    %3918 = vmatprep.subr.mxu0 0.0
    %3919 = vmatpush1.msra.mxu0 0.0
    %3920 = vmatprep.subr.mxu0 0.0
    %3921 = vmatpush1.msra.mxu0 0.0
    %3922 = vmatprep.subr.mxu0 0.0
    %3923 = vmatpush1.msra.mxu0 0.0
    %3924 = vmatprep.subr.mxu0 0.0
    %3925 = vmatpush1.msra.mxu0 0.0
    %3926 = vmatprep.subr.mxu0 0.0
    %3927 = vmatpush1.msra.mxu0 0.0
    %3928 = vmatprep.subr.mxu0 0.0
    %3929 = vmatpush1.msra.mxu0 0.0
    %3930 = vmatprep.subr.mxu0 0.0
    %3931 = vmatpush1.msra.mxu0 0.0
    %3932 = vmatprep.mubr.f32.mxu0 0.0
    %3933 = vmatmul.mubr.f32.gmra.mrb[0].mxu0 %v3866
    %v3934 = vpop.f32.mrb[0].mxu0
    %v3935 = vadd.f32 %v3863, %v3934
    %v3936 = vpop.f32.mrb[0].mxu0
    %3937 = vdwg.mxu0
    %3938 = vst [vmem:[#allocation14] sm:$0xff] %v3935
    // Predicated region
    $region66: #{tpu_custom_call.1} parent=1 // pred_check
      _
    $region67: #{tpu_custom_call.1} parent=1 // pred_check_branch
      %3940 = sbr.rel (0) target = $region69
    $region68: #{tpu_custom_call.1} parent=1 // pred_region
      %s3942 = ssub.s32 128, 128
      %3943 = vsyncadd [#allocation7], %s3942
      %s3945 = sshll.u32 [#allocation14], 4
      %s3946 = int_to_ptr.vmem [resolvable:$true] %s3945
      %3948 = dma.vmem_to_hbm [thread:$0]  %s3946, 128, %s11, [#allocation7]
    $region69: #{tpu_custom_call.1} parent=1 // pred_fallthru
      _
    // Predicated region
    $region70: #{tpu_custom_call.1} parent=1 // pred_check
      _
    $region71: #{tpu_custom_call.1} parent=1 // pred_check_branch
      %3950 = sbr.rel (0) target = $region73
    $region72: #{tpu_custom_call.1} parent=1 // pred_region
      %3951 = dma.done [#allocation7], 128
    $region73: #{tpu_custom_call.1} parent=1 // pred_fallthru
      _
    %3952 = vsyncpa [#allocation6], 1
    %3953 = vsyncpa [#allocation9], 1
    %3954 = vsyncpa [#allocation12], 1
    %3955 = vsyncpa [#allocation7], 1

</llo_original>
